<compile_context>
chip_gen: v7x
topology: tpu7x:2x2x1
jax: 0.10.0
libtpu: 0.0.40
codegen_flags: <defaults>
</compile_context>

<pallas_src>
import jax
import jax.numpy as jnp
from jax import lax
from jax.experimental import pallas as pl
from jax.experimental.pallas import tpu as pltpu

# ----------------------------- model dimensions -----------------------------
B = 2            # batch (number of prompts)
L = 8            # sequence length (context length)
D = 32           # transformer width
H = 4            # attention heads
DH = D // H      # head dim
P = 16           # text projection output dim
NUM_LAYERS = 2   # transformer depth
LN_EPS = 1e-5
NEG_INF = -1e9   # causal-mask fill value


def _layer_norm(x, w, b):
    mu = jnp.mean(x, axis=-1, keepdims=True)
    var = jnp.mean((x - mu) ** 2, axis=-1, keepdims=True)
    return (x - mu) * lax.rsqrt(var + LN_EPS) * w + b


# ----------------------- single fused forward-pass kernel --------------------
def text_encoder_kernel(
    prompts_ref, pos_ref, eot_ref,
    ln1w_ref, ln1b_ref, wqkv_ref, bqkv_ref, wo_ref, bo_ref,
    ln2w_ref, ln2b_ref, w1_ref, b1_ref, w2_ref, b2_ref,
    lnfw_ref, lnfb_ref, proj_ref,
    o_ref,
):
    # 1) x = prompts + positional_embedding  (pos broadcast over batch)
    x = prompts_ref[...] + pos_ref[...]                       # (B, L, D)
    x = x.reshape(B * L, D).astype(jnp.float32)               # lane/sublane friendly

    # causal mask: built ONCE per kernel invocation, shared by all layers/batch
    rows = lax.broadcasted_iota(jnp.int32, (L, L), 0)
    cols = lax.broadcasted_iota(jnp.int32, (L, L), 1)
    causal = jnp.where(cols <= rows, 0.0, NEG_INF).astype(jnp.float32)   # (L, L)
    scale = 1.0 / (DH ** 0.5)

    # 2) transformer: residual attention blocks, weights resident in VMEM
    for l in range(NUM_LAYERS):                                # static layer loop
        # --- causal multi-head self-attention (pre-LN) ---
        h = _layer_norm(x, ln1w_ref[l], ln1b_ref[l])           # (B*L, D)
        qkv = jnp.dot(h, wqkv_ref[l],
                      preferred_element_type=jnp.float32) + bqkv_ref[l]
        q = qkv[:, :D] * scale                                 # fold scale once
        k = qkv[:, D:2 * D]
        v = qkv[:, 2 * D:]

        wo_l = wo_ref[l]                                       # (D, D)
        attn = jnp.zeros((B * L, D), jnp.float32)
        for hd in range(H):                                    # static, H = 4
            qh = q[:, hd * DH:(hd + 1) * DH].reshape(B, L, DH)
            kh = k[:, hd * DH:(hd + 1) * DH].reshape(B, L, DH)
            vh = v[:, hd * DH:(hd + 1) * DH].reshape(B, L, DH)
            # scores for the whole batch at once
            s = jnp.einsum('bqd,bkd->bqk', qh, kh,
                           preferred_element_type=jnp.float32)
            s = s + causal[None, :, :]
            s = s - jnp.max(s, axis=-1, keepdims=True)
            p = jnp.exp(s)
            p = p * pl.reciprocal(jnp.sum(p, axis=-1, keepdims=True), approx=True)
            oh = jnp.einsum('bqk,bkd->bqd', p, vh,
                            preferred_element_type=jnp.float32)
            # output projection decomposed per head (avoids in-kernel concat)
            attn = attn + jnp.dot(oh.reshape(B * L, DH),
                                  wo_l[hd * DH:(hd + 1) * DH, :],
                                  preferred_element_type=jnp.float32)
        x = x + attn + bo_ref[l]

        # --- MLP with QuickGELU (CLIP) ---
        h2 = _layer_norm(x, ln2w_ref[l], ln2b_ref[l])
        m = jnp.dot(h2, w1_ref[l], preferred_element_type=jnp.float32) + b1_ref[l]
        m = m * jax.nn.sigmoid(1.702 * m)                      # QuickGELU
        m = jnp.dot(m, w2_ref[l], preferred_element_type=jnp.float32) + b2_ref[l]
        x = x + m

    # 3) EOT-token gather (one-hot matmul, no scratch) + ln_final + projection.
    #    LayerNorm is row-wise so it commutes with the gather.
    row_id = lax.broadcasted_iota(jnp.int32, (B, B * L), 0)
    col_id = lax.broadcasted_iota(jnp.int32, (B, B * L), 1)
    sel = jnp.zeros((B, B * L), jnp.float32)
    for b in range(B):                                         # static, B = 2
        idx = jnp.clip(eot_ref[b], 0, L - 1) + b * L           # clamp: no OOB read
        sel = sel + jnp.where((row_id == b) & (col_id == idx), 1.0, 0.0)
    g = jnp.dot(sel, x, preferred_element_type=jnp.float32)    # (B, D) gathered rows
    g = _layer_norm(g, lnfw_ref[...], lnfb_ref[...])
    o_ref[...] = jnp.dot(g, proj_ref[...],
                         preferred_element_type=jnp.float32).astype(o_ref.dtype)


def _vmem():
    return pl.BlockSpec(memory_space=pltpu.MemorySpace.VMEM)


def text_encoder_forward(prompts, tokenized_prompts, params):
    (pos_emb, ln1w, ln1b, wqkv, bqkv, wo, bo, ln2w, ln2b,
     w1, b1, w2, b2, lnf_w, lnf_b, text_proj) = params
    # EOT-token index (argmax over int token ids) — scalar glue in JAX.
    eot_idx = jnp.argmax(tokenized_prompts, axis=-1).astype(jnp.int32)

    in_specs = ([_vmem(), _vmem(),
                 pl.BlockSpec(memory_space=pltpu.MemorySpace.SMEM)]
                + [_vmem()] * 15)
    return pl.pallas_call(
        text_encoder_kernel,
        out_shape=jax.ShapeDtypeStruct((B, P), prompts.dtype),
        in_specs=in_specs,
        out_specs=pl.BlockSpec(memory_space=pltpu.MemorySpace.VMEM),
    )(prompts, pos_emb, eot_idx,
      ln1w, ln1b, wqkv, bqkv, wo, bo, ln2w, ln2b, w1, b1, w2, b2,
      lnf_w, lnf_b, text_proj)


# ------------------------- parameter init (synthetic) ------------------------
def init_params(key):
    keys = jax.random.split(key, 2 + NUM_LAYERS)
    pos_emb = 0.02 * jax.random.normal(keys[0], (L, D), jnp.float32)
    lnf_w = jnp.ones((1, D), jnp.float32)
    lnf_b = jnp.zeros((1, D), jnp.float32)
    text_proj = 0.02 * jax.random.normal(keys[1], (D, P), jnp.float32)

    def make_layer(k):
        lk = jax.random.split(k, 4)
        return dict(
            ln1w=jnp.ones((1, D), jnp.float32),
            ln1b=jnp.zeros((1, D), jnp.float32),
            wqkv=0.02 * jax.random.normal(lk[0], (D, 3 * D), jnp.float32),
            bqkv=jnp.zeros((1, 3 * D), jnp.float32),
            wo=0.02 * jax.random.normal(lk[1], (D, D), jnp.float32),
            bo=jnp.zeros((1, D), jnp.float32),
            ln2w=jnp.ones((1, D), jnp.float32),
            ln2b=jnp.zeros((1, D), jnp.float32),
            w1=0.02 * jax.random.normal(lk[2], (D, 4 * D), jnp.float32),
            b1=jnp.zeros((1, 4 * D), jnp.float32),
            w2=0.02 * jax.random.normal(lk[3], (4 * D, D), jnp.float32),
            b2=jnp.zeros((1, D), jnp.float32),
        )

    layers = [make_layer(keys[2 + i]) for i in range(NUM_LAYERS)]

    def stack(name):
        return jnp.stack([lp[name] for lp in layers], axis=0).astype(jnp.float32)

    return (pos_emb,
            stack('ln1w'), stack('ln1b'), stack('wqkv'), stack('bqkv'),
            stack('wo'), stack('bo'), stack('ln2w'), stack('ln2b'),
            stack('w1'), stack('b1'), stack('w2'), stack('b2'),
            lnf_w, lnf_b, text_proj)


# ------------------------------- entry point ---------------------------------
if __name__ == "__main__":
    key = jax.random.PRNGKey(0)
    kp, kt, kw = jax.random.split(key, 3)

    params = init_params(kw)
    prompts = jax.random.normal(kp, (B, L, D), jnp.float32)
    tokenized_prompts = jax.random.randint(kt, (B, L), 1, 100, dtype=jnp.int32)
    # place a synthetic EOT token (largest id) near the end of each prompt
    tokenized_prompts = tokenized_prompts.at[:, L - 2].set(1000)

    out = text_encoder_forward(prompts, tokenized_prompts, params)
    out = jax.block_until_ready(out)
    assert out.shape == (B, P) and out.dtype == jnp.float32
    print("KERNEL_OK")
</pallas_src>

<mosaic_0001>
module attributes {stable_mosaic.version = 11 : i64} {
  func.func @text_encoder_kernel(%arg0: memref<2x8x32xf32, #tpu.memory_space<vmem>>, %arg1: memref<8x32xf32, #tpu.memory_space<vmem>>, %arg2: memref<2xi32, #tpu.memory_space<smem>>, %arg3: memref<2x1x32xf32, #tpu.memory_space<vmem>>, %arg4: memref<2x1x32xf32, #tpu.memory_space<vmem>>, %arg5: memref<2x32x96xf32, #tpu.memory_space<vmem>>, %arg6: memref<2x1x96xf32, #tpu.memory_space<vmem>>, %arg7: memref<2x32x32xf32, #tpu.memory_space<vmem>>, %arg8: memref<2x1x32xf32, #tpu.memory_space<vmem>>, %arg9: memref<2x1x32xf32, #tpu.memory_space<vmem>>, %arg10: memref<2x1x32xf32, #tpu.memory_space<vmem>>, %arg11: memref<2x32x128xf32, #tpu.memory_space<vmem>>, %arg12: memref<2x1x128xf32, #tpu.memory_space<vmem>>, %arg13: memref<2x128x32xf32, #tpu.memory_space<vmem>>, %arg14: memref<2x1x32xf32, #tpu.memory_space<vmem>>, %arg15: memref<1x32xf32, #tpu.memory_space<vmem>>, %arg16: memref<1x32xf32, #tpu.memory_space<vmem>>, %arg17: memref<32x16xf32, #tpu.memory_space<vmem>>, %arg18: memref<2x16xf32, #tpu.memory_space<vmem>>) attributes {dimension_semantics = [], scalar_prefetch = 0 : i64, scratch_operands = 0 : i64, tpu.core_type = #tpu.core_type<tc>} {
    %c0 = arith.constant 0 : index
    %c0_0 = arith.constant 0 : index
    %c0_1 = arith.constant 0 : index
    %0 = vector.load %arg0[%c0, %c0_0, %c0_1] : memref<2x8x32xf32, #tpu.memory_space<vmem>>, vector<2x8x32xf32>
    %c0_2 = arith.constant 0 : index
    %c0_3 = arith.constant 0 : index
    %1 = vector.load %arg1[%c0_2, %c0_3] : memref<8x32xf32, #tpu.memory_space<vmem>>, vector<8x32xf32>
    %2 = vector.shape_cast %1 : vector<8x32xf32> to vector<1x8x32xf32>
    %3 = vector.broadcast %2 : vector<1x8x32xf32> to vector<2x8x32xf32>
    %4 = arith.addf %0, %3 : vector<2x8x32xf32>
    %5 = vector.shape_cast %4 : vector<2x8x32xf32> to vector<16x32xf32>
    %6 = tpu.iota {dimensions = array<i32: 0>} : vector<8x8xi32>
    %7 = tpu.iota {dimensions = array<i32: 1>} : vector<8x8xi32>
    %8 = arith.cmpi sle, %7, %6 : vector<8x8xi32>
    %cst = arith.constant 0.000000e+00 : f32
    %cst_4 = arith.constant -1.000000e+09 : f32
    %9 = vector.broadcast %cst : f32 to vector<8x8xf32>
    %10 = vector.broadcast %cst_4 : f32 to vector<8x8xf32>
    %11 = arith.select %8, %9, %10 : vector<8x8xi1>, vector<8x8xf32>
    %c0_5 = arith.constant 0 : index
    %c0_6 = arith.constant 0 : index
    %c0_7 = arith.constant 0 : index
    %12 = vector.load %arg3[%c0_5, %c0_6, %c0_7] : memref<2x1x32xf32, #tpu.memory_space<vmem>>, vector<1x1x32xf32>
    %13 = vector.shape_cast %12 : vector<1x1x32xf32> to vector<1x32xf32>
    %c0_8 = arith.constant 0 : index
    %c0_9 = arith.constant 0 : index
    %c0_10 = arith.constant 0 : index
    %14 = vector.load %arg4[%c0_8, %c0_9, %c0_10] : memref<2x1x32xf32, #tpu.memory_space<vmem>>, vector<1x1x32xf32>
    %15 = vector.shape_cast %14 : vector<1x1x32xf32> to vector<1x32xf32>
    %cst_11 = arith.constant dense<0.000000e+00> : vector<16xf32>
    %16 = vector.multi_reduction <add>, %5, %cst_11 [1] : vector<16x32xf32> to vector<16xf32>
    %17 = vector.shape_cast %16 : vector<16xf32> to vector<16x1xf32>
    %cst_12 = arith.constant 3.200000e+01 : f32
    %18 = vector.broadcast %cst_12 : f32 to vector<16x1xf32>
    %19 = arith.divf %17, %18 : vector<16x1xf32>
    %20 = vector.broadcast %19 : vector<16x1xf32> to vector<16x32xf32>
    %21 = arith.subf %5, %20 : vector<16x32xf32>
    %22 = arith.mulf %21, %21 : vector<16x32xf32>
    %cst_13 = arith.constant dense<0.000000e+00> : vector<16xf32>
    %23 = vector.multi_reduction <add>, %22, %cst_13 [1] : vector<16x32xf32> to vector<16xf32>
    %24 = vector.shape_cast %23 : vector<16xf32> to vector<16x1xf32>
    %cst_14 = arith.constant 3.200000e+01 : f32
    %25 = vector.broadcast %cst_14 : f32 to vector<16x1xf32>
    %26 = arith.divf %24, %25 : vector<16x1xf32>
    %27 = vector.broadcast %19 : vector<16x1xf32> to vector<16x32xf32>
    %28 = arith.subf %5, %27 : vector<16x32xf32>
    %cst_15 = arith.constant 9.99999974E-6 : f32
    %29 = vector.broadcast %cst_15 : f32 to vector<16x1xf32>
    %30 = arith.addf %26, %29 : vector<16x1xf32>
    %31 = math.rsqrt %30 : vector<16x1xf32>
    %32 = vector.broadcast %31 : vector<16x1xf32> to vector<16x32xf32>
    %33 = arith.mulf %28, %32 : vector<16x32xf32>
    %34 = vector.broadcast %13 : vector<1x32xf32> to vector<16x32xf32>
    %35 = arith.mulf %33, %34 : vector<16x32xf32>
    %36 = vector.broadcast %15 : vector<1x32xf32> to vector<16x32xf32>
    %37 = arith.addf %35, %36 : vector<16x32xf32>
    %c0_16 = arith.constant 0 : index
    %c0_17 = arith.constant 0 : index
    %c0_18 = arith.constant 0 : index
    %38 = vector.load %arg5[%c0_16, %c0_17, %c0_18] : memref<2x32x96xf32, #tpu.memory_space<vmem>>, vector<1x32x96xf32>
    %39 = vector.shape_cast %38 : vector<1x32x96xf32> to vector<32x96xf32>
    %cst_19 = arith.constant dense<0.000000e+00> : vector<16x96xf32>
    %40 = tpu.matmul %37, %39, %cst_19 {dimension_numbers = #tpu.dot_dimension_numbers<[1], [0], [0], [1], [0, 0, 1, 1], [], []>} : vector<16x32xf32>, vector<32x96xf32>, vector<16x96xf32> -> vector<16x96xf32>
    %c0_20 = arith.constant 0 : index
    %c0_21 = arith.constant 0 : index
    %c0_22 = arith.constant 0 : index
    %41 = vector.load %arg6[%c0_20, %c0_21, %c0_22] : memref<2x1x96xf32, #tpu.memory_space<vmem>>, vector<1x1x96xf32>
    %42 = vector.shape_cast %41 : vector<1x1x96xf32> to vector<1x96xf32>
    %43 = vector.broadcast %42 : vector<1x96xf32> to vector<16x96xf32>
    %44 = arith.addf %40, %43 : vector<16x96xf32>
    %45 = vector.extract_strided_slice %44 {offsets = [0, 0], sizes = [16, 32], strides = [1, 1]} : vector<16x96xf32> to vector<16x32xf32>
    %cst_23 = arith.constant 0.353553385 : f32
    %46 = vector.broadcast %cst_23 : f32 to vector<16x32xf32>
    %47 = arith.mulf %45, %46 : vector<16x32xf32>
    %48 = vector.extract_strided_slice %44 {offsets = [0, 32], sizes = [16, 32], strides = [1, 1]} : vector<16x96xf32> to vector<16x32xf32>
    %49 = vector.extract_strided_slice %44 {offsets = [0, 64], sizes = [16, 32], strides = [1, 1]} : vector<16x96xf32> to vector<16x32xf32>
    %c0_24 = arith.constant 0 : index
    %c0_25 = arith.constant 0 : index
    %c0_26 = arith.constant 0 : index
    %50 = vector.load %arg7[%c0_24, %c0_25, %c0_26] : memref<2x32x32xf32, #tpu.memory_space<vmem>>, vector<1x32x32xf32>
    %51 = vector.shape_cast %50 : vector<1x32x32xf32> to vector<32x32xf32>
    %cst_27 = arith.constant 0.000000e+00 : f32
    %52 = vector.broadcast %cst_27 : f32 to vector<16x32xf32>
    %53 = vector.extract_strided_slice %47 {offsets = [0, 0], sizes = [16, 8], strides = [1, 1]} : vector<16x32xf32> to vector<16x8xf32>
    %54 = vector.shape_cast %53 : vector<16x8xf32> to vector<2x8x8xf32>
    %55 = vector.extract_strided_slice %48 {offsets = [0, 0], sizes = [16, 8], strides = [1, 1]} : vector<16x32xf32> to vector<16x8xf32>
    %56 = vector.shape_cast %55 : vector<16x8xf32> to vector<2x8x8xf32>
    %57 = vector.extract_strided_slice %49 {offsets = [0, 0], sizes = [16, 8], strides = [1, 1]} : vector<16x32xf32> to vector<16x8xf32>
    %58 = vector.shape_cast %57 : vector<16x8xf32> to vector<2x8x8xf32>
    "tpu.trace_start"() <{level = 10 : i32, message = "bqd,bkd->bqk"}> : () -> ()
    %cst_28 = arith.constant dense<0.000000e+00> : vector<2x8x8xf32>
    %59 = tpu.matmul %54, %56, %cst_28 {dimension_numbers = #tpu.dot_dimension_numbers<[2], [2], [1], [1], [0, 0, 0, 1, 1, 1], [0], [0]>} : vector<2x8x8xf32>, vector<2x8x8xf32>, vector<2x8x8xf32> -> vector<2x8x8xf32>
    "tpu.trace_stop"() : () -> ()
    %60 = vector.shape_cast %11 : vector<8x8xf32> to vector<1x8x8xf32>
    %61 = vector.broadcast %60 : vector<1x8x8xf32> to vector<2x8x8xf32>
    %62 = arith.addf %59, %61 : vector<2x8x8xf32>
    %cst_29 = arith.constant dense<0xFF800000> : vector<2x8xf32>
    %63 = vector.multi_reduction <maximumf>, %62, %cst_29 [2] : vector<2x8x8xf32> to vector<2x8xf32>
    %64 = vector.shape_cast %63 : vector<2x8xf32> to vector<2x8x1xf32>
    %65 = vector.broadcast %64 : vector<2x8x1xf32> to vector<2x8x8xf32>
    %66 = arith.subf %62, %65 : vector<2x8x8xf32>
    %67 = math.exp %66 : vector<2x8x8xf32>
    %cst_30 = arith.constant dense<0.000000e+00> : vector<2x8xf32>
    %68 = vector.multi_reduction <add>, %67, %cst_30 [2] : vector<2x8x8xf32> to vector<2x8xf32>
    %69 = vector.shape_cast %68 : vector<2x8xf32> to vector<2x8x1xf32>
    %70 = tpu.reciprocal %69 {approx = true} : vector<2x8x1xf32> -> vector<2x8x1xf32>
    %71 = vector.broadcast %70 : vector<2x8x1xf32> to vector<2x8x8xf32>
    %72 = arith.mulf %67, %71 : vector<2x8x8xf32>
    "tpu.trace_start"() <{level = 10 : i32, message = "bqk,bkd->bqd"}> : () -> ()
    %cst_31 = arith.constant dense<0.000000e+00> : vector<2x8x8xf32>
    %73 = tpu.matmul %72, %58, %cst_31 {dimension_numbers = #tpu.dot_dimension_numbers<[2], [1], [1], [2], [0, 0, 0, 1, 1, 2], [0], [0]>} : vector<2x8x8xf32>, vector<2x8x8xf32>, vector<2x8x8xf32> -> vector<2x8x8xf32>
    "tpu.trace_stop"() : () -> ()
    %74 = vector.shape_cast %73 : vector<2x8x8xf32> to vector<16x8xf32>
    %75 = vector.extract_strided_slice %51 {offsets = [0, 0], sizes = [8, 32], strides = [1, 1]} : vector<32x32xf32> to vector<8x32xf32>
    %cst_32 = arith.constant dense<0.000000e+00> : vector<16x32xf32>
    %76 = tpu.matmul %74, %75, %cst_32 {dimension_numbers = #tpu.dot_dimension_numbers<[1], [0], [0], [1], [0, 0, 1, 1], [], []>} : vector<16x8xf32>, vector<8x32xf32>, vector<16x32xf32> -> vector<16x32xf32>
    %77 = arith.addf %52, %76 : vector<16x32xf32>
    %78 = vector.extract_strided_slice %47 {offsets = [0, 8], sizes = [16, 8], strides = [1, 1]} : vector<16x32xf32> to vector<16x8xf32>
    %79 = vector.shape_cast %78 : vector<16x8xf32> to vector<2x8x8xf32>
    %80 = vector.extract_strided_slice %48 {offsets = [0, 8], sizes = [16, 8], strides = [1, 1]} : vector<16x32xf32> to vector<16x8xf32>
    %81 = vector.shape_cast %80 : vector<16x8xf32> to vector<2x8x8xf32>
    %82 = vector.extract_strided_slice %49 {offsets = [0, 8], sizes = [16, 8], strides = [1, 1]} : vector<16x32xf32> to vector<16x8xf32>
    %83 = vector.shape_cast %82 : vector<16x8xf32> to vector<2x8x8xf32>
    "tpu.trace_start"() <{level = 10 : i32, message = "bqd,bkd->bqk"}> : () -> ()
    %cst_33 = arith.constant dense<0.000000e+00> : vector<2x8x8xf32>
    %84 = tpu.matmul %79, %81, %cst_33 {dimension_numbers = #tpu.dot_dimension_numbers<[2], [2], [1], [1], [0, 0, 0, 1, 1, 1], [0], [0]>} : vector<2x8x8xf32>, vector<2x8x8xf32>, vector<2x8x8xf32> -> vector<2x8x8xf32>
    "tpu.trace_stop"() : () -> ()
    %85 = vector.shape_cast %11 : vector<8x8xf32> to vector<1x8x8xf32>
    %86 = vector.broadcast %85 : vector<1x8x8xf32> to vector<2x8x8xf32>
    %87 = arith.addf %84, %86 : vector<2x8x8xf32>
    %cst_34 = arith.constant dense<0xFF800000> : vector<2x8xf32>
    %88 = vector.multi_reduction <maximumf>, %87, %cst_34 [2] : vector<2x8x8xf32> to vector<2x8xf32>
    %89 = vector.shape_cast %88 : vector<2x8xf32> to vector<2x8x1xf32>
    %90 = vector.broadcast %89 : vector<2x8x1xf32> to vector<2x8x8xf32>
    %91 = arith.subf %87, %90 : vector<2x8x8xf32>
    %92 = math.exp %91 : vector<2x8x8xf32>
    %cst_35 = arith.constant dense<0.000000e+00> : vector<2x8xf32>
    %93 = vector.multi_reduction <add>, %92, %cst_35 [2] : vector<2x8x8xf32> to vector<2x8xf32>
    %94 = vector.shape_cast %93 : vector<2x8xf32> to vector<2x8x1xf32>
    %95 = tpu.reciprocal %94 {approx = true} : vector<2x8x1xf32> -> vector<2x8x1xf32>
    %96 = vector.broadcast %95 : vector<2x8x1xf32> to vector<2x8x8xf32>
    %97 = arith.mulf %92, %96 : vector<2x8x8xf32>
    "tpu.trace_start"() <{level = 10 : i32, message = "bqk,bkd->bqd"}> : () -> ()
    %cst_36 = arith.constant dense<0.000000e+00> : vector<2x8x8xf32>
    %98 = tpu.matmul %97, %83, %cst_36 {dimension_numbers = #tpu.dot_dimension_numbers<[2], [1], [1], [2], [0, 0, 0, 1, 1, 2], [0], [0]>} : vector<2x8x8xf32>, vector<2x8x8xf32>, vector<2x8x8xf32> -> vector<2x8x8xf32>
    "tpu.trace_stop"() : () -> ()
    %99 = vector.shape_cast %98 : vector<2x8x8xf32> to vector<16x8xf32>
    %100 = vector.extract_strided_slice %51 {offsets = [8, 0], sizes = [8, 32], strides = [1, 1]} : vector<32x32xf32> to vector<8x32xf32>
    %cst_37 = arith.constant dense<0.000000e+00> : vector<16x32xf32>
    %101 = tpu.matmul %99, %100, %cst_37 {dimension_numbers = #tpu.dot_dimension_numbers<[1], [0], [0], [1], [0, 0, 1, 1], [], []>} : vector<16x8xf32>, vector<8x32xf32>, vector<16x32xf32> -> vector<16x32xf32>
    %102 = arith.addf %77, %101 : vector<16x32xf32>
    %103 = vector.extract_strided_slice %47 {offsets = [0, 16], sizes = [16, 8], strides = [1, 1]} : vector<16x32xf32> to vector<16x8xf32>
    %104 = vector.shape_cast %103 : vector<16x8xf32> to vector<2x8x8xf32>
    %105 = vector.extract_strided_slice %48 {offsets = [0, 16], sizes = [16, 8], strides = [1, 1]} : vector<16x32xf32> to vector<16x8xf32>
    %106 = vector.shape_cast %105 : vector<16x8xf32> to vector<2x8x8xf32>
    %107 = vector.extract_strided_slice %49 {offsets = [0, 16], sizes = [16, 8], strides = [1, 1]} : vector<16x32xf32> to vector<16x8xf32>
    %108 = vector.shape_cast %107 : vector<16x8xf32> to vector<2x8x8xf32>
    "tpu.trace_start"() <{level = 10 : i32, message = "bqd,bkd->bqk"}> : () -> ()
    %cst_38 = arith.constant dense<0.000000e+00> : vector<2x8x8xf32>
    %109 = tpu.matmul %104, %106, %cst_38 {dimension_numbers = #tpu.dot_dimension_numbers<[2], [2], [1], [1], [0, 0, 0, 1, 1, 1], [0], [0]>} : vector<2x8x8xf32>, vector<2x8x8xf32>, vector<2x8x8xf32> -> vector<2x8x8xf32>
    "tpu.trace_stop"() : () -> ()
    %110 = vector.shape_cast %11 : vector<8x8xf32> to vector<1x8x8xf32>
    %111 = vector.broadcast %110 : vector<1x8x8xf32> to vector<2x8x8xf32>
    %112 = arith.addf %109, %111 : vector<2x8x8xf32>
    %cst_39 = arith.constant dense<0xFF800000> : vector<2x8xf32>
    %113 = vector.multi_reduction <maximumf>, %112, %cst_39 [2] : vector<2x8x8xf32> to vector<2x8xf32>
    %114 = vector.shape_cast %113 : vector<2x8xf32> to vector<2x8x1xf32>
    %115 = vector.broadcast %114 : vector<2x8x1xf32> to vector<2x8x8xf32>
    %116 = arith.subf %112, %115 : vector<2x8x8xf32>
    %117 = math.exp %116 : vector<2x8x8xf32>
    %cst_40 = arith.constant dense<0.000000e+00> : vector<2x8xf32>
    %118 = vector.multi_reduction <add>, %117, %cst_40 [2] : vector<2x8x8xf32> to vector<2x8xf32>
    %119 = vector.shape_cast %118 : vector<2x8xf32> to vector<2x8x1xf32>
    %120 = tpu.reciprocal %119 {approx = true} : vector<2x8x1xf32> -> vector<2x8x1xf32>
    %121 = vector.broadcast %120 : vector<2x8x1xf32> to vector<2x8x8xf32>
    %122 = arith.mulf %117, %121 : vector<2x8x8xf32>
    "tpu.trace_start"() <{level = 10 : i32, message = "bqk,bkd->bqd"}> : () -> ()
    %cst_41 = arith.constant dense<0.000000e+00> : vector<2x8x8xf32>
    %123 = tpu.matmul %122, %108, %cst_41 {dimension_numbers = #tpu.dot_dimension_numbers<[2], [1], [1], [2], [0, 0, 0, 1, 1, 2], [0], [0]>} : vector<2x8x8xf32>, vector<2x8x8xf32>, vector<2x8x8xf32> -> vector<2x8x8xf32>
    "tpu.trace_stop"() : () -> ()
    %124 = vector.shape_cast %123 : vector<2x8x8xf32> to vector<16x8xf32>
    %125 = vector.extract_strided_slice %51 {offsets = [16, 0], sizes = [8, 32], strides = [1, 1]} : vector<32x32xf32> to vector<8x32xf32>
    %cst_42 = arith.constant dense<0.000000e+00> : vector<16x32xf32>
    %126 = tpu.matmul %124, %125, %cst_42 {dimension_numbers = #tpu.dot_dimension_numbers<[1], [0], [0], [1], [0, 0, 1, 1], [], []>} : vector<16x8xf32>, vector<8x32xf32>, vector<16x32xf32> -> vector<16x32xf32>
    %127 = arith.addf %102, %126 : vector<16x32xf32>
    %128 = vector.extract_strided_slice %47 {offsets = [0, 24], sizes = [16, 8], strides = [1, 1]} : vector<16x32xf32> to vector<16x8xf32>
    %129 = vector.shape_cast %128 : vector<16x8xf32> to vector<2x8x8xf32>
    %130 = vector.extract_strided_slice %48 {offsets = [0, 24], sizes = [16, 8], strides = [1, 1]} : vector<16x32xf32> to vector<16x8xf32>
    %131 = vector.shape_cast %130 : vector<16x8xf32> to vector<2x8x8xf32>
    %132 = vector.extract_strided_slice %49 {offsets = [0, 24], sizes = [16, 8], strides = [1, 1]} : vector<16x32xf32> to vector<16x8xf32>
    %133 = vector.shape_cast %132 : vector<16x8xf32> to vector<2x8x8xf32>
    "tpu.trace_start"() <{level = 10 : i32, message = "bqd,bkd->bqk"}> : () -> ()
    %cst_43 = arith.constant dense<0.000000e+00> : vector<2x8x8xf32>
    %134 = tpu.matmul %129, %131, %cst_43 {dimension_numbers = #tpu.dot_dimension_numbers<[2], [2], [1], [1], [0, 0, 0, 1, 1, 1], [0], [0]>} : vector<2x8x8xf32>, vector<2x8x8xf32>, vector<2x8x8xf32> -> vector<2x8x8xf32>
    "tpu.trace_stop"() : () -> ()
    %135 = vector.shape_cast %11 : vector<8x8xf32> to vector<1x8x8xf32>
    %136 = vector.broadcast %135 : vector<1x8x8xf32> to vector<2x8x8xf32>
    %137 = arith.addf %134, %136 : vector<2x8x8xf32>
    %cst_44 = arith.constant dense<0xFF800000> : vector<2x8xf32>
    %138 = vector.multi_reduction <maximumf>, %137, %cst_44 [2] : vector<2x8x8xf32> to vector<2x8xf32>
    %139 = vector.shape_cast %138 : vector<2x8xf32> to vector<2x8x1xf32>
    %140 = vector.broadcast %139 : vector<2x8x1xf32> to vector<2x8x8xf32>
    %141 = arith.subf %137, %140 : vector<2x8x8xf32>
    %142 = math.exp %141 : vector<2x8x8xf32>
    %cst_45 = arith.constant dense<0.000000e+00> : vector<2x8xf32>
    %143 = vector.multi_reduction <add>, %142, %cst_45 [2] : vector<2x8x8xf32> to vector<2x8xf32>
    %144 = vector.shape_cast %143 : vector<2x8xf32> to vector<2x8x1xf32>
    %145 = tpu.reciprocal %144 {approx = true} : vector<2x8x1xf32> -> vector<2x8x1xf32>
    %146 = vector.broadcast %145 : vector<2x8x1xf32> to vector<2x8x8xf32>
    %147 = arith.mulf %142, %146 : vector<2x8x8xf32>
    "tpu.trace_start"() <{level = 10 : i32, message = "bqk,bkd->bqd"}> : () -> ()
    %cst_46 = arith.constant dense<0.000000e+00> : vector<2x8x8xf32>
    %148 = tpu.matmul %147, %133, %cst_46 {dimension_numbers = #tpu.dot_dimension_numbers<[2], [1], [1], [2], [0, 0, 0, 1, 1, 2], [0], [0]>} : vector<2x8x8xf32>, vector<2x8x8xf32>, vector<2x8x8xf32> -> vector<2x8x8xf32>
    "tpu.trace_stop"() : () -> ()
    %149 = vector.shape_cast %148 : vector<2x8x8xf32> to vector<16x8xf32>
    %150 = vector.extract_strided_slice %51 {offsets = [24, 0], sizes = [8, 32], strides = [1, 1]} : vector<32x32xf32> to vector<8x32xf32>
    %cst_47 = arith.constant dense<0.000000e+00> : vector<16x32xf32>
    %151 = tpu.matmul %149, %150, %cst_47 {dimension_numbers = #tpu.dot_dimension_numbers<[1], [0], [0], [1], [0, 0, 1, 1], [], []>} : vector<16x8xf32>, vector<8x32xf32>, vector<16x32xf32> -> vector<16x32xf32>
    %152 = arith.addf %127, %151 : vector<16x32xf32>
    %153 = arith.addf %5, %152 : vector<16x32xf32>
    %c0_48 = arith.constant 0 : index
    %c0_49 = arith.constant 0 : index
    %c0_50 = arith.constant 0 : index
    %154 = vector.load %arg8[%c0_48, %c0_49, %c0_50] : memref<2x1x32xf32, #tpu.memory_space<vmem>>, vector<1x1x32xf32>
    %155 = vector.shape_cast %154 : vector<1x1x32xf32> to vector<1x32xf32>
    %156 = vector.broadcast %155 : vector<1x32xf32> to vector<16x32xf32>
    %157 = arith.addf %153, %156 : vector<16x32xf32>
    %c0_51 = arith.constant 0 : index
    %c0_52 = arith.constant 0 : index
    %c0_53 = arith.constant 0 : index
    %158 = vector.load %arg9[%c0_51, %c0_52, %c0_53] : memref<2x1x32xf32, #tpu.memory_space<vmem>>, vector<1x1x32xf32>
    %159 = vector.shape_cast %158 : vector<1x1x32xf32> to vector<1x32xf32>
    %c0_54 = arith.constant 0 : index
    %c0_55 = arith.constant 0 : index
    %c0_56 = arith.constant 0 : index
    %160 = vector.load %arg10[%c0_54, %c0_55, %c0_56] : memref<2x1x32xf32, #tpu.memory_space<vmem>>, vector<1x1x32xf32>
    %161 = vector.shape_cast %160 : vector<1x1x32xf32> to vector<1x32xf32>
    %cst_57 = arith.constant dense<0.000000e+00> : vector<16xf32>
    %162 = vector.multi_reduction <add>, %157, %cst_57 [1] : vector<16x32xf32> to vector<16xf32>
    %163 = vector.shape_cast %162 : vector<16xf32> to vector<16x1xf32>
    %cst_58 = arith.constant 3.200000e+01 : f32
    %164 = vector.broadcast %cst_58 : f32 to vector<16x1xf32>
    %165 = arith.divf %163, %164 : vector<16x1xf32>
    %166 = vector.broadcast %165 : vector<16x1xf32> to vector<16x32xf32>
    %167 = arith.subf %157, %166 : vector<16x32xf32>
    %168 = arith.mulf %167, %167 : vector<16x32xf32>
    %cst_59 = arith.constant dense<0.000000e+00> : vector<16xf32>
    %169 = vector.multi_reduction <add>, %168, %cst_59 [1] : vector<16x32xf32> to vector<16xf32>
    %170 = vector.shape_cast %169 : vector<16xf32> to vector<16x1xf32>
    %cst_60 = arith.constant 3.200000e+01 : f32
    %171 = vector.broadcast %cst_60 : f32 to vector<16x1xf32>
    %172 = arith.divf %170, %171 : vector<16x1xf32>
    %173 = vector.broadcast %165 : vector<16x1xf32> to vector<16x32xf32>
    %174 = arith.subf %157, %173 : vector<16x32xf32>
    %cst_61 = arith.constant 9.99999974E-6 : f32
    %175 = vector.broadcast %cst_61 : f32 to vector<16x1xf32>
    %176 = arith.addf %172, %175 : vector<16x1xf32>
    %177 = math.rsqrt %176 : vector<16x1xf32>
    %178 = vector.broadcast %177 : vector<16x1xf32> to vector<16x32xf32>
    %179 = arith.mulf %174, %178 : vector<16x32xf32>
    %180 = vector.broadcast %159 : vector<1x32xf32> to vector<16x32xf32>
    %181 = arith.mulf %179, %180 : vector<16x32xf32>
    %182 = vector.broadcast %161 : vector<1x32xf32> to vector<16x32xf32>
    %183 = arith.addf %181, %182 : vector<16x32xf32>
    %c0_62 = arith.constant 0 : index
    %c0_63 = arith.constant 0 : index
    %c0_64 = arith.constant 0 : index
    %184 = vector.load %arg11[%c0_62, %c0_63, %c0_64] : memref<2x32x128xf32, #tpu.memory_space<vmem>>, vector<1x32x128xf32>
    %185 = vector.shape_cast %184 : vector<1x32x128xf32> to vector<32x128xf32>
    %cst_65 = arith.constant dense<0.000000e+00> : vector<16x128xf32>
    %186 = tpu.matmul %183, %185, %cst_65 {dimension_numbers = #tpu.dot_dimension_numbers<[1], [0], [0], [1], [0, 0, 1, 1], [], []>} : vector<16x32xf32>, vector<32x128xf32>, vector<16x128xf32> -> vector<16x128xf32>
    %c0_66 = arith.constant 0 : index
    %c0_67 = arith.constant 0 : index
    %c0_68 = arith.constant 0 : index
    %187 = vector.load %arg12[%c0_66, %c0_67, %c0_68] : memref<2x1x128xf32, #tpu.memory_space<vmem>>, vector<1x1x128xf32>
    %188 = vector.shape_cast %187 : vector<1x1x128xf32> to vector<1x128xf32>
    %189 = vector.broadcast %188 : vector<1x128xf32> to vector<16x128xf32>
    %190 = arith.addf %186, %189 : vector<16x128xf32>
    %cst_69 = arith.constant 1.702000e+00 : f32
    %191 = vector.broadcast %cst_69 : f32 to vector<16x128xf32>
    %192 = arith.mulf %191, %190 : vector<16x128xf32>
    %193 = arith.negf %192 : vector<16x128xf32>
    %194 = math.exp %193 : vector<16x128xf32>
    %cst_70 = arith.constant 1.000000e+00 : f32
    %195 = vector.broadcast %cst_70 : f32 to vector<16x128xf32>
    %196 = arith.addf %195, %194 : vector<16x128xf32>
    %197 = arith.divf %195, %196 : vector<16x128xf32>
    %198 = arith.mulf %190, %197 : vector<16x128xf32>
    %c0_71 = arith.constant 0 : index
    %c0_72 = arith.constant 0 : index
    %c0_73 = arith.constant 0 : index
    %199 = vector.load %arg13[%c0_71, %c0_72, %c0_73] : memref<2x128x32xf32, #tpu.memory_space<vmem>>, vector<1x128x32xf32>
    %200 = vector.shape_cast %199 : vector<1x128x32xf32> to vector<128x32xf32>
    %cst_74 = arith.constant dense<0.000000e+00> : vector<16x32xf32>
    %201 = tpu.matmul %198, %200, %cst_74 {dimension_numbers = #tpu.dot_dimension_numbers<[1], [0], [0], [1], [0, 0, 1, 1], [], []>} : vector<16x128xf32>, vector<128x32xf32>, vector<16x32xf32> -> vector<16x32xf32>
    %c0_75 = arith.constant 0 : index
    %c0_76 = arith.constant 0 : index
    %c0_77 = arith.constant 0 : index
    %202 = vector.load %arg14[%c0_75, %c0_76, %c0_77] : memref<2x1x32xf32, #tpu.memory_space<vmem>>, vector<1x1x32xf32>
    %203 = vector.shape_cast %202 : vector<1x1x32xf32> to vector<1x32xf32>
    %204 = vector.broadcast %203 : vector<1x32xf32> to vector<16x32xf32>
    %205 = arith.addf %201, %204 : vector<16x32xf32>
    %206 = arith.addf %157, %205 : vector<16x32xf32>
    %c1 = arith.constant 1 : index
    %c0_78 = arith.constant 0 : index
    %c0_79 = arith.constant 0 : index
    %207 = vector.load %arg3[%c1, %c0_78, %c0_79] : memref<2x1x32xf32, #tpu.memory_space<vmem>>, vector<1x1x32xf32>
    %208 = vector.shape_cast %207 : vector<1x1x32xf32> to vector<1x32xf32>
    %c1_80 = arith.constant 1 : index
    %c0_81 = arith.constant 0 : index
    %c0_82 = arith.constant 0 : index
    %209 = vector.load %arg4[%c1_80, %c0_81, %c0_82] : memref<2x1x32xf32, #tpu.memory_space<vmem>>, vector<1x1x32xf32>
    %210 = vector.shape_cast %209 : vector<1x1x32xf32> to vector<1x32xf32>
    %cst_83 = arith.constant dense<0.000000e+00> : vector<16xf32>
    %211 = vector.multi_reduction <add>, %206, %cst_83 [1] : vector<16x32xf32> to vector<16xf32>
    %212 = vector.shape_cast %211 : vector<16xf32> to vector<16x1xf32>
    %cst_84 = arith.constant 3.200000e+01 : f32
    %213 = vector.broadcast %cst_84 : f32 to vector<16x1xf32>
    %214 = arith.divf %212, %213 : vector<16x1xf32>
    %215 = vector.broadcast %214 : vector<16x1xf32> to vector<16x32xf32>
    %216 = arith.subf %206, %215 : vector<16x32xf32>
    %217 = arith.mulf %216, %216 : vector<16x32xf32>
    %cst_85 = arith.constant dense<0.000000e+00> : vector<16xf32>
    %218 = vector.multi_reduction <add>, %217, %cst_85 [1] : vector<16x32xf32> to vector<16xf32>
    %219 = vector.shape_cast %218 : vector<16xf32> to vector<16x1xf32>
    %cst_86 = arith.constant 3.200000e+01 : f32
    %220 = vector.broadcast %cst_86 : f32 to vector<16x1xf32>
    %221 = arith.divf %219, %220 : vector<16x1xf32>
    %222 = vector.broadcast %214 : vector<16x1xf32> to vector<16x32xf32>
    %223 = arith.subf %206, %222 : vector<16x32xf32>
    %cst_87 = arith.constant 9.99999974E-6 : f32
    %224 = vector.broadcast %cst_87 : f32 to vector<16x1xf32>
    %225 = arith.addf %221, %224 : vector<16x1xf32>
    %226 = math.rsqrt %225 : vector<16x1xf32>
    %227 = vector.broadcast %226 : vector<16x1xf32> to vector<16x32xf32>
    %228 = arith.mulf %223, %227 : vector<16x32xf32>
    %229 = vector.broadcast %208 : vector<1x32xf32> to vector<16x32xf32>
    %230 = arith.mulf %228, %229 : vector<16x32xf32>
    %231 = vector.broadcast %210 : vector<1x32xf32> to vector<16x32xf32>
    %232 = arith.addf %230, %231 : vector<16x32xf32>
    %c1_88 = arith.constant 1 : index
    %c0_89 = arith.constant 0 : index
    %c0_90 = arith.constant 0 : index
    %233 = vector.load %arg5[%c1_88, %c0_89, %c0_90] : memref<2x32x96xf32, #tpu.memory_space<vmem>>, vector<1x32x96xf32>
    %234 = vector.shape_cast %233 : vector<1x32x96xf32> to vector<32x96xf32>
    %cst_91 = arith.constant dense<0.000000e+00> : vector<16x96xf32>
    %235 = tpu.matmul %232, %234, %cst_91 {dimension_numbers = #tpu.dot_dimension_numbers<[1], [0], [0], [1], [0, 0, 1, 1], [], []>} : vector<16x32xf32>, vector<32x96xf32>, vector<16x96xf32> -> vector<16x96xf32>
    %c1_92 = arith.constant 1 : index
    %c0_93 = arith.constant 0 : index
    %c0_94 = arith.constant 0 : index
    %236 = vector.load %arg6[%c1_92, %c0_93, %c0_94] : memref<2x1x96xf32, #tpu.memory_space<vmem>>, vector<1x1x96xf32>
    %237 = vector.shape_cast %236 : vector<1x1x96xf32> to vector<1x96xf32>
    %238 = vector.broadcast %237 : vector<1x96xf32> to vector<16x96xf32>
    %239 = arith.addf %235, %238 : vector<16x96xf32>
    %240 = vector.extract_strided_slice %239 {offsets = [0, 0], sizes = [16, 32], strides = [1, 1]} : vector<16x96xf32> to vector<16x32xf32>
    %cst_95 = arith.constant 0.353553385 : f32
    %241 = vector.broadcast %cst_95 : f32 to vector<16x32xf32>
    %242 = arith.mulf %240, %241 : vector<16x32xf32>
    %243 = vector.extract_strided_slice %239 {offsets = [0, 32], sizes = [16, 32], strides = [1, 1]} : vector<16x96xf32> to vector<16x32xf32>
    %244 = vector.extract_strided_slice %239 {offsets = [0, 64], sizes = [16, 32], strides = [1, 1]} : vector<16x96xf32> to vector<16x32xf32>
    %c1_96 = arith.constant 1 : index
    %c0_97 = arith.constant 0 : index
    %c0_98 = arith.constant 0 : index
    %245 = vector.load %arg7[%c1_96, %c0_97, %c0_98] : memref<2x32x32xf32, #tpu.memory_space<vmem>>, vector<1x32x32xf32>
    %246 = vector.shape_cast %245 : vector<1x32x32xf32> to vector<32x32xf32>
    %cst_99 = arith.constant 0.000000e+00 : f32
    %247 = vector.broadcast %cst_99 : f32 to vector<16x32xf32>
    %248 = vector.extract_strided_slice %242 {offsets = [0, 0], sizes = [16, 8], strides = [1, 1]} : vector<16x32xf32> to vector<16x8xf32>
    %249 = vector.shape_cast %248 : vector<16x8xf32> to vector<2x8x8xf32>
    %250 = vector.extract_strided_slice %243 {offsets = [0, 0], sizes = [16, 8], strides = [1, 1]} : vector<16x32xf32> to vector<16x8xf32>
    %251 = vector.shape_cast %250 : vector<16x8xf32> to vector<2x8x8xf32>
    %252 = vector.extract_strided_slice %244 {offsets = [0, 0], sizes = [16, 8], strides = [1, 1]} : vector<16x32xf32> to vector<16x8xf32>
    %253 = vector.shape_cast %252 : vector<16x8xf32> to vector<2x8x8xf32>
    "tpu.trace_start"() <{level = 10 : i32, message = "bqd,bkd->bqk"}> : () -> ()
    %cst_100 = arith.constant dense<0.000000e+00> : vector<2x8x8xf32>
    %254 = tpu.matmul %249, %251, %cst_100 {dimension_numbers = #tpu.dot_dimension_numbers<[2], [2], [1], [1], [0, 0, 0, 1, 1, 1], [0], [0]>} : vector<2x8x8xf32>, vector<2x8x8xf32>, vector<2x8x8xf32> -> vector<2x8x8xf32>
    "tpu.trace_stop"() : () -> ()
    %255 = vector.shape_cast %11 : vector<8x8xf32> to vector<1x8x8xf32>
    %256 = vector.broadcast %255 : vector<1x8x8xf32> to vector<2x8x8xf32>
    %257 = arith.addf %254, %256 : vector<2x8x8xf32>
    %cst_101 = arith.constant dense<0xFF800000> : vector<2x8xf32>
    %258 = vector.multi_reduction <maximumf>, %257, %cst_101 [2] : vector<2x8x8xf32> to vector<2x8xf32>
    %259 = vector.shape_cast %258 : vector<2x8xf32> to vector<2x8x1xf32>
    %260 = vector.broadcast %259 : vector<2x8x1xf32> to vector<2x8x8xf32>
    %261 = arith.subf %257, %260 : vector<2x8x8xf32>
    %262 = math.exp %261 : vector<2x8x8xf32>
    %cst_102 = arith.constant dense<0.000000e+00> : vector<2x8xf32>
    %263 = vector.multi_reduction <add>, %262, %cst_102 [2] : vector<2x8x8xf32> to vector<2x8xf32>
    %264 = vector.shape_cast %263 : vector<2x8xf32> to vector<2x8x1xf32>
    %265 = tpu.reciprocal %264 {approx = true} : vector<2x8x1xf32> -> vector<2x8x1xf32>
    %266 = vector.broadcast %265 : vector<2x8x1xf32> to vector<2x8x8xf32>
    %267 = arith.mulf %262, %266 : vector<2x8x8xf32>
    "tpu.trace_start"() <{level = 10 : i32, message = "bqk,bkd->bqd"}> : () -> ()
    %cst_103 = arith.constant dense<0.000000e+00> : vector<2x8x8xf32>
    %268 = tpu.matmul %267, %253, %cst_103 {dimension_numbers = #tpu.dot_dimension_numbers<[2], [1], [1], [2], [0, 0, 0, 1, 1, 2], [0], [0]>} : vector<2x8x8xf32>, vector<2x8x8xf32>, vector<2x8x8xf32> -> vector<2x8x8xf32>
    "tpu.trace_stop"() : () -> ()
    %269 = vector.shape_cast %268 : vector<2x8x8xf32> to vector<16x8xf32>
    %270 = vector.extract_strided_slice %246 {offsets = [0, 0], sizes = [8, 32], strides = [1, 1]} : vector<32x32xf32> to vector<8x32xf32>
    %cst_104 = arith.constant dense<0.000000e+00> : vector<16x32xf32>
    %271 = tpu.matmul %269, %270, %cst_104 {dimension_numbers = #tpu.dot_dimension_numbers<[1], [0], [0], [1], [0, 0, 1, 1], [], []>} : vector<16x8xf32>, vector<8x32xf32>, vector<16x32xf32> -> vector<16x32xf32>
    %272 = arith.addf %247, %271 : vector<16x32xf32>
    %273 = vector.extract_strided_slice %242 {offsets = [0, 8], sizes = [16, 8], strides = [1, 1]} : vector<16x32xf32> to vector<16x8xf32>
    %274 = vector.shape_cast %273 : vector<16x8xf32> to vector<2x8x8xf32>
    %275 = vector.extract_strided_slice %243 {offsets = [0, 8], sizes = [16, 8], strides = [1, 1]} : vector<16x32xf32> to vector<16x8xf32>
    %276 = vector.shape_cast %275 : vector<16x8xf32> to vector<2x8x8xf32>
    %277 = vector.extract_strided_slice %244 {offsets = [0, 8], sizes = [16, 8], strides = [1, 1]} : vector<16x32xf32> to vector<16x8xf32>
    %278 = vector.shape_cast %277 : vector<16x8xf32> to vector<2x8x8xf32>
    "tpu.trace_start"() <{level = 10 : i32, message = "bqd,bkd->bqk"}> : () -> ()
    %cst_105 = arith.constant dense<0.000000e+00> : vector<2x8x8xf32>
    %279 = tpu.matmul %274, %276, %cst_105 {dimension_numbers = #tpu.dot_dimension_numbers<[2], [2], [1], [1], [0, 0, 0, 1, 1, 1], [0], [0]>} : vector<2x8x8xf32>, vector<2x8x8xf32>, vector<2x8x8xf32> -> vector<2x8x8xf32>
    "tpu.trace_stop"() : () -> ()
    %280 = vector.shape_cast %11 : vector<8x8xf32> to vector<1x8x8xf32>
    %281 = vector.broadcast %280 : vector<1x8x8xf32> to vector<2x8x8xf32>
    %282 = arith.addf %279, %281 : vector<2x8x8xf32>
    %cst_106 = arith.constant dense<0xFF800000> : vector<2x8xf32>
    %283 = vector.multi_reduction <maximumf>, %282, %cst_106 [2] : vector<2x8x8xf32> to vector<2x8xf32>
    %284 = vector.shape_cast %283 : vector<2x8xf32> to vector<2x8x1xf32>
    %285 = vector.broadcast %284 : vector<2x8x1xf32> to vector<2x8x8xf32>
    %286 = arith.subf %282, %285 : vector<2x8x8xf32>
    %287 = math.exp %286 : vector<2x8x8xf32>
    %cst_107 = arith.constant dense<0.000000e+00> : vector<2x8xf32>
    %288 = vector.multi_reduction <add>, %287, %cst_107 [2] : vector<2x8x8xf32> to vector<2x8xf32>
    %289 = vector.shape_cast %288 : vector<2x8xf32> to vector<2x8x1xf32>
    %290 = tpu.reciprocal %289 {approx = true} : vector<2x8x1xf32> -> vector<2x8x1xf32>
    %291 = vector.broadcast %290 : vector<2x8x1xf32> to vector<2x8x8xf32>
    %292 = arith.mulf %287, %291 : vector<2x8x8xf32>
    "tpu.trace_start"() <{level = 10 : i32, message = "bqk,bkd->bqd"}> : () -> ()
    %cst_108 = arith.constant dense<0.000000e+00> : vector<2x8x8xf32>
    %293 = tpu.matmul %292, %278, %cst_108 {dimension_numbers = #tpu.dot_dimension_numbers<[2], [1], [1], [2], [0, 0, 0, 1, 1, 2], [0], [0]>} : vector<2x8x8xf32>, vector<2x8x8xf32>, vector<2x8x8xf32> -> vector<2x8x8xf32>
    "tpu.trace_stop"() : () -> ()
    %294 = vector.shape_cast %293 : vector<2x8x8xf32> to vector<16x8xf32>
    %295 = vector.extract_strided_slice %246 {offsets = [8, 0], sizes = [8, 32], strides = [1, 1]} : vector<32x32xf32> to vector<8x32xf32>
    %cst_109 = arith.constant dense<0.000000e+00> : vector<16x32xf32>
    %296 = tpu.matmul %294, %295, %cst_109 {dimension_numbers = #tpu.dot_dimension_numbers<[1], [0], [0], [1], [0, 0, 1, 1], [], []>} : vector<16x8xf32>, vector<8x32xf32>, vector<16x32xf32> -> vector<16x32xf32>
    %297 = arith.addf %272, %296 : vector<16x32xf32>
    %298 = vector.extract_strided_slice %242 {offsets = [0, 16], sizes = [16, 8], strides = [1, 1]} : vector<16x32xf32> to vector<16x8xf32>
    %299 = vector.shape_cast %298 : vector<16x8xf32> to vector<2x8x8xf32>
    %300 = vector.extract_strided_slice %243 {offsets = [0, 16], sizes = [16, 8], strides = [1, 1]} : vector<16x32xf32> to vector<16x8xf32>
    %301 = vector.shape_cast %300 : vector<16x8xf32> to vector<2x8x8xf32>
    %302 = vector.extract_strided_slice %244 {offsets = [0, 16], sizes = [16, 8], strides = [1, 1]} : vector<16x32xf32> to vector<16x8xf32>
    %303 = vector.shape_cast %302 : vector<16x8xf32> to vector<2x8x8xf32>
    "tpu.trace_start"() <{level = 10 : i32, message = "bqd,bkd->bqk"}> : () -> ()
    %cst_110 = arith.constant dense<0.000000e+00> : vector<2x8x8xf32>
    %304 = tpu.matmul %299, %301, %cst_110 {dimension_numbers = #tpu.dot_dimension_numbers<[2], [2], [1], [1], [0, 0, 0, 1, 1, 1], [0], [0]>} : vector<2x8x8xf32>, vector<2x8x8xf32>, vector<2x8x8xf32> -> vector<2x8x8xf32>
    "tpu.trace_stop"() : () -> ()
    %305 = vector.shape_cast %11 : vector<8x8xf32> to vector<1x8x8xf32>
    %306 = vector.broadcast %305 : vector<1x8x8xf32> to vector<2x8x8xf32>
    %307 = arith.addf %304, %306 : vector<2x8x8xf32>
    %cst_111 = arith.constant dense<0xFF800000> : vector<2x8xf32>
    %308 = vector.multi_reduction <maximumf>, %307, %cst_111 [2] : vector<2x8x8xf32> to vector<2x8xf32>
    %309 = vector.shape_cast %308 : vector<2x8xf32> to vector<2x8x1xf32>
    %310 = vector.broadcast %309 : vector<2x8x1xf32> to vector<2x8x8xf32>
    %311 = arith.subf %307, %310 : vector<2x8x8xf32>
    %312 = math.exp %311 : vector<2x8x8xf32>
    %cst_112 = arith.constant dense<0.000000e+00> : vector<2x8xf32>
    %313 = vector.multi_reduction <add>, %312, %cst_112 [2] : vector<2x8x8xf32> to vector<2x8xf32>
    %314 = vector.shape_cast %313 : vector<2x8xf32> to vector<2x8x1xf32>
    %315 = tpu.reciprocal %314 {approx = true} : vector<2x8x1xf32> -> vector<2x8x1xf32>
    %316 = vector.broadcast %315 : vector<2x8x1xf32> to vector<2x8x8xf32>
    %317 = arith.mulf %312, %316 : vector<2x8x8xf32>
    "tpu.trace_start"() <{level = 10 : i32, message = "bqk,bkd->bqd"}> : () -> ()
    %cst_113 = arith.constant dense<0.000000e+00> : vector<2x8x8xf32>
    %318 = tpu.matmul %317, %303, %cst_113 {dimension_numbers = #tpu.dot_dimension_numbers<[2], [1], [1], [2], [0, 0, 0, 1, 1, 2], [0], [0]>} : vector<2x8x8xf32>, vector<2x8x8xf32>, vector<2x8x8xf32> -> vector<2x8x8xf32>
    "tpu.trace_stop"() : () -> ()
    %319 = vector.shape_cast %318 : vector<2x8x8xf32> to vector<16x8xf32>
    %320 = vector.extract_strided_slice %246 {offsets = [16, 0], sizes = [8, 32], strides = [1, 1]} : vector<32x32xf32> to vector<8x32xf32>
    %cst_114 = arith.constant dense<0.000000e+00> : vector<16x32xf32>
    %321 = tpu.matmul %319, %320, %cst_114 {dimension_numbers = #tpu.dot_dimension_numbers<[1], [0], [0], [1], [0, 0, 1, 1], [], []>} : vector<16x8xf32>, vector<8x32xf32>, vector<16x32xf32> -> vector<16x32xf32>
    %322 = arith.addf %297, %321 : vector<16x32xf32>
    %323 = vector.extract_strided_slice %242 {offsets = [0, 24], sizes = [16, 8], strides = [1, 1]} : vector<16x32xf32> to vector<16x8xf32>
    %324 = vector.shape_cast %323 : vector<16x8xf32> to vector<2x8x8xf32>
    %325 = vector.extract_strided_slice %243 {offsets = [0, 24], sizes = [16, 8], strides = [1, 1]} : vector<16x32xf32> to vector<16x8xf32>
    %326 = vector.shape_cast %325 : vector<16x8xf32> to vector<2x8x8xf32>
    %327 = vector.extract_strided_slice %244 {offsets = [0, 24], sizes = [16, 8], strides = [1, 1]} : vector<16x32xf32> to vector<16x8xf32>
    %328 = vector.shape_cast %327 : vector<16x8xf32> to vector<2x8x8xf32>
    "tpu.trace_start"() <{level = 10 : i32, message = "bqd,bkd->bqk"}> : () -> ()
    %cst_115 = arith.constant dense<0.000000e+00> : vector<2x8x8xf32>
    %329 = tpu.matmul %324, %326, %cst_115 {dimension_numbers = #tpu.dot_dimension_numbers<[2], [2], [1], [1], [0, 0, 0, 1, 1, 1], [0], [0]>} : vector<2x8x8xf32>, vector<2x8x8xf32>, vector<2x8x8xf32> -> vector<2x8x8xf32>
    "tpu.trace_stop"() : () -> ()
    %330 = vector.shape_cast %11 : vector<8x8xf32> to vector<1x8x8xf32>
    %331 = vector.broadcast %330 : vector<1x8x8xf32> to vector<2x8x8xf32>
    %332 = arith.addf %329, %331 : vector<2x8x8xf32>
    %cst_116 = arith.constant dense<0xFF800000> : vector<2x8xf32>
    %333 = vector.multi_reduction <maximumf>, %332, %cst_116 [2] : vector<2x8x8xf32> to vector<2x8xf32>
    %334 = vector.shape_cast %333 : vector<2x8xf32> to vector<2x8x1xf32>
    %335 = vector.broadcast %334 : vector<2x8x1xf32> to vector<2x8x8xf32>
    %336 = arith.subf %332, %335 : vector<2x8x8xf32>
    %337 = math.exp %336 : vector<2x8x8xf32>
    %cst_117 = arith.constant dense<0.000000e+00> : vector<2x8xf32>
    %338 = vector.multi_reduction <add>, %337, %cst_117 [2] : vector<2x8x8xf32> to vector<2x8xf32>
    %339 = vector.shape_cast %338 : vector<2x8xf32> to vector<2x8x1xf32>
    %340 = tpu.reciprocal %339 {approx = true} : vector<2x8x1xf32> -> vector<2x8x1xf32>
    %341 = vector.broadcast %340 : vector<2x8x1xf32> to vector<2x8x8xf32>
    %342 = arith.mulf %337, %341 : vector<2x8x8xf32>
    "tpu.trace_start"() <{level = 10 : i32, message = "bqk,bkd->bqd"}> : () -> ()
    %cst_118 = arith.constant dense<0.000000e+00> : vector<2x8x8xf32>
    %343 = tpu.matmul %342, %328, %cst_118 {dimension_numbers = #tpu.dot_dimension_numbers<[2], [1], [1], [2], [0, 0, 0, 1, 1, 2], [0], [0]>} : vector<2x8x8xf32>, vector<2x8x8xf32>, vector<2x8x8xf32> -> vector<2x8x8xf32>
    "tpu.trace_stop"() : () -> ()
    %344 = vector.shape_cast %343 : vector<2x8x8xf32> to vector<16x8xf32>
    %345 = vector.extract_strided_slice %246 {offsets = [24, 0], sizes = [8, 32], strides = [1, 1]} : vector<32x32xf32> to vector<8x32xf32>
    %cst_119 = arith.constant dense<0.000000e+00> : vector<16x32xf32>
    %346 = tpu.matmul %344, %345, %cst_119 {dimension_numbers = #tpu.dot_dimension_numbers<[1], [0], [0], [1], [0, 0, 1, 1], [], []>} : vector<16x8xf32>, vector<8x32xf32>, vector<16x32xf32> -> vector<16x32xf32>
    %347 = arith.addf %322, %346 : vector<16x32xf32>
    %348 = arith.addf %206, %347 : vector<16x32xf32>
    %c1_120 = arith.constant 1 : index
    %c0_121 = arith.constant 0 : index
    %c0_122 = arith.constant 0 : index
    %349 = vector.load %arg8[%c1_120, %c0_121, %c0_122] : memref<2x1x32xf32, #tpu.memory_space<vmem>>, vector<1x1x32xf32>
    %350 = vector.shape_cast %349 : vector<1x1x32xf32> to vector<1x32xf32>
    %351 = vector.broadcast %350 : vector<1x32xf32> to vector<16x32xf32>
    %352 = arith.addf %348, %351 : vector<16x32xf32>
    %c1_123 = arith.constant 1 : index
    %c0_124 = arith.constant 0 : index
    %c0_125 = arith.constant 0 : index
    %353 = vector.load %arg9[%c1_123, %c0_124, %c0_125] : memref<2x1x32xf32, #tpu.memory_space<vmem>>, vector<1x1x32xf32>
    %354 = vector.shape_cast %353 : vector<1x1x32xf32> to vector<1x32xf32>
    %c1_126 = arith.constant 1 : index
    %c0_127 = arith.constant 0 : index
    %c0_128 = arith.constant 0 : index
    %355 = vector.load %arg10[%c1_126, %c0_127, %c0_128] : memref<2x1x32xf32, #tpu.memory_space<vmem>>, vector<1x1x32xf32>
    %356 = vector.shape_cast %355 : vector<1x1x32xf32> to vector<1x32xf32>
    %cst_129 = arith.constant dense<0.000000e+00> : vector<16xf32>
    %357 = vector.multi_reduction <add>, %352, %cst_129 [1] : vector<16x32xf32> to vector<16xf32>
    %358 = vector.shape_cast %357 : vector<16xf32> to vector<16x1xf32>
    %cst_130 = arith.constant 3.200000e+01 : f32
    %359 = vector.broadcast %cst_130 : f32 to vector<16x1xf32>
    %360 = arith.divf %358, %359 : vector<16x1xf32>
    %361 = vector.broadcast %360 : vector<16x1xf32> to vector<16x32xf32>
    %362 = arith.subf %352, %361 : vector<16x32xf32>
    %363 = arith.mulf %362, %362 : vector<16x32xf32>
    %cst_131 = arith.constant dense<0.000000e+00> : vector<16xf32>
    %364 = vector.multi_reduction <add>, %363, %cst_131 [1] : vector<16x32xf32> to vector<16xf32>
    %365 = vector.shape_cast %364 : vector<16xf32> to vector<16x1xf32>
    %cst_132 = arith.constant 3.200000e+01 : f32
    %366 = vector.broadcast %cst_132 : f32 to vector<16x1xf32>
    %367 = arith.divf %365, %366 : vector<16x1xf32>
    %368 = vector.broadcast %360 : vector<16x1xf32> to vector<16x32xf32>
    %369 = arith.subf %352, %368 : vector<16x32xf32>
    %cst_133 = arith.constant 9.99999974E-6 : f32
    %370 = vector.broadcast %cst_133 : f32 to vector<16x1xf32>
    %371 = arith.addf %367, %370 : vector<16x1xf32>
    %372 = math.rsqrt %371 : vector<16x1xf32>
    %373 = vector.broadcast %372 : vector<16x1xf32> to vector<16x32xf32>
    %374 = arith.mulf %369, %373 : vector<16x32xf32>
    %375 = vector.broadcast %354 : vector<1x32xf32> to vector<16x32xf32>
    %376 = arith.mulf %374, %375 : vector<16x32xf32>
    %377 = vector.broadcast %356 : vector<1x32xf32> to vector<16x32xf32>
    %378 = arith.addf %376, %377 : vector<16x32xf32>
    %c1_134 = arith.constant 1 : index
    %c0_135 = arith.constant 0 : index
    %c0_136 = arith.constant 0 : index
    %379 = vector.load %arg11[%c1_134, %c0_135, %c0_136] : memref<2x32x128xf32, #tpu.memory_space<vmem>>, vector<1x32x128xf32>
    %380 = vector.shape_cast %379 : vector<1x32x128xf32> to vector<32x128xf32>
    %cst_137 = arith.constant dense<0.000000e+00> : vector<16x128xf32>
    %381 = tpu.matmul %378, %380, %cst_137 {dimension_numbers = #tpu.dot_dimension_numbers<[1], [0], [0], [1], [0, 0, 1, 1], [], []>} : vector<16x32xf32>, vector<32x128xf32>, vector<16x128xf32> -> vector<16x128xf32>
    %c1_138 = arith.constant 1 : index
    %c0_139 = arith.constant 0 : index
    %c0_140 = arith.constant 0 : index
    %382 = vector.load %arg12[%c1_138, %c0_139, %c0_140] : memref<2x1x128xf32, #tpu.memory_space<vmem>>, vector<1x1x128xf32>
    %383 = vector.shape_cast %382 : vector<1x1x128xf32> to vector<1x128xf32>
    %384 = vector.broadcast %383 : vector<1x128xf32> to vector<16x128xf32>
    %385 = arith.addf %381, %384 : vector<16x128xf32>
    %cst_141 = arith.constant 1.702000e+00 : f32
    %386 = vector.broadcast %cst_141 : f32 to vector<16x128xf32>
    %387 = arith.mulf %386, %385 : vector<16x128xf32>
    %388 = arith.negf %387 : vector<16x128xf32>
    %389 = math.exp %388 : vector<16x128xf32>
    %cst_142 = arith.constant 1.000000e+00 : f32
    %390 = vector.broadcast %cst_142 : f32 to vector<16x128xf32>
    %391 = arith.addf %390, %389 : vector<16x128xf32>
    %392 = arith.divf %390, %391 : vector<16x128xf32>
    %393 = arith.mulf %385, %392 : vector<16x128xf32>
    %c1_143 = arith.constant 1 : index
    %c0_144 = arith.constant 0 : index
    %c0_145 = arith.constant 0 : index
    %394 = vector.load %arg13[%c1_143, %c0_144, %c0_145] : memref<2x128x32xf32, #tpu.memory_space<vmem>>, vector<1x128x32xf32>
    %395 = vector.shape_cast %394 : vector<1x128x32xf32> to vector<128x32xf32>
    %cst_146 = arith.constant dense<0.000000e+00> : vector<16x32xf32>
    %396 = tpu.matmul %393, %395, %cst_146 {dimension_numbers = #tpu.dot_dimension_numbers<[1], [0], [0], [1], [0, 0, 1, 1], [], []>} : vector<16x128xf32>, vector<128x32xf32>, vector<16x32xf32> -> vector<16x32xf32>
    %c1_147 = arith.constant 1 : index
    %c0_148 = arith.constant 0 : index
    %c0_149 = arith.constant 0 : index
    %397 = vector.load %arg14[%c1_147, %c0_148, %c0_149] : memref<2x1x32xf32, #tpu.memory_space<vmem>>, vector<1x1x32xf32>
    %398 = vector.shape_cast %397 : vector<1x1x32xf32> to vector<1x32xf32>
    %399 = vector.broadcast %398 : vector<1x32xf32> to vector<16x32xf32>
    %400 = arith.addf %396, %399 : vector<16x32xf32>
    %401 = arith.addf %352, %400 : vector<16x32xf32>
    %402 = tpu.iota {dimensions = array<i32: 0>} : vector<2x16xi32>
    %403 = tpu.iota {dimensions = array<i32: 1>} : vector<2x16xi32>
    %cst_150 = arith.constant 0.000000e+00 : f32
    %404 = vector.broadcast %cst_150 : f32 to vector<2x16xf32>
    %c0_151 = arith.constant 0 : index
    %405 = memref.load %arg2[%c0_151] : memref<2xi32, #tpu.memory_space<smem>>
    %c0_i32 = arith.constant 0 : i32
    %c7_i32 = arith.constant 7 : i32
    %406 = arith.maxsi %c0_i32, %405 : i32
    %407 = arith.minsi %c7_i32, %406 : i32
    %c0_i32_152 = arith.constant 0 : i32
    %408 = arith.addi %407, %c0_i32_152 : i32
    %c0_i32_153 = arith.constant 0 : i32
    %409 = vector.broadcast %c0_i32_153 : i32 to vector<2x16xi32>
    %410 = arith.cmpi eq, %402, %409 : vector<2x16xi32>
    %411 = vector.broadcast %408 : i32 to vector<2x16xi32>
    %412 = arith.cmpi eq, %403, %411 : vector<2x16xi32>
    %413 = arith.andi %410, %412 : vector<2x16xi1>
    %cst_154 = arith.constant 1.000000e+00 : f32
    %cst_155 = arith.constant 0.000000e+00 : f32
    %414 = vector.broadcast %cst_154 : f32 to vector<2x16xf32>
    %415 = vector.broadcast %cst_155 : f32 to vector<2x16xf32>
    %416 = arith.select %413, %414, %415 : vector<2x16xi1>, vector<2x16xf32>
    %417 = arith.addf %404, %416 : vector<2x16xf32>
    %c1_156 = arith.constant 1 : index
    %418 = memref.load %arg2[%c1_156] : memref<2xi32, #tpu.memory_space<smem>>
    %c0_i32_157 = arith.constant 0 : i32
    %c7_i32_158 = arith.constant 7 : i32
    %419 = arith.maxsi %c0_i32_157, %418 : i32
    %420 = arith.minsi %c7_i32_158, %419 : i32
    %c8_i32 = arith.constant 8 : i32
    %421 = arith.addi %420, %c8_i32 : i32
    %c1_i32 = arith.constant 1 : i32
    %422 = vector.broadcast %c1_i32 : i32 to vector<2x16xi32>
    %423 = arith.cmpi eq, %402, %422 : vector<2x16xi32>
    %424 = vector.broadcast %421 : i32 to vector<2x16xi32>
    %425 = arith.cmpi eq, %403, %424 : vector<2x16xi32>
    %426 = arith.andi %423, %425 : vector<2x16xi1>
    %cst_159 = arith.constant 1.000000e+00 : f32
    %cst_160 = arith.constant 0.000000e+00 : f32
    %427 = vector.broadcast %cst_159 : f32 to vector<2x16xf32>
    %428 = vector.broadcast %cst_160 : f32 to vector<2x16xf32>
    %429 = arith.select %426, %427, %428 : vector<2x16xi1>, vector<2x16xf32>
    %430 = arith.addf %417, %429 : vector<2x16xf32>
    %cst_161 = arith.constant dense<0.000000e+00> : vector<2x32xf32>
    %431 = tpu.matmul %430, %401, %cst_161 {dimension_numbers = #tpu.dot_dimension_numbers<[1], [0], [0], [1], [0, 0, 1, 1], [], []>} : vector<2x16xf32>, vector<16x32xf32>, vector<2x32xf32> -> vector<2x32xf32>
    %c0_162 = arith.constant 0 : index
    %c0_163 = arith.constant 0 : index
    %432 = vector.load %arg15[%c0_162, %c0_163] : memref<1x32xf32, #tpu.memory_space<vmem>>, vector<1x32xf32>
    %c0_164 = arith.constant 0 : index
    %c0_165 = arith.constant 0 : index
    %433 = vector.load %arg16[%c0_164, %c0_165] : memref<1x32xf32, #tpu.memory_space<vmem>>, vector<1x32xf32>
    %cst_166 = arith.constant dense<0.000000e+00> : vector<2xf32>
    %434 = vector.multi_reduction <add>, %431, %cst_166 [1] : vector<2x32xf32> to vector<2xf32>
    %435 = vector.shape_cast %434 : vector<2xf32> to vector<2x1xf32>
    %cst_167 = arith.constant 3.200000e+01 : f32
    %436 = vector.broadcast %cst_167 : f32 to vector<2x1xf32>
    %437 = arith.divf %435, %436 : vector<2x1xf32>
    %438 = vector.broadcast %437 : vector<2x1xf32> to vector<2x32xf32>
    %439 = arith.subf %431, %438 : vector<2x32xf32>
    %440 = arith.mulf %439, %439 : vector<2x32xf32>
    %cst_168 = arith.constant dense<0.000000e+00> : vector<2xf32>
    %441 = vector.multi_reduction <add>, %440, %cst_168 [1] : vector<2x32xf32> to vector<2xf32>
    %442 = vector.shape_cast %441 : vector<2xf32> to vector<2x1xf32>
    %cst_169 = arith.constant 3.200000e+01 : f32
    %443 = vector.broadcast %cst_169 : f32 to vector<2x1xf32>
    %444 = arith.divf %442, %443 : vector<2x1xf32>
    %445 = vector.broadcast %437 : vector<2x1xf32> to vector<2x32xf32>
    %446 = arith.subf %431, %445 : vector<2x32xf32>
    %cst_170 = arith.constant 9.99999974E-6 : f32
    %447 = vector.broadcast %cst_170 : f32 to vector<2x1xf32>
    %448 = arith.addf %444, %447 : vector<2x1xf32>
    %449 = math.rsqrt %448 : vector<2x1xf32>
    %450 = vector.broadcast %449 : vector<2x1xf32> to vector<2x32xf32>
    %451 = arith.mulf %446, %450 : vector<2x32xf32>
    %452 = vector.broadcast %432 : vector<1x32xf32> to vector<2x32xf32>
    %453 = arith.mulf %451, %452 : vector<2x32xf32>
    %454 = vector.broadcast %433 : vector<1x32xf32> to vector<2x32xf32>
    %455 = arith.addf %453, %454 : vector<2x32xf32>
    %c0_171 = arith.constant 0 : index
    %c0_172 = arith.constant 0 : index
    %456 = vector.load %arg17[%c0_171, %c0_172] : memref<32x16xf32, #tpu.memory_space<vmem>>, vector<32x16xf32>
    %cst_173 = arith.constant dense<0.000000e+00> : vector<2x16xf32>
    %457 = tpu.matmul %455, %456, %cst_173 {dimension_numbers = #tpu.dot_dimension_numbers<[1], [0], [0], [1], [0, 0, 1, 1], [], []>} : vector<2x32xf32>, vector<32x16xf32>, vector<2x16xf32> -> vector<2x16xf32>
    %c0_174 = arith.constant 0 : index
    %c0_175 = arith.constant 0 : index
    %458 = vector.load %arg18[%c0_174, %c0_175] : memref<2x16xf32, #tpu.memory_space<vmem>>, vector<2x16xf32>
    tpu.vector_store %arg18[%c0_174, %c0_175], %457 {strides = array<i32>} : memref<2x16xf32, #tpu.memory_space<vmem>>, vector<2x16xf32>,
    return
  }
}

</mosaic_0001>

<llo_original>
// kernel: tpu_custom_call.1
$region0: #{tpu_custom_call.1}
  #allocation0 [shape = 'u32[]', space=smem, size = 0x4, offset = 0x4, fixed_abs, tag = 'smem constant byte address 0x4 - core index']
  #allocation1 [shape = 'u32[144,128]{1,0:T(1,128)}', space=vmem, size = 0x12000, scoped, tag = 'internal scratch']
  %s0 = inlined_call_operand.vmem [shape: f32[2,8,32], index: 0, kind: input, shape index: {}]
  %s1 = inlined_call_operand.vmem [shape: f32[8,32], index: 1, kind: input, shape index: {}]
  %s2 = inlined_call_operand.vmem [shape: s32[2], index: 2, kind: input, shape index: {}]
  %s3 = inlined_call_operand.vmem [shape: f32[2,1,32], index: 3, kind: input, shape index: {}]
  %s4 = inlined_call_operand.vmem [shape: f32[2,1,32], index: 4, kind: input, shape index: {}]
  %s5 = inlined_call_operand.vmem [shape: f32[2,32,96], index: 5, kind: input, shape index: {}]
  %s6 = inlined_call_operand.vmem [shape: f32[2,1,96], index: 6, kind: input, shape index: {}]
  %s7 = inlined_call_operand.vmem [shape: f32[2,32,32], index: 7, kind: input, shape index: {}]
  %s8 = inlined_call_operand.vmem [shape: f32[2,1,32], index: 8, kind: input, shape index: {}]
  %s9 = inlined_call_operand.vmem [shape: f32[2,1,32], index: 9, kind: input, shape index: {}]
  %s10 = inlined_call_operand.vmem [shape: f32[2,1,32], index: 10, kind: input, shape index: {}]
  %s11 = inlined_call_operand.vmem [shape: f32[2,32,128], index: 11, kind: input, shape index: {}]
  %s12 = inlined_call_operand.vmem [shape: f32[2,1,128], index: 12, kind: input, shape index: {}]
  %s13 = inlined_call_operand.vmem [shape: f32[2,128,32], index: 13, kind: input, shape index: {}]
  %s14 = inlined_call_operand.vmem [shape: f32[2,1,32], index: 14, kind: input, shape index: {}]
  %s15 = inlined_call_operand.vmem [shape: f32[1,32], index: 15, kind: input, shape index: {}]
  %s16 = inlined_call_operand.vmem [shape: f32[1,32], index: 16, kind: input, shape index: {}]
  %s17 = inlined_call_operand.vmem [shape: f32[32,16], index: 17, kind: input, shape index: {}]
  %s18 = inlined_call_operand.hbm [shape: f32[2,16], index: 18, kind: output, shape index: {}]
  %s19 = sld [smem:[#allocation0]]
  $region86: #{tpu_custom_call.1} parent=0
    _
  %s21 = ssub.s32 1, %s19
  %s22 = scalar_select 0, %s21, %s19
  $region1: #{tpu_custom_call.1} parent=0
    #allocation2 [shape = 'u8[512]{0}', space=smem, size = 0x200, scoped, tag = 'input window, operand 2, single buffered']
    #allocation3 [shape = 's32[1]{0}', space=sflag, size = 0x4, scoped, tag = 'scoped memory for tpu_custom_call.1']
    #allocation4 [shape = 's32[1]{0}', space=sflag, size = 0x4, scoped, tag = 'scoped memory for tpu_custom_call.1']
    #allocation5 [shape = 'u8[1024]{0}', space=vmem, size = 0x400, scoped, tag = 'output window, operand 0, single buffered']
    %23 = vsyncpa [#allocation4], 0
    %24 = vsyncpa [#allocation3], 0
    // Predicated region
    $region2: #{tpu_custom_call.1} parent=1 // pred_check
      _
    $region3: #{tpu_custom_call.1} parent=1 // pred_check_branch
      %26 = sbr.rel (0) target = $region5
    $region4: #{tpu_custom_call.1} parent=1 // pred_region
      _
    $region5: #{tpu_custom_call.1} parent=1 // pred_fallthru
      _
    // Predicated region
    $region6: #{tpu_custom_call.1} parent=1 // pred_check
      _
    $region7: #{tpu_custom_call.1} parent=1 // pred_check_branch
      %28 = sbr.rel (0) target = $region9
    $region8: #{tpu_custom_call.1} parent=1 // pred_region
      _
    $region9: #{tpu_custom_call.1} parent=1 // pred_fallthru
      _
    // Predicated region
    $region10: #{tpu_custom_call.1} parent=1 // pred_check
      _
    $region11: #{tpu_custom_call.1} parent=1 // pred_check_branch
      %30 = sbr.rel (0) target = $region13
    $region12: #{tpu_custom_call.1} parent=1 // pred_region
      %s32 = ssub.s32 16, 16
      %33 = vsyncadd [#allocation4], %s32
      %s35 = sshll.u32 %s2, 4
      %s36 = int_to_ptr.vmem [resolvable:$true] %s35
      %38 = dma.vmem_to_smem %s36, 16, [#allocation2], [#allocation4]
    $region13: #{tpu_custom_call.1} parent=1 // pred_fallthru
      _
    // Predicated region
    $region14: #{tpu_custom_call.1} parent=1 // pred_check
      _
    $region15: #{tpu_custom_call.1} parent=1 // pred_check_branch
      %40 = sbr.rel (0) target = $region17
    $region16: #{tpu_custom_call.1} parent=1 // pred_region
      _
    $region17: #{tpu_custom_call.1} parent=1 // pred_fallthru
      _
    // Predicated region
    $region18: #{tpu_custom_call.1} parent=1 // pred_check
      _
    $region19: #{tpu_custom_call.1} parent=1 // pred_check_branch
      %42 = sbr.rel (0) target = $region21
    $region20: #{tpu_custom_call.1} parent=1 // pred_region
      _
    $region21: #{tpu_custom_call.1} parent=1 // pred_fallthru
      _
    // Predicated region
    $region22: #{tpu_custom_call.1} parent=1 // pred_check
      _
    $region23: #{tpu_custom_call.1} parent=1 // pred_check_branch
      %44 = sbr.rel (0) target = $region25
    $region24: #{tpu_custom_call.1} parent=1 // pred_region
      _
    $region25: #{tpu_custom_call.1} parent=1 // pred_fallthru
      _
    // Predicated region
    $region26: #{tpu_custom_call.1} parent=1 // pred_check
      _
    $region27: #{tpu_custom_call.1} parent=1 // pred_check_branch
      %46 = sbr.rel (0) target = $region29
    $region28: #{tpu_custom_call.1} parent=1 // pred_region
      _
    $region29: #{tpu_custom_call.1} parent=1 // pred_fallthru
      _
    // Predicated region
    $region30: #{tpu_custom_call.1} parent=1 // pred_check
      _
    $region31: #{tpu_custom_call.1} parent=1 // pred_check_branch
      %48 = sbr.rel (0) target = $region33
    $region32: #{tpu_custom_call.1} parent=1 // pred_region
      _
    $region33: #{tpu_custom_call.1} parent=1 // pred_fallthru
      _
    // Predicated region
    $region34: #{tpu_custom_call.1} parent=1 // pred_check
      _
    $region35: #{tpu_custom_call.1} parent=1 // pred_check_branch
      %50 = sbr.rel (0) target = $region37
    $region36: #{tpu_custom_call.1} parent=1 // pred_region
      _
    $region37: #{tpu_custom_call.1} parent=1 // pred_fallthru
      _
    // Predicated region
    $region38: #{tpu_custom_call.1} parent=1 // pred_check
      _
    $region39: #{tpu_custom_call.1} parent=1 // pred_check_branch
      %52 = sbr.rel (0) target = $region41
    $region40: #{tpu_custom_call.1} parent=1 // pred_region
      _
    $region41: #{tpu_custom_call.1} parent=1 // pred_fallthru
      _
    // Predicated region
    $region42: #{tpu_custom_call.1} parent=1 // pred_check
      _
    $region43: #{tpu_custom_call.1} parent=1 // pred_check_branch
      %54 = sbr.rel (0) target = $region45
    $region44: #{tpu_custom_call.1} parent=1 // pred_region
      _
    $region45: #{tpu_custom_call.1} parent=1 // pred_fallthru
      _
    // Predicated region
    $region46: #{tpu_custom_call.1} parent=1 // pred_check
      _
    $region47: #{tpu_custom_call.1} parent=1 // pred_check_branch
      %56 = sbr.rel (0) target = $region49
    $region48: #{tpu_custom_call.1} parent=1 // pred_region
      _
    $region49: #{tpu_custom_call.1} parent=1 // pred_fallthru
      _
    // Predicated region
    $region50: #{tpu_custom_call.1} parent=1 // pred_check
      _
    $region51: #{tpu_custom_call.1} parent=1 // pred_check_branch
      %58 = sbr.rel (0) target = $region53
    $region52: #{tpu_custom_call.1} parent=1 // pred_region
      _
    $region53: #{tpu_custom_call.1} parent=1 // pred_fallthru
      _
    // Predicated region
    $region54: #{tpu_custom_call.1} parent=1 // pred_check
      _
    $region55: #{tpu_custom_call.1} parent=1 // pred_check_branch
      %60 = sbr.rel (0) target = $region57
    $region56: #{tpu_custom_call.1} parent=1 // pred_region
      _
    $region57: #{tpu_custom_call.1} parent=1 // pred_fallthru
      _
    // Predicated region
    $region58: #{tpu_custom_call.1} parent=1 // pred_check
      _
    $region59: #{tpu_custom_call.1} parent=1 // pred_check_branch
      %62 = sbr.rel (0) target = $region61
    $region60: #{tpu_custom_call.1} parent=1 // pred_region
      _
    $region61: #{tpu_custom_call.1} parent=1 // pred_fallthru
      _
    // Predicated region
    $region62: #{tpu_custom_call.1} parent=1 // pred_check
      _
    $region63: #{tpu_custom_call.1} parent=1 // pred_check_branch
      %64 = sbr.rel (0) target = $region65
    $region64: #{tpu_custom_call.1} parent=1 // pred_region
      _
    $region65: #{tpu_custom_call.1} parent=1 // pred_fallthru
      _
    // Predicated region
    $region66: #{tpu_custom_call.1} parent=1 // pred_check
      _
    $region67: #{tpu_custom_call.1} parent=1 // pred_check_branch
      %66 = sbr.rel (0) target = $region69
    $region68: #{tpu_custom_call.1} parent=1 // pred_region
      _
    $region69: #{tpu_custom_call.1} parent=1 // pred_fallthru
      _
    // Predicated region
    $region70: #{tpu_custom_call.1} parent=1 // pred_check
      _
    $region71: #{tpu_custom_call.1} parent=1 // pred_check_branch
      %68 = sbr.rel (0) target = $region73
    $region72: #{tpu_custom_call.1} parent=1 // pred_region
      _
    $region73: #{tpu_custom_call.1} parent=1 // pred_fallthru
      _
    // Predicated region
    $region74: #{tpu_custom_call.1} parent=1 // pred_check
      _
    $region75: #{tpu_custom_call.1} parent=1 // pred_check_branch
      %70 = sbr.rel (0) target = $region77
    $region76: #{tpu_custom_call.1} parent=1 // pred_region
      %71 = dma.done [#allocation4], 16
    $region77: #{tpu_custom_call.1} parent=1 // pred_fallthru
      _
    %72 = sfence
    %v73 = vld [vmem:[%s0] sm:$0xff]
    %v74 = vld [vmem:[%s0 + $0x8] sm:$0xff]
    %v75 = vld [vmem:[%s1] sm:$0xff]
    %v76 = vadd.f32 %v73, %v75
    %v77 = vadd.f32 %v74, %v75
    %v78 = vlaneseq
    %v79 = vshrl.u32 %v78, 7
    %v80 = vlaneseq
    %v81 = vand.u32 %v80, 127
    %vm82 = vcmp.le.s32.totalorder %v81, %v79
    %v83 = vsel %vm82, 0.0, -1e+09
    %v84 = vld [vmem:[%s3] sm:$0x1]
    %v85 = vld [vmem:[%s4] sm:$0x1]
    %vm86 = vcmask 261120
    %v87 = vsel %vm86, %v76, 0.0
    %88 = vadd.xlane.f32.xlu0 %v87
    %v89 = vpop.xlane.xlu0 %88
    %v90 = vsel %vm86, %v77, 0.0
    %91 = vadd.xlane.f32.xlu0 %v90
    %v92 = vpop.xlane.xlu0 %91
    %v93 = vrcp.pop 32.0
    %v94 = vmul.f32 %v89, %v93
    %v95 = vmul.f32 %v92, %v93
    %v96 = vsub.f32 %v76, %v94
    %v97 = vsub.f32 %v77, %v95
    %v98 = vmul.f32 %v96, %v96
    %v99 = vmul.f32 %v97, %v97
    %v100 = vsel %vm86, %v98, 0.0
    %101 = vadd.xlane.f32.xlu0 %v100
    %v102 = vpop.xlane.xlu0 %101
    %v103 = vsel %vm86, %v99, 0.0
    %104 = vadd.xlane.f32.xlu0 %v103
    %v105 = vpop.xlane.xlu0 %104
    %v106 = vmul.f32 %v102, %v93
    %v107 = vmul.f32 %v105, %v93
    %v108 = vadd.f32 %v106, 1e-05
    %v109 = vadd.f32 %v107, 1e-05
    %v110 = vrsqrt.pop %v108
    %v111 = vrsqrt.pop %v109
    %v112 = vmul.f32 %v96, %v110
    %v113 = vmul.f32 %v97, %v111
    %v115 = vlaneseq
    %v116 = vshrl.u32 %v115, 7
    %v117 = vsub.s32 0, %v116
    %v118 = vrot.slane %v84, %v117
    %v120 = vmul.f32 %v112, %v118
    %v121 = vmul.f32 %v113, %v118
    %v123 = vlaneseq
    %v124 = vshrl.u32 %v123, 7
    %v125 = vsub.s32 0, %v124
    %v126 = vrot.slane %v85, %v125
    %v128 = vadd.f32 %v120, %v126
    %v129 = vadd.f32 %v121, %v126
    %v130 = vld [vmem:[%s5] sm:$0xff]
    %v131 = vld [vmem:[%s5 + $0x8] sm:$0xff]
    %v132 = vld [vmem:[%s5 + $0x10] sm:$0xff]
    %v133 = vld [vmem:[%s5 + $0x18] sm:$0xff]
    %v134 = vld [vmem:[%s6] sm:$0x1]
    %v136 = vlaneseq
    %v137 = vshrl.u32 %v136, 7
    %v138 = vsub.s32 0, %v137
    %v139 = vrot.slane %v134, %v138
    %v142 = vsel %vm86, %v128, 0
    %v145 = vsel %vm86, %v129, 0
    %147 = vmatprep.subr.mxu0 0.0
    %148 = vmatpush1.msra.mxu0 %v130
    %149 = vmatprep.subr.mxu0 0.0
    %150 = vmatpush1.msra.mxu0 %v131
    %151 = vmatprep.subr.mxu0 0.0
    %152 = vmatpush1.msra.mxu0 %v132
    %153 = vmatprep.subr.mxu0 0.0
    %154 = vmatpush1.msra.mxu0 %v133
    %155 = vmatprep.subr.mxu0 0.0
    %156 = vmatpush1.msra.mxu0 0.0
    %157 = vmatprep.subr.mxu0 0.0
    %158 = vmatpush1.msra.mxu0 0.0
    %159 = vmatprep.subr.mxu0 0.0
    %160 = vmatpush1.msra.mxu0 0.0
    %161 = vmatprep.subr.mxu0 0.0
    %162 = vmatpush1.msra.mxu0 0.0
    %163 = vmatprep.subr.mxu0 0.0
    %164 = vmatpush1.msra.mxu0 0.0
    %165 = vmatprep.subr.mxu0 0.0
    %166 = vmatpush1.msra.mxu0 0.0
    %167 = vmatprep.subr.mxu0 0.0
    %168 = vmatpush1.msra.mxu0 0.0
    %169 = vmatprep.subr.mxu0 0.0
    %170 = vmatpush1.msra.mxu0 0.0
    %171 = vmatprep.subr.mxu0 0.0
    %172 = vmatpush1.msra.mxu0 0.0
    %173 = vmatprep.subr.mxu0 0.0
    %174 = vmatpush1.msra.mxu0 0.0
    %175 = vmatprep.subr.mxu0 0.0
    %176 = vmatpush1.msra.mxu0 0.0
    %177 = vmatprep.subr.mxu0 0.0
    %178 = vmatpush1.msra.mxu0 0.0
    %179 = vmatprep.subr.mxu0 0.0
    %180 = vmatpush1.msra.mxu0 0.0
    %181 = vmatprep.subr.mxu0 0.0
    %182 = vmatpush1.msra.mxu0 0.0
    %183 = vmatprep.subr.mxu0 0.0
    %184 = vmatpush1.msra.mxu0 0.0
    %185 = vmatprep.subr.mxu0 0.0
    %186 = vmatpush1.msra.mxu0 0.0
    %187 = vmatprep.subr.mxu0 0.0
    %188 = vmatpush1.msra.mxu0 0.0
    %189 = vmatprep.subr.mxu0 0.0
    %190 = vmatpush1.msra.mxu0 0.0
    %191 = vmatprep.subr.mxu0 0.0
    %192 = vmatpush1.msra.mxu0 0.0
    %193 = vmatprep.subr.mxu0 0.0
    %194 = vmatpush1.msra.mxu0 0.0
    %195 = vmatprep.subr.mxu0 0.0
    %196 = vmatpush1.msra.mxu0 0.0
    %197 = vmatprep.subr.mxu0 0.0
    %198 = vmatpush1.msra.mxu0 0.0
    %199 = vmatprep.subr.mxu0 0.0
    %200 = vmatpush1.msra.mxu0 0.0
    %201 = vmatprep.subr.mxu0 0.0
    %202 = vmatpush1.msra.mxu0 0.0
    %203 = vmatprep.subr.mxu0 0.0
    %204 = vmatpush1.msra.mxu0 0.0
    %205 = vmatprep.subr.mxu0 0.0
    %206 = vmatpush1.msra.mxu0 0.0
    %207 = vmatprep.subr.mxu0 0.0
    %208 = vmatpush1.msra.mxu0 0.0
    %209 = vmatprep.subr.mxu0 0.0
    %210 = vmatpush1.msra.mxu0 0.0
    %211 = vmatprep.mubr.f32.mxu0 0.0
    %212 = vmatmul.mubr.f32.gmra.mrb[0].mxu0 %v142
    %v213 = vpop.f32.mrb[0].mxu0
    %v214 = vadd.f32 %v139, %v213
    %v215 = vpop.f32.mrb[0].mxu0
    %216 = vmatprep.mubr.f32.mxu0 0.0
    %217 = vmatmul.mubr.f32.gmra.mrb[0].mxu0 %v145
    %v218 = vpop.f32.mrb[0].mxu0
    %v219 = vadd.f32 %v139, %v218
    %v220 = vpop.f32.mrb[0].mxu0
    %221 = vdwg.mxu0
    %v222 = vmul.f32 %v214, 0.35355338
    %v223 = vmul.f32 %v219, 0.35355338
    %v224 = vld [vmem:[%s7] sm:$0xff]
    %v225 = vld [vmem:[%s7 + $0x8] sm:$0xff]
    %v226 = vld [vmem:[%s7 + $0x10] sm:$0xff]
    %v227 = vld [vmem:[%s7 + $0x18] sm:$0xff]
    %229 = vrot.lane.b32.xlu0 %v214, 96
    %v230 = vpop.permute.xlu0 %229
    %vm231 = vcmask 64512
    %v233 = vsel %vm231, %v222, 0
    %v235 = vsel %vm231, %v230, 0
    %237 = vmatprep.subr.mxu0 0.0
    %238 = vmatpush1.xpose.msra.mxu0 %v235
    %239 = vmatprep.subr.mxu0 0.0
    %240 = vmatpush1.xpose.msra.mxu0 0.0
    %241 = vmatprep.subr.mxu0 0.0
    %242 = vmatpush1.xpose.msra.mxu0 0.0
    %243 = vmatprep.subr.mxu0 0.0
    %244 = vmatpush1.xpose.msra.mxu0 0.0
    %245 = vmatprep.subr.mxu0 0.0
    %246 = vmatpush1.xpose.msra.mxu0 0.0
    %247 = vmatprep.subr.mxu0 0.0
    %248 = vmatpush1.xpose.msra.mxu0 0.0
    %249 = vmatprep.subr.mxu0 0.0
    %250 = vmatpush1.xpose.msra.mxu0 0.0
    %251 = vmatprep.subr.mxu0 0.0
    %252 = vmatpush1.xpose.msra.mxu0 0.0
    %253 = vmatprep.subr.mxu0 0.0
    %254 = vmatpush1.xpose.msra.mxu0 0.0
    %255 = vmatprep.subr.mxu0 0.0
    %256 = vmatpush1.xpose.msra.mxu0 0.0
    %257 = vmatprep.subr.mxu0 0.0
    %258 = vmatpush1.xpose.msra.mxu0 0.0
    %259 = vmatprep.subr.mxu0 0.0
    %260 = vmatpush1.xpose.msra.mxu0 0.0
    %261 = vmatprep.subr.mxu0 0.0
    %262 = vmatpush1.xpose.msra.mxu0 0.0
    %263 = vmatprep.subr.mxu0 0.0
    %264 = vmatpush1.xpose.msra.mxu0 0.0
    %265 = vmatprep.subr.mxu0 0.0
    %266 = vmatpush1.xpose.msra.mxu0 0.0
    %267 = vmatprep.subr.mxu0 0.0
    %268 = vmatpush1.xpose.msra.mxu0 0.0
    %269 = vmatprep.subr.mxu0 0.0
    %270 = vmatpush1.xpose.msra.mxu0 0.0
    %271 = vmatprep.subr.mxu0 0.0
    %272 = vmatpush1.xpose.msra.mxu0 0.0
    %273 = vmatprep.subr.mxu0 0.0
    %274 = vmatpush1.xpose.msra.mxu0 0.0
    %275 = vmatprep.subr.mxu0 0.0
    %276 = vmatpush1.xpose.msra.mxu0 0.0
    %277 = vmatprep.subr.mxu0 0.0
    %278 = vmatpush1.xpose.msra.mxu0 0.0
    %279 = vmatprep.subr.mxu0 0.0
    %280 = vmatpush1.xpose.msra.mxu0 0.0
    %281 = vmatprep.subr.mxu0 0.0
    %282 = vmatpush1.xpose.msra.mxu0 0.0
    %283 = vmatprep.subr.mxu0 0.0
    %284 = vmatpush1.xpose.msra.mxu0 0.0
    %285 = vmatprep.subr.mxu0 0.0
    %286 = vmatpush1.xpose.msra.mxu0 0.0
    %287 = vmatprep.subr.mxu0 0.0
    %288 = vmatpush1.xpose.msra.mxu0 0.0
    %289 = vmatprep.subr.mxu0 0.0
    %290 = vmatpush1.xpose.msra.mxu0 0.0
    %291 = vmatprep.subr.mxu0 0.0
    %292 = vmatpush1.xpose.msra.mxu0 0.0
    %293 = vmatprep.subr.mxu0 0.0
    %294 = vmatpush1.xpose.msra.mxu0 0.0
    %295 = vmatprep.subr.mxu0 0.0
    %296 = vmatpush1.xpose.msra.mxu0 0.0
    %297 = vmatprep.subr.mxu0 0.0
    %298 = vmatpush1.xpose.msra.mxu0 0.0
    %299 = vmatprep.subr.mxu0 0.0
    %300 = vmatpush1.xpose.msra.mxu0 0.0
    %301 = vmatprep.mubr.f32.mxu0 0.0
    %302 = vmatmul.mubr.f32.gmra.mrb[0].mxu0 %v233
    %v303 = vpop.f32.mrb[0].mxu0
    %v304 = vadd.f32 %v83, %v303
    %v305 = vpop.f32.mrb[0].mxu0
    %306 = vdwg.mxu0
    %308 = vrot.lane.b32.xlu0 %v219, 96
    %v309 = vpop.permute.xlu0 %308
    %v311 = vsel %vm231, %v223, 0
    %v313 = vsel %vm231, %v309, 0
    %315 = vmatprep.subr.mxu0 0.0
    %316 = vmatpush1.xpose.msra.mxu0 %v313
    %317 = vmatprep.subr.mxu0 0.0
    %318 = vmatpush1.xpose.msra.mxu0 0.0
    %319 = vmatprep.subr.mxu0 0.0
    %320 = vmatpush1.xpose.msra.mxu0 0.0
    %321 = vmatprep.subr.mxu0 0.0
    %322 = vmatpush1.xpose.msra.mxu0 0.0
    %323 = vmatprep.subr.mxu0 0.0
    %324 = vmatpush1.xpose.msra.mxu0 0.0
    %325 = vmatprep.subr.mxu0 0.0
    %326 = vmatpush1.xpose.msra.mxu0 0.0
    %327 = vmatprep.subr.mxu0 0.0
    %328 = vmatpush1.xpose.msra.mxu0 0.0
    %329 = vmatprep.subr.mxu0 0.0
    %330 = vmatpush1.xpose.msra.mxu0 0.0
    %331 = vmatprep.subr.mxu0 0.0
    %332 = vmatpush1.xpose.msra.mxu0 0.0
    %333 = vmatprep.subr.mxu0 0.0
    %334 = vmatpush1.xpose.msra.mxu0 0.0
    %335 = vmatprep.subr.mxu0 0.0
    %336 = vmatpush1.xpose.msra.mxu0 0.0
    %337 = vmatprep.subr.mxu0 0.0
    %338 = vmatpush1.xpose.msra.mxu0 0.0
    %339 = vmatprep.subr.mxu0 0.0
    %340 = vmatpush1.xpose.msra.mxu0 0.0
    %341 = vmatprep.subr.mxu0 0.0
    %342 = vmatpush1.xpose.msra.mxu0 0.0
    %343 = vmatprep.subr.mxu0 0.0
    %344 = vmatpush1.xpose.msra.mxu0 0.0
    %345 = vmatprep.subr.mxu0 0.0
    %346 = vmatpush1.xpose.msra.mxu0 0.0
    %347 = vmatprep.subr.mxu0 0.0
    %348 = vmatpush1.xpose.msra.mxu0 0.0
    %349 = vmatprep.subr.mxu0 0.0
    %350 = vmatpush1.xpose.msra.mxu0 0.0
    %351 = vmatprep.subr.mxu0 0.0
    %352 = vmatpush1.xpose.msra.mxu0 0.0
    %353 = vmatprep.subr.mxu0 0.0
    %354 = vmatpush1.xpose.msra.mxu0 0.0
    %355 = vmatprep.subr.mxu0 0.0
    %356 = vmatpush1.xpose.msra.mxu0 0.0
    %357 = vmatprep.subr.mxu0 0.0
    %358 = vmatpush1.xpose.msra.mxu0 0.0
    %359 = vmatprep.subr.mxu0 0.0
    %360 = vmatpush1.xpose.msra.mxu0 0.0
    %361 = vmatprep.subr.mxu0 0.0
    %362 = vmatpush1.xpose.msra.mxu0 0.0
    %363 = vmatprep.subr.mxu0 0.0
    %364 = vmatpush1.xpose.msra.mxu0 0.0
    %365 = vmatprep.subr.mxu0 0.0
    %366 = vmatpush1.xpose.msra.mxu0 0.0
    %367 = vmatprep.subr.mxu0 0.0
    %368 = vmatpush1.xpose.msra.mxu0 0.0
    %369 = vmatprep.subr.mxu0 0.0
    %370 = vmatpush1.xpose.msra.mxu0 0.0
    %371 = vmatprep.subr.mxu0 0.0
    %372 = vmatpush1.xpose.msra.mxu0 0.0
    %373 = vmatprep.subr.mxu0 0.0
    %374 = vmatpush1.xpose.msra.mxu0 0.0
    %375 = vmatprep.subr.mxu0 0.0
    %376 = vmatpush1.xpose.msra.mxu0 0.0
    %377 = vmatprep.subr.mxu0 0.0
    %378 = vmatpush1.xpose.msra.mxu0 0.0
    %379 = vmatprep.mubr.f32.mxu0 0.0
    %380 = vmatmul.mubr.f32.gmra.mrb[0].mxu0 %v311
    %v381 = vpop.f32.mrb[0].mxu0
    %v382 = vadd.f32 %v83, %v381
    %v383 = vpop.f32.mrb[0].mxu0
    %384 = vdwg.mxu0
    %v385 = vsel %vm231, %v304, -inf
    %386 = vmax.xlane.f32.xlu0 %v385
    %v387 = vpop.xlane.xlu0 %386
    %v388 = vsel %vm231, %v382, -inf
    %389 = vmax.xlane.f32.xlu0 %v388
    %v390 = vpop.xlane.xlu0 %389
    %v391 = vsub.f32 %v304, %v387
    %v392 = vsub.f32 %v382, %v390
    %v393 = vmul.f32 %v391, 1.442695
    %v394 = vpow.pop %v393
    %v395 = vmul.f32 %v392, 1.442695
    %v396 = vpow.pop %v395
    %v397 = vsel %vm231, %v394, 0.0
    %398 = vadd.xlane.f32.xlu0 %v397
    %v399 = vpop.xlane.xlu0 %398
    %v400 = vsel %vm231, %v396, 0.0
    %401 = vadd.xlane.f32.xlu0 %v400
    %v402 = vpop.xlane.xlu0 %401
    %v403 = vrcp.pop %v399
    %v404 = vrcp.pop %v402
    %v405 = vmul.f32 %v394, %v403
    %v406 = vmul.f32 %v396, %v404
    %407 = vrot.lane.b32.xlu0 %v214, 64
    %v408 = vpop.permute.xlu0 %407
    %v411 = vsel %vm231, %v405, 0
    %413 = vmatprep.subr.mxu0 0.0
    %414 = vmatpush1.msra.mxu0 %v408
    %415 = vmatprep.subr.mxu0 0.0
    %416 = vmatpush1.msra.mxu0 0.0
    %417 = vmatprep.subr.mxu0 0.0
    %418 = vmatpush1.msra.mxu0 0.0
    %419 = vmatprep.subr.mxu0 0.0
    %420 = vmatpush1.msra.mxu0 0.0
    %421 = vmatprep.subr.mxu0 0.0
    %422 = vmatpush1.msra.mxu0 0.0
    %423 = vmatprep.subr.mxu0 0.0
    %424 = vmatpush1.msra.mxu0 0.0
    %425 = vmatprep.subr.mxu0 0.0
    %426 = vmatpush1.msra.mxu0 0.0
    %427 = vmatprep.subr.mxu0 0.0
    %428 = vmatpush1.msra.mxu0 0.0
    %429 = vmatprep.subr.mxu0 0.0
    %430 = vmatpush1.msra.mxu0 0.0
    %431 = vmatprep.subr.mxu0 0.0
    %432 = vmatpush1.msra.mxu0 0.0
    %433 = vmatprep.subr.mxu0 0.0
    %434 = vmatpush1.msra.mxu0 0.0
    %435 = vmatprep.subr.mxu0 0.0
    %436 = vmatpush1.msra.mxu0 0.0
    %437 = vmatprep.subr.mxu0 0.0
    %438 = vmatpush1.msra.mxu0 0.0
    %439 = vmatprep.subr.mxu0 0.0
    %440 = vmatpush1.msra.mxu0 0.0
    %441 = vmatprep.subr.mxu0 0.0
    %442 = vmatpush1.msra.mxu0 0.0
    %443 = vmatprep.subr.mxu0 0.0
    %444 = vmatpush1.msra.mxu0 0.0
    %445 = vmatprep.subr.mxu0 0.0
    %446 = vmatpush1.msra.mxu0 0.0
    %447 = vmatprep.subr.mxu0 0.0
    %448 = vmatpush1.msra.mxu0 0.0
    %449 = vmatprep.subr.mxu0 0.0
    %450 = vmatpush1.msra.mxu0 0.0
    %451 = vmatprep.subr.mxu0 0.0
    %452 = vmatpush1.msra.mxu0 0.0
    %453 = vmatprep.subr.mxu0 0.0
    %454 = vmatpush1.msra.mxu0 0.0
    %455 = vmatprep.subr.mxu0 0.0
    %456 = vmatpush1.msra.mxu0 0.0
    %457 = vmatprep.subr.mxu0 0.0
    %458 = vmatpush1.msra.mxu0 0.0
    %459 = vmatprep.subr.mxu0 0.0
    %460 = vmatpush1.msra.mxu0 0.0
    %461 = vmatprep.subr.mxu0 0.0
    %462 = vmatpush1.msra.mxu0 0.0
    %463 = vmatprep.subr.mxu0 0.0
    %464 = vmatpush1.msra.mxu0 0.0
    %465 = vmatprep.subr.mxu0 0.0
    %466 = vmatpush1.msra.mxu0 0.0
    %467 = vmatprep.subr.mxu0 0.0
    %468 = vmatpush1.msra.mxu0 0.0
    %469 = vmatprep.subr.mxu0 0.0
    %470 = vmatpush1.msra.mxu0 0.0
    %471 = vmatprep.subr.mxu0 0.0
    %472 = vmatpush1.msra.mxu0 0.0
    %473 = vmatprep.subr.mxu0 0.0
    %474 = vmatpush1.msra.mxu0 0.0
    %475 = vmatprep.subr.mxu0 0.0
    %476 = vmatpush1.msra.mxu0 0.0
    %477 = vmatprep.mubr.f32.mxu0 0.0
    %478 = vmatmul.mubr.f32.gmra.mrb[0].mxu0 %v411
    %v479 = vpop.f32.mrb[0].mxu0
    %v480 = vadd.f32 0.0, %v479
    %v481 = vpop.f32.mrb[0].mxu0
    %482 = vdwg.mxu0
    %483 = vrot.lane.b32.xlu0 %v219, 64
    %v484 = vpop.permute.xlu0 %483
    %v487 = vsel %vm231, %v406, 0
    %489 = vmatprep.subr.mxu0 0.0
    %490 = vmatpush1.msra.mxu0 %v484
    %491 = vmatprep.subr.mxu0 0.0
    %492 = vmatpush1.msra.mxu0 0.0
    %493 = vmatprep.subr.mxu0 0.0
    %494 = vmatpush1.msra.mxu0 0.0
    %495 = vmatprep.subr.mxu0 0.0
    %496 = vmatpush1.msra.mxu0 0.0
    %497 = vmatprep.subr.mxu0 0.0
    %498 = vmatpush1.msra.mxu0 0.0
    %499 = vmatprep.subr.mxu0 0.0
    %500 = vmatpush1.msra.mxu0 0.0
    %501 = vmatprep.subr.mxu0 0.0
    %502 = vmatpush1.msra.mxu0 0.0
    %503 = vmatprep.subr.mxu0 0.0
    %504 = vmatpush1.msra.mxu0 0.0
    %505 = vmatprep.subr.mxu0 0.0
    %506 = vmatpush1.msra.mxu0 0.0
    %507 = vmatprep.subr.mxu0 0.0
    %508 = vmatpush1.msra.mxu0 0.0
    %509 = vmatprep.subr.mxu0 0.0
    %510 = vmatpush1.msra.mxu0 0.0
    %511 = vmatprep.subr.mxu0 0.0
    %512 = vmatpush1.msra.mxu0 0.0
    %513 = vmatprep.subr.mxu0 0.0
    %514 = vmatpush1.msra.mxu0 0.0
    %515 = vmatprep.subr.mxu0 0.0
    %516 = vmatpush1.msra.mxu0 0.0
    %517 = vmatprep.subr.mxu0 0.0
    %518 = vmatpush1.msra.mxu0 0.0
    %519 = vmatprep.subr.mxu0 0.0
    %520 = vmatpush1.msra.mxu0 0.0
    %521 = vmatprep.subr.mxu0 0.0
    %522 = vmatpush1.msra.mxu0 0.0
    %523 = vmatprep.subr.mxu0 0.0
    %524 = vmatpush1.msra.mxu0 0.0
    %525 = vmatprep.subr.mxu0 0.0
    %526 = vmatpush1.msra.mxu0 0.0
    %527 = vmatprep.subr.mxu0 0.0
    %528 = vmatpush1.msra.mxu0 0.0
    %529 = vmatprep.subr.mxu0 0.0
    %530 = vmatpush1.msra.mxu0 0.0
    %531 = vmatprep.subr.mxu0 0.0
    %532 = vmatpush1.msra.mxu0 0.0
    %533 = vmatprep.subr.mxu0 0.0
    %534 = vmatpush1.msra.mxu0 0.0
    %535 = vmatprep.subr.mxu0 0.0
    %536 = vmatpush1.msra.mxu0 0.0
    %537 = vmatprep.subr.mxu0 0.0
    %538 = vmatpush1.msra.mxu0 0.0
    %539 = vmatprep.subr.mxu0 0.0
    %540 = vmatpush1.msra.mxu0 0.0
    %541 = vmatprep.subr.mxu0 0.0
    %542 = vmatpush1.msra.mxu0 0.0
    %543 = vmatprep.subr.mxu0 0.0
    %544 = vmatpush1.msra.mxu0 0.0
    %545 = vmatprep.subr.mxu0 0.0
    %546 = vmatpush1.msra.mxu0 0.0
    %547 = vmatprep.subr.mxu0 0.0
    %548 = vmatpush1.msra.mxu0 0.0
    %549 = vmatprep.subr.mxu0 0.0
    %550 = vmatpush1.msra.mxu0 0.0
    %551 = vmatprep.subr.mxu0 0.0
    %552 = vmatpush1.msra.mxu0 0.0
    %553 = vmatprep.mubr.f32.mxu0 0.0
    %554 = vmatmul.mubr.f32.gmra.mrb[0].mxu0 %v487
    %v555 = vpop.f32.mrb[0].mxu0
    %v556 = vadd.f32 0.0, %v555
    %v557 = vpop.f32.mrb[0].mxu0
    %558 = vdwg.mxu0
    %559 = vrot.lane.b32.xlu0 %v222, 120
    %v560 = vpop.permute.xlu0 %559
    %561 = vrot.lane.b32.xlu0 %v214, 88
    %v562 = vpop.permute.xlu0 %561
    %v563 = vsel %vm231, %v560, 0
    %v565 = vsel %vm231, %v562, 0
    %567 = vmatprep.subr.mxu0 0.0
    %568 = vmatpush1.xpose.msra.mxu0 %v565
    %569 = vmatprep.subr.mxu0 0.0
    %570 = vmatpush1.xpose.msra.mxu0 0.0
    %571 = vmatprep.subr.mxu0 0.0
    %572 = vmatpush1.xpose.msra.mxu0 0.0
    %573 = vmatprep.subr.mxu0 0.0
    %574 = vmatpush1.xpose.msra.mxu0 0.0
    %575 = vmatprep.subr.mxu0 0.0
    %576 = vmatpush1.xpose.msra.mxu0 0.0
    %577 = vmatprep.subr.mxu0 0.0
    %578 = vmatpush1.xpose.msra.mxu0 0.0
    %579 = vmatprep.subr.mxu0 0.0
    %580 = vmatpush1.xpose.msra.mxu0 0.0
    %581 = vmatprep.subr.mxu0 0.0
    %582 = vmatpush1.xpose.msra.mxu0 0.0
    %583 = vmatprep.subr.mxu0 0.0
    %584 = vmatpush1.xpose.msra.mxu0 0.0
    %585 = vmatprep.subr.mxu0 0.0
    %586 = vmatpush1.xpose.msra.mxu0 0.0
    %587 = vmatprep.subr.mxu0 0.0
    %588 = vmatpush1.xpose.msra.mxu0 0.0
    %589 = vmatprep.subr.mxu0 0.0
    %590 = vmatpush1.xpose.msra.mxu0 0.0
    %591 = vmatprep.subr.mxu0 0.0
    %592 = vmatpush1.xpose.msra.mxu0 0.0
    %593 = vmatprep.subr.mxu0 0.0
    %594 = vmatpush1.xpose.msra.mxu0 0.0
    %595 = vmatprep.subr.mxu0 0.0
    %596 = vmatpush1.xpose.msra.mxu0 0.0
    %597 = vmatprep.subr.mxu0 0.0
    %598 = vmatpush1.xpose.msra.mxu0 0.0
    %599 = vmatprep.subr.mxu0 0.0
    %600 = vmatpush1.xpose.msra.mxu0 0.0
    %601 = vmatprep.subr.mxu0 0.0
    %602 = vmatpush1.xpose.msra.mxu0 0.0
    %603 = vmatprep.subr.mxu0 0.0
    %604 = vmatpush1.xpose.msra.mxu0 0.0
    %605 = vmatprep.subr.mxu0 0.0
    %606 = vmatpush1.xpose.msra.mxu0 0.0
    %607 = vmatprep.subr.mxu0 0.0
    %608 = vmatpush1.xpose.msra.mxu0 0.0
    %609 = vmatprep.subr.mxu0 0.0
    %610 = vmatpush1.xpose.msra.mxu0 0.0
    %611 = vmatprep.subr.mxu0 0.0
    %612 = vmatpush1.xpose.msra.mxu0 0.0
    %613 = vmatprep.subr.mxu0 0.0
    %614 = vmatpush1.xpose.msra.mxu0 0.0
    %615 = vmatprep.subr.mxu0 0.0
    %616 = vmatpush1.xpose.msra.mxu0 0.0
    %617 = vmatprep.subr.mxu0 0.0
    %618 = vmatpush1.xpose.msra.mxu0 0.0
    %619 = vmatprep.subr.mxu0 0.0
    %620 = vmatpush1.xpose.msra.mxu0 0.0
    %621 = vmatprep.subr.mxu0 0.0
    %622 = vmatpush1.xpose.msra.mxu0 0.0
    %623 = vmatprep.subr.mxu0 0.0
    %624 = vmatpush1.xpose.msra.mxu0 0.0
    %625 = vmatprep.subr.mxu0 0.0
    %626 = vmatpush1.xpose.msra.mxu0 0.0
    %627 = vmatprep.subr.mxu0 0.0
    %628 = vmatpush1.xpose.msra.mxu0 0.0
    %629 = vmatprep.subr.mxu0 0.0
    %630 = vmatpush1.xpose.msra.mxu0 0.0
    %631 = vmatprep.mubr.f32.mxu0 0.0
    %632 = vmatmul.mubr.f32.gmra.mrb[0].mxu0 %v563
    %v633 = vpop.f32.mrb[0].mxu0
    %v634 = vadd.f32 %v83, %v633
    %v635 = vpop.f32.mrb[0].mxu0
    %636 = vdwg.mxu0
    %637 = vrot.lane.b32.xlu0 %v223, 120
    %v638 = vpop.permute.xlu0 %637
    %639 = vrot.lane.b32.xlu0 %v219, 88
    %v640 = vpop.permute.xlu0 %639
    %v641 = vsel %vm231, %v638, 0
    %v643 = vsel %vm231, %v640, 0
    %645 = vmatprep.subr.mxu0 0.0
    %646 = vmatpush1.xpose.msra.mxu0 %v643
    %647 = vmatprep.subr.mxu0 0.0
    %648 = vmatpush1.xpose.msra.mxu0 0.0
    %649 = vmatprep.subr.mxu0 0.0
    %650 = vmatpush1.xpose.msra.mxu0 0.0
    %651 = vmatprep.subr.mxu0 0.0
    %652 = vmatpush1.xpose.msra.mxu0 0.0
    %653 = vmatprep.subr.mxu0 0.0
    %654 = vmatpush1.xpose.msra.mxu0 0.0
    %655 = vmatprep.subr.mxu0 0.0
    %656 = vmatpush1.xpose.msra.mxu0 0.0
    %657 = vmatprep.subr.mxu0 0.0
    %658 = vmatpush1.xpose.msra.mxu0 0.0
    %659 = vmatprep.subr.mxu0 0.0
    %660 = vmatpush1.xpose.msra.mxu0 0.0
    %661 = vmatprep.subr.mxu0 0.0
    %662 = vmatpush1.xpose.msra.mxu0 0.0
    %663 = vmatprep.subr.mxu0 0.0
    %664 = vmatpush1.xpose.msra.mxu0 0.0
    %665 = vmatprep.subr.mxu0 0.0
    %666 = vmatpush1.xpose.msra.mxu0 0.0
    %667 = vmatprep.subr.mxu0 0.0
    %668 = vmatpush1.xpose.msra.mxu0 0.0
    %669 = vmatprep.subr.mxu0 0.0
    %670 = vmatpush1.xpose.msra.mxu0 0.0
    %671 = vmatprep.subr.mxu0 0.0
    %672 = vmatpush1.xpose.msra.mxu0 0.0
    %673 = vmatprep.subr.mxu0 0.0
    %674 = vmatpush1.xpose.msra.mxu0 0.0
    %675 = vmatprep.subr.mxu0 0.0
    %676 = vmatpush1.xpose.msra.mxu0 0.0
    %677 = vmatprep.subr.mxu0 0.0
    %678 = vmatpush1.xpose.msra.mxu0 0.0
    %679 = vmatprep.subr.mxu0 0.0
    %680 = vmatpush1.xpose.msra.mxu0 0.0
    %681 = vmatprep.subr.mxu0 0.0
    %682 = vmatpush1.xpose.msra.mxu0 0.0
    %683 = vmatprep.subr.mxu0 0.0
    %684 = vmatpush1.xpose.msra.mxu0 0.0
    %685 = vmatprep.subr.mxu0 0.0
    %686 = vmatpush1.xpose.msra.mxu0 0.0
    %687 = vmatprep.subr.mxu0 0.0
    %688 = vmatpush1.xpose.msra.mxu0 0.0
    %689 = vmatprep.subr.mxu0 0.0
    %690 = vmatpush1.xpose.msra.mxu0 0.0
    %691 = vmatprep.subr.mxu0 0.0
    %692 = vmatpush1.xpose.msra.mxu0 0.0
    %693 = vmatprep.subr.mxu0 0.0
    %694 = vmatpush1.xpose.msra.mxu0 0.0
    %695 = vmatprep.subr.mxu0 0.0
    %696 = vmatpush1.xpose.msra.mxu0 0.0
    %697 = vmatprep.subr.mxu0 0.0
    %698 = vmatpush1.xpose.msra.mxu0 0.0
    %699 = vmatprep.subr.mxu0 0.0
    %700 = vmatpush1.xpose.msra.mxu0 0.0
    %701 = vmatprep.subr.mxu0 0.0
    %702 = vmatpush1.xpose.msra.mxu0 0.0
    %703 = vmatprep.subr.mxu0 0.0
    %704 = vmatpush1.xpose.msra.mxu0 0.0
    %705 = vmatprep.subr.mxu0 0.0
    %706 = vmatpush1.xpose.msra.mxu0 0.0
    %707 = vmatprep.subr.mxu0 0.0
    %708 = vmatpush1.xpose.msra.mxu0 0.0
    %709 = vmatprep.mubr.f32.mxu0 0.0
    %710 = vmatmul.mubr.f32.gmra.mrb[0].mxu0 %v641
    %v711 = vpop.f32.mrb[0].mxu0
    %v712 = vadd.f32 %v83, %v711
    %v713 = vpop.f32.mrb[0].mxu0
    %714 = vdwg.mxu0
    %v715 = vsel %vm231, %v634, -inf
    %716 = vmax.xlane.f32.xlu0 %v715
    %v717 = vpop.xlane.xlu0 %716
    %v718 = vsel %vm231, %v712, -inf
    %719 = vmax.xlane.f32.xlu0 %v718
    %v720 = vpop.xlane.xlu0 %719
    %v721 = vsub.f32 %v634, %v717
    %v722 = vsub.f32 %v712, %v720
    %v723 = vmul.f32 %v721, 1.442695
    %v724 = vpow.pop %v723
    %v725 = vmul.f32 %v722, 1.442695
    %v726 = vpow.pop %v725
    %v727 = vsel %vm231, %v724, 0.0
    %728 = vadd.xlane.f32.xlu0 %v727
    %v729 = vpop.xlane.xlu0 %728
    %v730 = vsel %vm231, %v726, 0.0
    %731 = vadd.xlane.f32.xlu0 %v730
    %v732 = vpop.xlane.xlu0 %731
    %v733 = vrcp.pop %v729
    %v734 = vrcp.pop %v732
    %v735 = vmul.f32 %v724, %v733
    %v736 = vmul.f32 %v726, %v734
    %737 = vrot.lane.b32.xlu0 %v214, 56
    %v738 = vpop.permute.xlu0 %737
    %v741 = vsel %vm231, %v735, 0
    %743 = vmatprep.subr.mxu0 0.0
    %744 = vmatpush1.msra.mxu0 %v738
    %745 = vmatprep.subr.mxu0 0.0
    %746 = vmatpush1.msra.mxu0 0.0
    %747 = vmatprep.subr.mxu0 0.0
    %748 = vmatpush1.msra.mxu0 0.0
    %749 = vmatprep.subr.mxu0 0.0
    %750 = vmatpush1.msra.mxu0 0.0
    %751 = vmatprep.subr.mxu0 0.0
    %752 = vmatpush1.msra.mxu0 0.0
    %753 = vmatprep.subr.mxu0 0.0
    %754 = vmatpush1.msra.mxu0 0.0
    %755 = vmatprep.subr.mxu0 0.0
    %756 = vmatpush1.msra.mxu0 0.0
    %757 = vmatprep.subr.mxu0 0.0
    %758 = vmatpush1.msra.mxu0 0.0
    %759 = vmatprep.subr.mxu0 0.0
    %760 = vmatpush1.msra.mxu0 0.0
    %761 = vmatprep.subr.mxu0 0.0
    %762 = vmatpush1.msra.mxu0 0.0
    %763 = vmatprep.subr.mxu0 0.0
    %764 = vmatpush1.msra.mxu0 0.0
    %765 = vmatprep.subr.mxu0 0.0
    %766 = vmatpush1.msra.mxu0 0.0
    %767 = vmatprep.subr.mxu0 0.0
    %768 = vmatpush1.msra.mxu0 0.0
    %769 = vmatprep.subr.mxu0 0.0
    %770 = vmatpush1.msra.mxu0 0.0
    %771 = vmatprep.subr.mxu0 0.0
    %772 = vmatpush1.msra.mxu0 0.0
    %773 = vmatprep.subr.mxu0 0.0
    %774 = vmatpush1.msra.mxu0 0.0
    %775 = vmatprep.subr.mxu0 0.0
    %776 = vmatpush1.msra.mxu0 0.0
    %777 = vmatprep.subr.mxu0 0.0
    %778 = vmatpush1.msra.mxu0 0.0
    %779 = vmatprep.subr.mxu0 0.0
    %780 = vmatpush1.msra.mxu0 0.0
    %781 = vmatprep.subr.mxu0 0.0
    %782 = vmatpush1.msra.mxu0 0.0
    %783 = vmatprep.subr.mxu0 0.0
    %784 = vmatpush1.msra.mxu0 0.0
    %785 = vmatprep.subr.mxu0 0.0
    %786 = vmatpush1.msra.mxu0 0.0
    %787 = vmatprep.subr.mxu0 0.0
    %788 = vmatpush1.msra.mxu0 0.0
    %789 = vmatprep.subr.mxu0 0.0
    %790 = vmatpush1.msra.mxu0 0.0
    %791 = vmatprep.subr.mxu0 0.0
    %792 = vmatpush1.msra.mxu0 0.0
    %793 = vmatprep.subr.mxu0 0.0
    %794 = vmatpush1.msra.mxu0 0.0
    %795 = vmatprep.subr.mxu0 0.0
    %796 = vmatpush1.msra.mxu0 0.0
    %797 = vmatprep.subr.mxu0 0.0
    %798 = vmatpush1.msra.mxu0 0.0
    %799 = vmatprep.subr.mxu0 0.0
    %800 = vmatpush1.msra.mxu0 0.0
    %801 = vmatprep.subr.mxu0 0.0
    %802 = vmatpush1.msra.mxu0 0.0
    %803 = vmatprep.subr.mxu0 0.0
    %804 = vmatpush1.msra.mxu0 0.0
    %805 = vmatprep.subr.mxu0 0.0
    %806 = vmatpush1.msra.mxu0 0.0
    %807 = vmatprep.mubr.f32.mxu0 0.0
    %808 = vmatmul.mubr.f32.gmra.mrb[0].mxu0 %v741
    %v809 = vpop.f32.mrb[0].mxu0
    %v810 = vadd.f32 0.0, %v809
    %v811 = vpop.f32.mrb[0].mxu0
    %812 = vdwg.mxu0
    %813 = vrot.lane.b32.xlu0 %v219, 56
    %v814 = vpop.permute.xlu0 %813
    %v817 = vsel %vm231, %v736, 0
    %819 = vmatprep.subr.mxu0 0.0
    %820 = vmatpush1.msra.mxu0 %v814
    %821 = vmatprep.subr.mxu0 0.0
    %822 = vmatpush1.msra.mxu0 0.0
    %823 = vmatprep.subr.mxu0 0.0
    %824 = vmatpush1.msra.mxu0 0.0
    %825 = vmatprep.subr.mxu0 0.0
    %826 = vmatpush1.msra.mxu0 0.0
    %827 = vmatprep.subr.mxu0 0.0
    %828 = vmatpush1.msra.mxu0 0.0
    %829 = vmatprep.subr.mxu0 0.0
    %830 = vmatpush1.msra.mxu0 0.0
    %831 = vmatprep.subr.mxu0 0.0
    %832 = vmatpush1.msra.mxu0 0.0
    %833 = vmatprep.subr.mxu0 0.0
    %834 = vmatpush1.msra.mxu0 0.0
    %835 = vmatprep.subr.mxu0 0.0
    %836 = vmatpush1.msra.mxu0 0.0
    %837 = vmatprep.subr.mxu0 0.0
    %838 = vmatpush1.msra.mxu0 0.0
    %839 = vmatprep.subr.mxu0 0.0
    %840 = vmatpush1.msra.mxu0 0.0
    %841 = vmatprep.subr.mxu0 0.0
    %842 = vmatpush1.msra.mxu0 0.0
    %843 = vmatprep.subr.mxu0 0.0
    %844 = vmatpush1.msra.mxu0 0.0
    %845 = vmatprep.subr.mxu0 0.0
    %846 = vmatpush1.msra.mxu0 0.0
    %847 = vmatprep.subr.mxu0 0.0
    %848 = vmatpush1.msra.mxu0 0.0
    %849 = vmatprep.subr.mxu0 0.0
    %850 = vmatpush1.msra.mxu0 0.0
    %851 = vmatprep.subr.mxu0 0.0
    %852 = vmatpush1.msra.mxu0 0.0
    %853 = vmatprep.subr.mxu0 0.0
    %854 = vmatpush1.msra.mxu0 0.0
    %855 = vmatprep.subr.mxu0 0.0
    %856 = vmatpush1.msra.mxu0 0.0
    %857 = vmatprep.subr.mxu0 0.0
    %858 = vmatpush1.msra.mxu0 0.0
    %859 = vmatprep.subr.mxu0 0.0
    %860 = vmatpush1.msra.mxu0 0.0
    %861 = vmatprep.subr.mxu0 0.0
    %862 = vmatpush1.msra.mxu0 0.0
    %863 = vmatprep.subr.mxu0 0.0
    %864 = vmatpush1.msra.mxu0 0.0
    %865 = vmatprep.subr.mxu0 0.0
    %866 = vmatpush1.msra.mxu0 0.0
    %867 = vmatprep.subr.mxu0 0.0
    %868 = vmatpush1.msra.mxu0 0.0
    %869 = vmatprep.subr.mxu0 0.0
    %870 = vmatpush1.msra.mxu0 0.0
    %871 = vmatprep.subr.mxu0 0.0
    %872 = vmatpush1.msra.mxu0 0.0
    %873 = vmatprep.subr.mxu0 0.0
    %874 = vmatpush1.msra.mxu0 0.0
    %875 = vmatprep.subr.mxu0 0.0
    %876 = vmatpush1.msra.mxu0 0.0
    %877 = vmatprep.subr.mxu0 0.0
    %878 = vmatpush1.msra.mxu0 0.0
    %879 = vmatprep.subr.mxu0 0.0
    %880 = vmatpush1.msra.mxu0 0.0
    %881 = vmatprep.subr.mxu0 0.0
    %882 = vmatpush1.msra.mxu0 0.0
    %883 = vmatprep.mubr.f32.mxu0 0.0
    %884 = vmatmul.mubr.f32.gmra.mrb[0].mxu0 %v817
    %v885 = vpop.f32.mrb[0].mxu0
    %v886 = vadd.f32 0.0, %v885
    %v887 = vpop.f32.mrb[0].mxu0
    %888 = vdwg.mxu0
    %v890 = vsel %vm231, %v810, 0
    %v893 = vsel %vm231, %v886, 0
    %895 = vmatprep.subr.mxu0 0.0
    %896 = vmatpush1.msra.mxu0 %v225
    %897 = vmatprep.subr.mxu0 0.0
    %898 = vmatpush1.msra.mxu0 0.0
    %899 = vmatprep.subr.mxu0 0.0
    %900 = vmatpush1.msra.mxu0 0.0
    %901 = vmatprep.subr.mxu0 0.0
    %902 = vmatpush1.msra.mxu0 0.0
    %903 = vmatprep.subr.mxu0 0.0
    %904 = vmatpush1.msra.mxu0 0.0
    %905 = vmatprep.subr.mxu0 0.0
    %906 = vmatpush1.msra.mxu0 0.0
    %907 = vmatprep.subr.mxu0 0.0
    %908 = vmatpush1.msra.mxu0 0.0
    %909 = vmatprep.subr.mxu0 0.0
    %910 = vmatpush1.msra.mxu0 0.0
    %911 = vmatprep.subr.mxu0 0.0
    %912 = vmatpush1.msra.mxu0 0.0
    %913 = vmatprep.subr.mxu0 0.0
    %914 = vmatpush1.msra.mxu0 0.0
    %915 = vmatprep.subr.mxu0 0.0
    %916 = vmatpush1.msra.mxu0 0.0
    %917 = vmatprep.subr.mxu0 0.0
    %918 = vmatpush1.msra.mxu0 0.0
    %919 = vmatprep.subr.mxu0 0.0
    %920 = vmatpush1.msra.mxu0 0.0
    %921 = vmatprep.subr.mxu0 0.0
    %922 = vmatpush1.msra.mxu0 0.0
    %923 = vmatprep.subr.mxu0 0.0
    %924 = vmatpush1.msra.mxu0 0.0
    %925 = vmatprep.subr.mxu0 0.0
    %926 = vmatpush1.msra.mxu0 0.0
    %927 = vmatprep.subr.mxu0 0.0
    %928 = vmatpush1.msra.mxu0 0.0
    %929 = vmatprep.subr.mxu0 0.0
    %930 = vmatpush1.msra.mxu0 0.0
    %931 = vmatprep.subr.mxu0 0.0
    %932 = vmatpush1.msra.mxu0 0.0
    %933 = vmatprep.subr.mxu0 0.0
    %934 = vmatpush1.msra.mxu0 0.0
    %935 = vmatprep.subr.mxu0 0.0
    %936 = vmatpush1.msra.mxu0 0.0
    %937 = vmatprep.subr.mxu0 0.0
    %938 = vmatpush1.msra.mxu0 0.0
    %939 = vmatprep.subr.mxu0 0.0
    %940 = vmatpush1.msra.mxu0 0.0
    %941 = vmatprep.subr.mxu0 0.0
    %942 = vmatpush1.msra.mxu0 0.0
    %943 = vmatprep.subr.mxu0 0.0
    %944 = vmatpush1.msra.mxu0 0.0
    %945 = vmatprep.subr.mxu0 0.0
    %946 = vmatpush1.msra.mxu0 0.0
    %947 = vmatprep.subr.mxu0 0.0
    %948 = vmatpush1.msra.mxu0 0.0
    %949 = vmatprep.subr.mxu0 0.0
    %950 = vmatpush1.msra.mxu0 0.0
    %951 = vmatprep.subr.mxu0 0.0
    %952 = vmatpush1.msra.mxu0 0.0
    %953 = vmatprep.subr.mxu0 0.0
    %954 = vmatpush1.msra.mxu0 0.0
    %955 = vmatprep.subr.mxu0 0.0
    %956 = vmatpush1.msra.mxu0 0.0
    %957 = vmatprep.subr.mxu0 0.0
    %958 = vmatpush1.msra.mxu0 0.0
    %959 = vmatprep.mubr.f32.mxu0 0.0
    %960 = vmatmul.mubr.f32.gmra.mrb[0].mxu0 %v890
    %v961 = vpop.f32.mrb[0].mxu0
    %v962 = vadd.f32 0.0, %v961
    %v963 = vpop.f32.mrb[0].mxu0
    %964 = vmatprep.mubr.f32.mxu0 0.0
    %965 = vmatmul.mubr.f32.gmra.mrb[0].mxu0 %v893
    %v966 = vpop.f32.mrb[0].mxu0
    %v967 = vadd.f32 0.0, %v966
    %v968 = vpop.f32.mrb[0].mxu0
    %969 = vdwg.mxu0
    %v971 = vsel %vm231, %v480, 0
    %v974 = vsel %vm231, %v556, 0
    %976 = vmatprep.subr.mxu0 0.0
    %977 = vmatpush1.msra.mxu0 %v224
    %978 = vmatprep.subr.mxu0 0.0
    %979 = vmatpush1.msra.mxu0 0.0
    %980 = vmatprep.subr.mxu0 0.0
    %981 = vmatpush1.msra.mxu0 0.0
    %982 = vmatprep.subr.mxu0 0.0
    %983 = vmatpush1.msra.mxu0 0.0
    %984 = vmatprep.subr.mxu0 0.0
    %985 = vmatpush1.msra.mxu0 0.0
    %986 = vmatprep.subr.mxu0 0.0
    %987 = vmatpush1.msra.mxu0 0.0
    %988 = vmatprep.subr.mxu0 0.0
    %989 = vmatpush1.msra.mxu0 0.0
    %990 = vmatprep.subr.mxu0 0.0
    %991 = vmatpush1.msra.mxu0 0.0
    %992 = vmatprep.subr.mxu0 0.0
    %993 = vmatpush1.msra.mxu0 0.0
    %994 = vmatprep.subr.mxu0 0.0
    %995 = vmatpush1.msra.mxu0 0.0
    %996 = vmatprep.subr.mxu0 0.0
    %997 = vmatpush1.msra.mxu0 0.0
    %998 = vmatprep.subr.mxu0 0.0
    %999 = vmatpush1.msra.mxu0 0.0
    %1000 = vmatprep.subr.mxu0 0.0
    %1001 = vmatpush1.msra.mxu0 0.0
    %1002 = vmatprep.subr.mxu0 0.0
    %1003 = vmatpush1.msra.mxu0 0.0
    %1004 = vmatprep.subr.mxu0 0.0
    %1005 = vmatpush1.msra.mxu0 0.0
    %1006 = vmatprep.subr.mxu0 0.0
    %1007 = vmatpush1.msra.mxu0 0.0
    %1008 = vmatprep.subr.mxu0 0.0
    %1009 = vmatpush1.msra.mxu0 0.0
    %1010 = vmatprep.subr.mxu0 0.0
    %1011 = vmatpush1.msra.mxu0 0.0
    %1012 = vmatprep.subr.mxu0 0.0
    %1013 = vmatpush1.msra.mxu0 0.0
    %1014 = vmatprep.subr.mxu0 0.0
    %1015 = vmatpush1.msra.mxu0 0.0
    %1016 = vmatprep.subr.mxu0 0.0
    %1017 = vmatpush1.msra.mxu0 0.0
    %1018 = vmatprep.subr.mxu0 0.0
    %1019 = vmatpush1.msra.mxu0 0.0
    %1020 = vmatprep.subr.mxu0 0.0
    %1021 = vmatpush1.msra.mxu0 0.0
    %1022 = vmatprep.subr.mxu0 0.0
    %1023 = vmatpush1.msra.mxu0 0.0
    %1024 = vmatprep.subr.mxu0 0.0
    %1025 = vmatpush1.msra.mxu0 0.0
    %1026 = vmatprep.subr.mxu0 0.0
    %1027 = vmatpush1.msra.mxu0 0.0
    %1028 = vmatprep.subr.mxu0 0.0
    %1029 = vmatpush1.msra.mxu0 0.0
    %1030 = vmatprep.subr.mxu0 0.0
    %1031 = vmatpush1.msra.mxu0 0.0
    %1032 = vmatprep.subr.mxu0 0.0
    %1033 = vmatpush1.msra.mxu0 0.0
    %1034 = vmatprep.subr.mxu0 0.0
    %1035 = vmatpush1.msra.mxu0 0.0
    %1036 = vmatprep.subr.mxu0 0.0
    %1037 = vmatpush1.msra.mxu0 0.0
    %1038 = vmatprep.subr.mxu0 0.0
    %1039 = vmatpush1.msra.mxu0 0.0
    %1040 = vmatprep.mubr.f32.mxu0 0.0
    %1041 = vmatmul.mubr.f32.gmra.mrb[0].mxu0 %v971
    %v1042 = vpop.f32.mrb[0].mxu0
    %v1043 = vadd.f32 %v962, %v1042
    %v1044 = vpop.f32.mrb[0].mxu0
    %1045 = vmatprep.mubr.f32.mxu0 0.0
    %1046 = vmatmul.mubr.f32.gmra.mrb[0].mxu0 %v974
    %v1047 = vpop.f32.mrb[0].mxu0
    %v1048 = vadd.f32 %v967, %v1047
    %v1049 = vpop.f32.mrb[0].mxu0
    %1050 = vdwg.mxu0
    %1051 = vrot.lane.b32.xlu0 %v222, 112
    %v1052 = vpop.permute.xlu0 %1051
    %1053 = vrot.lane.b32.xlu0 %v214, 80
    %v1054 = vpop.permute.xlu0 %1053
    %v1055 = vsel %vm231, %v1052, 0
    %v1057 = vsel %vm231, %v1054, 0
    %1059 = vmatprep.subr.mxu0 0.0
    %1060 = vmatpush1.xpose.msra.mxu0 %v1057
    %1061 = vmatprep.subr.mxu0 0.0
    %1062 = vmatpush1.xpose.msra.mxu0 0.0
    %1063 = vmatprep.subr.mxu0 0.0
    %1064 = vmatpush1.xpose.msra.mxu0 0.0
    %1065 = vmatprep.subr.mxu0 0.0
    %1066 = vmatpush1.xpose.msra.mxu0 0.0
    %1067 = vmatprep.subr.mxu0 0.0
    %1068 = vmatpush1.xpose.msra.mxu0 0.0
    %1069 = vmatprep.subr.mxu0 0.0
    %1070 = vmatpush1.xpose.msra.mxu0 0.0
    %1071 = vmatprep.subr.mxu0 0.0
    %1072 = vmatpush1.xpose.msra.mxu0 0.0
    %1073 = vmatprep.subr.mxu0 0.0
    %1074 = vmatpush1.xpose.msra.mxu0 0.0
    %1075 = vmatprep.subr.mxu0 0.0
    %1076 = vmatpush1.xpose.msra.mxu0 0.0
    %1077 = vmatprep.subr.mxu0 0.0
    %1078 = vmatpush1.xpose.msra.mxu0 0.0
    %1079 = vmatprep.subr.mxu0 0.0
    %1080 = vmatpush1.xpose.msra.mxu0 0.0
    %1081 = vmatprep.subr.mxu0 0.0
    %1082 = vmatpush1.xpose.msra.mxu0 0.0
    %1083 = vmatprep.subr.mxu0 0.0
    %1084 = vmatpush1.xpose.msra.mxu0 0.0
    %1085 = vmatprep.subr.mxu0 0.0
    %1086 = vmatpush1.xpose.msra.mxu0 0.0
    %1087 = vmatprep.subr.mxu0 0.0
    %1088 = vmatpush1.xpose.msra.mxu0 0.0
    %1089 = vmatprep.subr.mxu0 0.0
    %1090 = vmatpush1.xpose.msra.mxu0 0.0
    %1091 = vmatprep.subr.mxu0 0.0
    %1092 = vmatpush1.xpose.msra.mxu0 0.0
    %1093 = vmatprep.subr.mxu0 0.0
    %1094 = vmatpush1.xpose.msra.mxu0 0.0
    %1095 = vmatprep.subr.mxu0 0.0
    %1096 = vmatpush1.xpose.msra.mxu0 0.0
    %1097 = vmatprep.subr.mxu0 0.0
    %1098 = vmatpush1.xpose.msra.mxu0 0.0
    %1099 = vmatprep.subr.mxu0 0.0
    %1100 = vmatpush1.xpose.msra.mxu0 0.0
    %1101 = vmatprep.subr.mxu0 0.0
    %1102 = vmatpush1.xpose.msra.mxu0 0.0
    %1103 = vmatprep.subr.mxu0 0.0
    %1104 = vmatpush1.xpose.msra.mxu0 0.0
    %1105 = vmatprep.subr.mxu0 0.0
    %1106 = vmatpush1.xpose.msra.mxu0 0.0
    %1107 = vmatprep.subr.mxu0 0.0
    %1108 = vmatpush1.xpose.msra.mxu0 0.0
    %1109 = vmatprep.subr.mxu0 0.0
    %1110 = vmatpush1.xpose.msra.mxu0 0.0
    %1111 = vmatprep.subr.mxu0 0.0
    %1112 = vmatpush1.xpose.msra.mxu0 0.0
    %1113 = vmatprep.subr.mxu0 0.0
    %1114 = vmatpush1.xpose.msra.mxu0 0.0
    %1115 = vmatprep.subr.mxu0 0.0
    %1116 = vmatpush1.xpose.msra.mxu0 0.0
    %1117 = vmatprep.subr.mxu0 0.0
    %1118 = vmatpush1.xpose.msra.mxu0 0.0
    %1119 = vmatprep.subr.mxu0 0.0
    %1120 = vmatpush1.xpose.msra.mxu0 0.0
    %1121 = vmatprep.subr.mxu0 0.0
    %1122 = vmatpush1.xpose.msra.mxu0 0.0
    %1123 = vmatprep.mubr.f32.mxu0 0.0
    %1124 = vmatmul.mubr.f32.gmra.mrb[0].mxu0 %v1055
    %v1125 = vpop.f32.mrb[0].mxu0
    %v1126 = vadd.f32 %v83, %v1125
    %v1127 = vpop.f32.mrb[0].mxu0
    %1128 = vdwg.mxu0
    %1129 = vrot.lane.b32.xlu0 %v223, 112
    %v1130 = vpop.permute.xlu0 %1129
    %1131 = vrot.lane.b32.xlu0 %v219, 80
    %v1132 = vpop.permute.xlu0 %1131
    %v1133 = vsel %vm231, %v1130, 0
    %v1135 = vsel %vm231, %v1132, 0
    %1137 = vmatprep.subr.mxu0 0.0
    %1138 = vmatpush1.xpose.msra.mxu0 %v1135
    %1139 = vmatprep.subr.mxu0 0.0
    %1140 = vmatpush1.xpose.msra.mxu0 0.0
    %1141 = vmatprep.subr.mxu0 0.0
    %1142 = vmatpush1.xpose.msra.mxu0 0.0
    %1143 = vmatprep.subr.mxu0 0.0
    %1144 = vmatpush1.xpose.msra.mxu0 0.0
    %1145 = vmatprep.subr.mxu0 0.0
    %1146 = vmatpush1.xpose.msra.mxu0 0.0
    %1147 = vmatprep.subr.mxu0 0.0
    %1148 = vmatpush1.xpose.msra.mxu0 0.0
    %1149 = vmatprep.subr.mxu0 0.0
    %1150 = vmatpush1.xpose.msra.mxu0 0.0
    %1151 = vmatprep.subr.mxu0 0.0
    %1152 = vmatpush1.xpose.msra.mxu0 0.0
    %1153 = vmatprep.subr.mxu0 0.0
    %1154 = vmatpush1.xpose.msra.mxu0 0.0
    %1155 = vmatprep.subr.mxu0 0.0
    %1156 = vmatpush1.xpose.msra.mxu0 0.0
    %1157 = vmatprep.subr.mxu0 0.0
    %1158 = vmatpush1.xpose.msra.mxu0 0.0
    %1159 = vmatprep.subr.mxu0 0.0
    %1160 = vmatpush1.xpose.msra.mxu0 0.0
    %1161 = vmatprep.subr.mxu0 0.0
    %1162 = vmatpush1.xpose.msra.mxu0 0.0
    %1163 = vmatprep.subr.mxu0 0.0
    %1164 = vmatpush1.xpose.msra.mxu0 0.0
    %1165 = vmatprep.subr.mxu0 0.0
    %1166 = vmatpush1.xpose.msra.mxu0 0.0
    %1167 = vmatprep.subr.mxu0 0.0
    %1168 = vmatpush1.xpose.msra.mxu0 0.0
    %1169 = vmatprep.subr.mxu0 0.0
    %1170 = vmatpush1.xpose.msra.mxu0 0.0
    %1171 = vmatprep.subr.mxu0 0.0
    %1172 = vmatpush1.xpose.msra.mxu0 0.0
    %1173 = vmatprep.subr.mxu0 0.0
    %1174 = vmatpush1.xpose.msra.mxu0 0.0
    %1175 = vmatprep.subr.mxu0 0.0
    %1176 = vmatpush1.xpose.msra.mxu0 0.0
    %1177 = vmatprep.subr.mxu0 0.0
    %1178 = vmatpush1.xpose.msra.mxu0 0.0
    %1179 = vmatprep.subr.mxu0 0.0
    %1180 = vmatpush1.xpose.msra.mxu0 0.0
    %1181 = vmatprep.subr.mxu0 0.0
    %1182 = vmatpush1.xpose.msra.mxu0 0.0
    %1183 = vmatprep.subr.mxu0 0.0
    %1184 = vmatpush1.xpose.msra.mxu0 0.0
    %1185 = vmatprep.subr.mxu0 0.0
    %1186 = vmatpush1.xpose.msra.mxu0 0.0
    %1187 = vmatprep.subr.mxu0 0.0
    %1188 = vmatpush1.xpose.msra.mxu0 0.0
    %1189 = vmatprep.subr.mxu0 0.0
    %1190 = vmatpush1.xpose.msra.mxu0 0.0
    %1191 = vmatprep.subr.mxu0 0.0
    %1192 = vmatpush1.xpose.msra.mxu0 0.0
    %1193 = vmatprep.subr.mxu0 0.0
    %1194 = vmatpush1.xpose.msra.mxu0 0.0
    %1195 = vmatprep.subr.mxu0 0.0
    %1196 = vmatpush1.xpose.msra.mxu0 0.0
    %1197 = vmatprep.subr.mxu0 0.0
    %1198 = vmatpush1.xpose.msra.mxu0 0.0
    %1199 = vmatprep.subr.mxu0 0.0
    %1200 = vmatpush1.xpose.msra.mxu0 0.0
    %1201 = vmatprep.mubr.f32.mxu0 0.0
    %1202 = vmatmul.mubr.f32.gmra.mrb[0].mxu0 %v1133
    %v1203 = vpop.f32.mrb[0].mxu0
    %v1204 = vadd.f32 %v83, %v1203
    %v1205 = vpop.f32.mrb[0].mxu0
    %1206 = vdwg.mxu0
    %v1207 = vsel %vm231, %v1126, -inf
    %1208 = vmax.xlane.f32.xlu0 %v1207
    %v1209 = vpop.xlane.xlu0 %1208
    %v1210 = vsel %vm231, %v1204, -inf
    %1211 = vmax.xlane.f32.xlu0 %v1210
    %v1212 = vpop.xlane.xlu0 %1211
    %v1213 = vsub.f32 %v1126, %v1209
    %v1214 = vsub.f32 %v1204, %v1212
    %v1215 = vmul.f32 %v1213, 1.442695
    %v1216 = vpow.pop %v1215
    %v1217 = vmul.f32 %v1214, 1.442695
    %v1218 = vpow.pop %v1217
    %v1219 = vsel %vm231, %v1216, 0.0
    %1220 = vadd.xlane.f32.xlu0 %v1219
    %v1221 = vpop.xlane.xlu0 %1220
    %v1222 = vsel %vm231, %v1218, 0.0
    %1223 = vadd.xlane.f32.xlu0 %v1222
    %v1224 = vpop.xlane.xlu0 %1223
    %v1225 = vrcp.pop %v1221
    %v1226 = vrcp.pop %v1224
    %v1227 = vmul.f32 %v1216, %v1225
    %v1228 = vmul.f32 %v1218, %v1226
    %1229 = vrot.lane.b32.xlu0 %v214, 48
    %v1230 = vpop.permute.xlu0 %1229
    %v1233 = vsel %vm231, %v1227, 0
    %1235 = vmatprep.subr.mxu0 0.0
    %1236 = vmatpush1.msra.mxu0 %v1230
    %1237 = vmatprep.subr.mxu0 0.0
    %1238 = vmatpush1.msra.mxu0 0.0
    %1239 = vmatprep.subr.mxu0 0.0
    %1240 = vmatpush1.msra.mxu0 0.0
    %1241 = vmatprep.subr.mxu0 0.0
    %1242 = vmatpush1.msra.mxu0 0.0
    %1243 = vmatprep.subr.mxu0 0.0
    %1244 = vmatpush1.msra.mxu0 0.0
    %1245 = vmatprep.subr.mxu0 0.0
    %1246 = vmatpush1.msra.mxu0 0.0
    %1247 = vmatprep.subr.mxu0 0.0
    %1248 = vmatpush1.msra.mxu0 0.0
    %1249 = vmatprep.subr.mxu0 0.0
    %1250 = vmatpush1.msra.mxu0 0.0
    %1251 = vmatprep.subr.mxu0 0.0
    %1252 = vmatpush1.msra.mxu0 0.0
    %1253 = vmatprep.subr.mxu0 0.0
    %1254 = vmatpush1.msra.mxu0 0.0
    %1255 = vmatprep.subr.mxu0 0.0
    %1256 = vmatpush1.msra.mxu0 0.0
    %1257 = vmatprep.subr.mxu0 0.0
    %1258 = vmatpush1.msra.mxu0 0.0
    %1259 = vmatprep.subr.mxu0 0.0
    %1260 = vmatpush1.msra.mxu0 0.0
    %1261 = vmatprep.subr.mxu0 0.0
    %1262 = vmatpush1.msra.mxu0 0.0
    %1263 = vmatprep.subr.mxu0 0.0
    %1264 = vmatpush1.msra.mxu0 0.0
    %1265 = vmatprep.subr.mxu0 0.0
    %1266 = vmatpush1.msra.mxu0 0.0
    %1267 = vmatprep.subr.mxu0 0.0
    %1268 = vmatpush1.msra.mxu0 0.0
    %1269 = vmatprep.subr.mxu0 0.0
    %1270 = vmatpush1.msra.mxu0 0.0
    %1271 = vmatprep.subr.mxu0 0.0
    %1272 = vmatpush1.msra.mxu0 0.0
    %1273 = vmatprep.subr.mxu0 0.0
    %1274 = vmatpush1.msra.mxu0 0.0
    %1275 = vmatprep.subr.mxu0 0.0
    %1276 = vmatpush1.msra.mxu0 0.0
    %1277 = vmatprep.subr.mxu0 0.0
    %1278 = vmatpush1.msra.mxu0 0.0
    %1279 = vmatprep.subr.mxu0 0.0
    %1280 = vmatpush1.msra.mxu0 0.0
    %1281 = vmatprep.subr.mxu0 0.0
    %1282 = vmatpush1.msra.mxu0 0.0
    %1283 = vmatprep.subr.mxu0 0.0
    %1284 = vmatpush1.msra.mxu0 0.0
    %1285 = vmatprep.subr.mxu0 0.0
    %1286 = vmatpush1.msra.mxu0 0.0
    %1287 = vmatprep.subr.mxu0 0.0
    %1288 = vmatpush1.msra.mxu0 0.0
    %1289 = vmatprep.subr.mxu0 0.0
    %1290 = vmatpush1.msra.mxu0 0.0
    %1291 = vmatprep.subr.mxu0 0.0
    %1292 = vmatpush1.msra.mxu0 0.0
    %1293 = vmatprep.subr.mxu0 0.0
    %1294 = vmatpush1.msra.mxu0 0.0
    %1295 = vmatprep.subr.mxu0 0.0
    %1296 = vmatpush1.msra.mxu0 0.0
    %1297 = vmatprep.subr.mxu0 0.0
    %1298 = vmatpush1.msra.mxu0 0.0
    %1299 = vmatprep.mubr.f32.mxu0 0.0
    %1300 = vmatmul.mubr.f32.gmra.mrb[0].mxu0 %v1233
    %v1301 = vpop.f32.mrb[0].mxu0
    %v1302 = vadd.f32 0.0, %v1301
    %v1303 = vpop.f32.mrb[0].mxu0
    %1304 = vdwg.mxu0
    %1305 = vrot.lane.b32.xlu0 %v219, 48
    %v1306 = vpop.permute.xlu0 %1305
    %v1309 = vsel %vm231, %v1228, 0
    %1311 = vmatprep.subr.mxu0 0.0
    %1312 = vmatpush1.msra.mxu0 %v1306
    %1313 = vmatprep.subr.mxu0 0.0
    %1314 = vmatpush1.msra.mxu0 0.0
    %1315 = vmatprep.subr.mxu0 0.0
    %1316 = vmatpush1.msra.mxu0 0.0
    %1317 = vmatprep.subr.mxu0 0.0
    %1318 = vmatpush1.msra.mxu0 0.0
    %1319 = vmatprep.subr.mxu0 0.0
    %1320 = vmatpush1.msra.mxu0 0.0
    %1321 = vmatprep.subr.mxu0 0.0
    %1322 = vmatpush1.msra.mxu0 0.0
    %1323 = vmatprep.subr.mxu0 0.0
    %1324 = vmatpush1.msra.mxu0 0.0
    %1325 = vmatprep.subr.mxu0 0.0
    %1326 = vmatpush1.msra.mxu0 0.0
    %1327 = vmatprep.subr.mxu0 0.0
    %1328 = vmatpush1.msra.mxu0 0.0
    %1329 = vmatprep.subr.mxu0 0.0
    %1330 = vmatpush1.msra.mxu0 0.0
    %1331 = vmatprep.subr.mxu0 0.0
    %1332 = vmatpush1.msra.mxu0 0.0
    %1333 = vmatprep.subr.mxu0 0.0
    %1334 = vmatpush1.msra.mxu0 0.0
    %1335 = vmatprep.subr.mxu0 0.0
    %1336 = vmatpush1.msra.mxu0 0.0
    %1337 = vmatprep.subr.mxu0 0.0
    %1338 = vmatpush1.msra.mxu0 0.0
    %1339 = vmatprep.subr.mxu0 0.0
    %1340 = vmatpush1.msra.mxu0 0.0
    %1341 = vmatprep.subr.mxu0 0.0
    %1342 = vmatpush1.msra.mxu0 0.0
    %1343 = vmatprep.subr.mxu0 0.0
    %1344 = vmatpush1.msra.mxu0 0.0
    %1345 = vmatprep.subr.mxu0 0.0
    %1346 = vmatpush1.msra.mxu0 0.0
    %1347 = vmatprep.subr.mxu0 0.0
    %1348 = vmatpush1.msra.mxu0 0.0
    %1349 = vmatprep.subr.mxu0 0.0
    %1350 = vmatpush1.msra.mxu0 0.0
    %1351 = vmatprep.subr.mxu0 0.0
    %1352 = vmatpush1.msra.mxu0 0.0
    %1353 = vmatprep.subr.mxu0 0.0
    %1354 = vmatpush1.msra.mxu0 0.0
    %1355 = vmatprep.subr.mxu0 0.0
    %1356 = vmatpush1.msra.mxu0 0.0
    %1357 = vmatprep.subr.mxu0 0.0
    %1358 = vmatpush1.msra.mxu0 0.0
    %1359 = vmatprep.subr.mxu0 0.0
    %1360 = vmatpush1.msra.mxu0 0.0
    %1361 = vmatprep.subr.mxu0 0.0
    %1362 = vmatpush1.msra.mxu0 0.0
    %1363 = vmatprep.subr.mxu0 0.0
    %1364 = vmatpush1.msra.mxu0 0.0
    %1365 = vmatprep.subr.mxu0 0.0
    %1366 = vmatpush1.msra.mxu0 0.0
    %1367 = vmatprep.subr.mxu0 0.0
    %1368 = vmatpush1.msra.mxu0 0.0
    %1369 = vmatprep.subr.mxu0 0.0
    %1370 = vmatpush1.msra.mxu0 0.0
    %1371 = vmatprep.subr.mxu0 0.0
    %1372 = vmatpush1.msra.mxu0 0.0
    %1373 = vmatprep.subr.mxu0 0.0
    %1374 = vmatpush1.msra.mxu0 0.0
    %1375 = vmatprep.mubr.f32.mxu0 0.0
    %1376 = vmatmul.mubr.f32.gmra.mrb[0].mxu0 %v1309
    %v1377 = vpop.f32.mrb[0].mxu0
    %v1378 = vadd.f32 0.0, %v1377
    %v1379 = vpop.f32.mrb[0].mxu0
    %1380 = vdwg.mxu0
    %v1382 = vsel %vm231, %v1302, 0
    %v1385 = vsel %vm231, %v1378, 0
    %1387 = vmatprep.subr.mxu0 0.0
    %1388 = vmatpush1.msra.mxu0 %v226
    %1389 = vmatprep.subr.mxu0 0.0
    %1390 = vmatpush1.msra.mxu0 0.0
    %1391 = vmatprep.subr.mxu0 0.0
    %1392 = vmatpush1.msra.mxu0 0.0
    %1393 = vmatprep.subr.mxu0 0.0
    %1394 = vmatpush1.msra.mxu0 0.0
    %1395 = vmatprep.subr.mxu0 0.0
    %1396 = vmatpush1.msra.mxu0 0.0
    %1397 = vmatprep.subr.mxu0 0.0
    %1398 = vmatpush1.msra.mxu0 0.0
    %1399 = vmatprep.subr.mxu0 0.0
    %1400 = vmatpush1.msra.mxu0 0.0
    %1401 = vmatprep.subr.mxu0 0.0
    %1402 = vmatpush1.msra.mxu0 0.0
    %1403 = vmatprep.subr.mxu0 0.0
    %1404 = vmatpush1.msra.mxu0 0.0
    %1405 = vmatprep.subr.mxu0 0.0
    %1406 = vmatpush1.msra.mxu0 0.0
    %1407 = vmatprep.subr.mxu0 0.0
    %1408 = vmatpush1.msra.mxu0 0.0
    %1409 = vmatprep.subr.mxu0 0.0
    %1410 = vmatpush1.msra.mxu0 0.0
    %1411 = vmatprep.subr.mxu0 0.0
    %1412 = vmatpush1.msra.mxu0 0.0
    %1413 = vmatprep.subr.mxu0 0.0
    %1414 = vmatpush1.msra.mxu0 0.0
    %1415 = vmatprep.subr.mxu0 0.0
    %1416 = vmatpush1.msra.mxu0 0.0
    %1417 = vmatprep.subr.mxu0 0.0
    %1418 = vmatpush1.msra.mxu0 0.0
    %1419 = vmatprep.subr.mxu0 0.0
    %1420 = vmatpush1.msra.mxu0 0.0
    %1421 = vmatprep.subr.mxu0 0.0
    %1422 = vmatpush1.msra.mxu0 0.0
    %1423 = vmatprep.subr.mxu0 0.0
    %1424 = vmatpush1.msra.mxu0 0.0
    %1425 = vmatprep.subr.mxu0 0.0
    %1426 = vmatpush1.msra.mxu0 0.0
    %1427 = vmatprep.subr.mxu0 0.0
    %1428 = vmatpush1.msra.mxu0 0.0
    %1429 = vmatprep.subr.mxu0 0.0
    %1430 = vmatpush1.msra.mxu0 0.0
    %1431 = vmatprep.subr.mxu0 0.0
    %1432 = vmatpush1.msra.mxu0 0.0
    %1433 = vmatprep.subr.mxu0 0.0
    %1434 = vmatpush1.msra.mxu0 0.0
    %1435 = vmatprep.subr.mxu0 0.0
    %1436 = vmatpush1.msra.mxu0 0.0
    %1437 = vmatprep.subr.mxu0 0.0
    %1438 = vmatpush1.msra.mxu0 0.0
    %1439 = vmatprep.subr.mxu0 0.0
    %1440 = vmatpush1.msra.mxu0 0.0
    %1441 = vmatprep.subr.mxu0 0.0
    %1442 = vmatpush1.msra.mxu0 0.0
    %1443 = vmatprep.subr.mxu0 0.0
    %1444 = vmatpush1.msra.mxu0 0.0
    %1445 = vmatprep.subr.mxu0 0.0
    %1446 = vmatpush1.msra.mxu0 0.0
    %1447 = vmatprep.subr.mxu0 0.0
    %1448 = vmatpush1.msra.mxu0 0.0
    %1449 = vmatprep.subr.mxu0 0.0
    %1450 = vmatpush1.msra.mxu0 0.0
    %1451 = vmatprep.mubr.f32.mxu0 0.0
    %1452 = vmatmul.mubr.f32.gmra.mrb[0].mxu0 %v1382
    %v1453 = vpop.f32.mrb[0].mxu0
    %v1454 = vadd.f32 0.0, %v1453
    %v1455 = vpop.f32.mrb[0].mxu0
    %1456 = vmatprep.mubr.f32.mxu0 0.0
    %1457 = vmatmul.mubr.f32.gmra.mrb[0].mxu0 %v1385
    %v1458 = vpop.f32.mrb[0].mxu0
    %v1459 = vadd.f32 0.0, %v1458
    %v1460 = vpop.f32.mrb[0].mxu0
    %1461 = vdwg.mxu0
    %v1462 = vadd.f32 %v1043, %v1454
    %v1463 = vadd.f32 %v1048, %v1459
    %1464 = vrot.lane.b32.xlu0 %v222, 104
    %v1465 = vpop.permute.xlu0 %1464
    %1466 = vrot.lane.b32.xlu0 %v214, 72
    %v1467 = vpop.permute.xlu0 %1466
    %v1468 = vsel %vm231, %v1465, 0
    %v1470 = vsel %vm231, %v1467, 0
    %1472 = vmatprep.subr.mxu0 0.0
    %1473 = vmatpush1.xpose.msra.mxu0 %v1470
    %1474 = vmatprep.subr.mxu0 0.0
    %1475 = vmatpush1.xpose.msra.mxu0 0.0
    %1476 = vmatprep.subr.mxu0 0.0
    %1477 = vmatpush1.xpose.msra.mxu0 0.0
    %1478 = vmatprep.subr.mxu0 0.0
    %1479 = vmatpush1.xpose.msra.mxu0 0.0
    %1480 = vmatprep.subr.mxu0 0.0
    %1481 = vmatpush1.xpose.msra.mxu0 0.0
    %1482 = vmatprep.subr.mxu0 0.0
    %1483 = vmatpush1.xpose.msra.mxu0 0.0
    %1484 = vmatprep.subr.mxu0 0.0
    %1485 = vmatpush1.xpose.msra.mxu0 0.0
    %1486 = vmatprep.subr.mxu0 0.0
    %1487 = vmatpush1.xpose.msra.mxu0 0.0
    %1488 = vmatprep.subr.mxu0 0.0
    %1489 = vmatpush1.xpose.msra.mxu0 0.0
    %1490 = vmatprep.subr.mxu0 0.0
    %1491 = vmatpush1.xpose.msra.mxu0 0.0
    %1492 = vmatprep.subr.mxu0 0.0
    %1493 = vmatpush1.xpose.msra.mxu0 0.0
    %1494 = vmatprep.subr.mxu0 0.0
    %1495 = vmatpush1.xpose.msra.mxu0 0.0
    %1496 = vmatprep.subr.mxu0 0.0
    %1497 = vmatpush1.xpose.msra.mxu0 0.0
    %1498 = vmatprep.subr.mxu0 0.0
    %1499 = vmatpush1.xpose.msra.mxu0 0.0
    %1500 = vmatprep.subr.mxu0 0.0
    %1501 = vmatpush1.xpose.msra.mxu0 0.0
    %1502 = vmatprep.subr.mxu0 0.0
    %1503 = vmatpush1.xpose.msra.mxu0 0.0
    %1504 = vmatprep.subr.mxu0 0.0
    %1505 = vmatpush1.xpose.msra.mxu0 0.0
    %1506 = vmatprep.subr.mxu0 0.0
    %1507 = vmatpush1.xpose.msra.mxu0 0.0
    %1508 = vmatprep.subr.mxu0 0.0
    %1509 = vmatpush1.xpose.msra.mxu0 0.0
    %1510 = vmatprep.subr.mxu0 0.0
    %1511 = vmatpush1.xpose.msra.mxu0 0.0
    %1512 = vmatprep.subr.mxu0 0.0
    %1513 = vmatpush1.xpose.msra.mxu0 0.0
    %1514 = vmatprep.subr.mxu0 0.0
    %1515 = vmatpush1.xpose.msra.mxu0 0.0
    %1516 = vmatprep.subr.mxu0 0.0
    %1517 = vmatpush1.xpose.msra.mxu0 0.0
    %1518 = vmatprep.subr.mxu0 0.0
    %1519 = vmatpush1.xpose.msra.mxu0 0.0
    %1520 = vmatprep.subr.mxu0 0.0
    %1521 = vmatpush1.xpose.msra.mxu0 0.0
    %1522 = vmatprep.subr.mxu0 0.0
    %1523 = vmatpush1.xpose.msra.mxu0 0.0
    %1524 = vmatprep.subr.mxu0 0.0
    %1525 = vmatpush1.xpose.msra.mxu0 0.0
    %1526 = vmatprep.subr.mxu0 0.0
    %1527 = vmatpush1.xpose.msra.mxu0 0.0
    %1528 = vmatprep.subr.mxu0 0.0
    %1529 = vmatpush1.xpose.msra.mxu0 0.0
    %1530 = vmatprep.subr.mxu0 0.0
    %1531 = vmatpush1.xpose.msra.mxu0 0.0
    %1532 = vmatprep.subr.mxu0 0.0
    %1533 = vmatpush1.xpose.msra.mxu0 0.0
    %1534 = vmatprep.subr.mxu0 0.0
    %1535 = vmatpush1.xpose.msra.mxu0 0.0
    %1536 = vmatprep.mubr.f32.mxu0 0.0
    %1537 = vmatmul.mubr.f32.gmra.mrb[0].mxu0 %v1468
    %v1538 = vpop.f32.mrb[0].mxu0
    %v1539 = vadd.f32 %v83, %v1538
    %v1540 = vpop.f32.mrb[0].mxu0
    %1541 = vdwg.mxu0
    %1542 = vrot.lane.b32.xlu0 %v223, 104
    %v1543 = vpop.permute.xlu0 %1542
    %1544 = vrot.lane.b32.xlu0 %v219, 72
    %v1545 = vpop.permute.xlu0 %1544
    %v1546 = vsel %vm231, %v1543, 0
    %v1548 = vsel %vm231, %v1545, 0
    %1550 = vmatprep.subr.mxu0 0.0
    %1551 = vmatpush1.xpose.msra.mxu0 %v1548
    %1552 = vmatprep.subr.mxu0 0.0
    %1553 = vmatpush1.xpose.msra.mxu0 0.0
    %1554 = vmatprep.subr.mxu0 0.0
    %1555 = vmatpush1.xpose.msra.mxu0 0.0
    %1556 = vmatprep.subr.mxu0 0.0
    %1557 = vmatpush1.xpose.msra.mxu0 0.0
    %1558 = vmatprep.subr.mxu0 0.0
    %1559 = vmatpush1.xpose.msra.mxu0 0.0
    %1560 = vmatprep.subr.mxu0 0.0
    %1561 = vmatpush1.xpose.msra.mxu0 0.0
    %1562 = vmatprep.subr.mxu0 0.0
    %1563 = vmatpush1.xpose.msra.mxu0 0.0
    %1564 = vmatprep.subr.mxu0 0.0
    %1565 = vmatpush1.xpose.msra.mxu0 0.0
    %1566 = vmatprep.subr.mxu0 0.0
    %1567 = vmatpush1.xpose.msra.mxu0 0.0
    %1568 = vmatprep.subr.mxu0 0.0
    %1569 = vmatpush1.xpose.msra.mxu0 0.0
    %1570 = vmatprep.subr.mxu0 0.0
    %1571 = vmatpush1.xpose.msra.mxu0 0.0
    %1572 = vmatprep.subr.mxu0 0.0
    %1573 = vmatpush1.xpose.msra.mxu0 0.0
    %1574 = vmatprep.subr.mxu0 0.0
    %1575 = vmatpush1.xpose.msra.mxu0 0.0
    %1576 = vmatprep.subr.mxu0 0.0
    %1577 = vmatpush1.xpose.msra.mxu0 0.0
    %1578 = vmatprep.subr.mxu0 0.0
    %1579 = vmatpush1.xpose.msra.mxu0 0.0
    %1580 = vmatprep.subr.mxu0 0.0
    %1581 = vmatpush1.xpose.msra.mxu0 0.0
    %1582 = vmatprep.subr.mxu0 0.0
    %1583 = vmatpush1.xpose.msra.mxu0 0.0
    %1584 = vmatprep.subr.mxu0 0.0
    %1585 = vmatpush1.xpose.msra.mxu0 0.0
    %1586 = vmatprep.subr.mxu0 0.0
    %1587 = vmatpush1.xpose.msra.mxu0 0.0
    %1588 = vmatprep.subr.mxu0 0.0
    %1589 = vmatpush1.xpose.msra.mxu0 0.0
    %1590 = vmatprep.subr.mxu0 0.0
    %1591 = vmatpush1.xpose.msra.mxu0 0.0
    %1592 = vmatprep.subr.mxu0 0.0
    %1593 = vmatpush1.xpose.msra.mxu0 0.0
    %1594 = vmatprep.subr.mxu0 0.0
    %1595 = vmatpush1.xpose.msra.mxu0 0.0
    %1596 = vmatprep.subr.mxu0 0.0
    %1597 = vmatpush1.xpose.msra.mxu0 0.0
    %1598 = vmatprep.subr.mxu0 0.0
    %1599 = vmatpush1.xpose.msra.mxu0 0.0
    %1600 = vmatprep.subr.mxu0 0.0
    %1601 = vmatpush1.xpose.msra.mxu0 0.0
    %1602 = vmatprep.subr.mxu0 0.0
    %1603 = vmatpush1.xpose.msra.mxu0 0.0
    %1604 = vmatprep.subr.mxu0 0.0
    %1605 = vmatpush1.xpose.msra.mxu0 0.0
    %1606 = vmatprep.subr.mxu0 0.0
    %1607 = vmatpush1.xpose.msra.mxu0 0.0
    %1608 = vmatprep.subr.mxu0 0.0
    %1609 = vmatpush1.xpose.msra.mxu0 0.0
    %1610 = vmatprep.subr.mxu0 0.0
    %1611 = vmatpush1.xpose.msra.mxu0 0.0
    %1612 = vmatprep.subr.mxu0 0.0
    %1613 = vmatpush1.xpose.msra.mxu0 0.0
    %1614 = vmatprep.mubr.f32.mxu0 0.0
    %1615 = vmatmul.mubr.f32.gmra.mrb[0].mxu0 %v1546
    %v1616 = vpop.f32.mrb[0].mxu0
    %v1617 = vadd.f32 %v83, %v1616
    %v1618 = vpop.f32.mrb[0].mxu0
    %1619 = vdwg.mxu0
    %v1620 = vsel %vm231, %v1539, -inf
    %1621 = vmax.xlane.f32.xlu0 %v1620
    %v1622 = vpop.xlane.xlu0 %1621
    %v1623 = vsel %vm231, %v1617, -inf
    %1624 = vmax.xlane.f32.xlu0 %v1623
    %v1625 = vpop.xlane.xlu0 %1624
    %v1626 = vsub.f32 %v1539, %v1622
    %v1627 = vsub.f32 %v1617, %v1625
    %v1628 = vmul.f32 %v1626, 1.442695
    %v1629 = vpow.pop %v1628
    %v1630 = vmul.f32 %v1627, 1.442695
    %v1631 = vpow.pop %v1630
    %v1632 = vsel %vm231, %v1629, 0.0
    %1633 = vadd.xlane.f32.xlu0 %v1632
    %v1634 = vpop.xlane.xlu0 %1633
    %v1635 = vsel %vm231, %v1631, 0.0
    %1636 = vadd.xlane.f32.xlu0 %v1635
    %v1637 = vpop.xlane.xlu0 %1636
    %v1638 = vrcp.pop %v1634
    %v1639 = vrcp.pop %v1637
    %v1640 = vmul.f32 %v1629, %v1638
    %v1641 = vmul.f32 %v1631, %v1639
    %1642 = vrot.lane.b32.xlu0 %v214, 40
    %v1643 = vpop.permute.xlu0 %1642
    %v1646 = vsel %vm231, %v1640, 0
    %1648 = vmatprep.subr.mxu0 0.0
    %1649 = vmatpush1.msra.mxu0 %v1643
    %1650 = vmatprep.subr.mxu0 0.0
    %1651 = vmatpush1.msra.mxu0 0.0
    %1652 = vmatprep.subr.mxu0 0.0
    %1653 = vmatpush1.msra.mxu0 0.0
    %1654 = vmatprep.subr.mxu0 0.0
    %1655 = vmatpush1.msra.mxu0 0.0
    %1656 = vmatprep.subr.mxu0 0.0
    %1657 = vmatpush1.msra.mxu0 0.0
    %1658 = vmatprep.subr.mxu0 0.0
    %1659 = vmatpush1.msra.mxu0 0.0
    %1660 = vmatprep.subr.mxu0 0.0
    %1661 = vmatpush1.msra.mxu0 0.0
    %1662 = vmatprep.subr.mxu0 0.0
    %1663 = vmatpush1.msra.mxu0 0.0
    %1664 = vmatprep.subr.mxu0 0.0
    %1665 = vmatpush1.msra.mxu0 0.0
    %1666 = vmatprep.subr.mxu0 0.0
    %1667 = vmatpush1.msra.mxu0 0.0
    %1668 = vmatprep.subr.mxu0 0.0
    %1669 = vmatpush1.msra.mxu0 0.0
    %1670 = vmatprep.subr.mxu0 0.0
    %1671 = vmatpush1.msra.mxu0 0.0
    %1672 = vmatprep.subr.mxu0 0.0
    %1673 = vmatpush1.msra.mxu0 0.0
    %1674 = vmatprep.subr.mxu0 0.0
    %1675 = vmatpush1.msra.mxu0 0.0
    %1676 = vmatprep.subr.mxu0 0.0
    %1677 = vmatpush1.msra.mxu0 0.0
    %1678 = vmatprep.subr.mxu0 0.0
    %1679 = vmatpush1.msra.mxu0 0.0
    %1680 = vmatprep.subr.mxu0 0.0
    %1681 = vmatpush1.msra.mxu0 0.0
    %1682 = vmatprep.subr.mxu0 0.0
    %1683 = vmatpush1.msra.mxu0 0.0
    %1684 = vmatprep.subr.mxu0 0.0
    %1685 = vmatpush1.msra.mxu0 0.0
    %1686 = vmatprep.subr.mxu0 0.0
    %1687 = vmatpush1.msra.mxu0 0.0
    %1688 = vmatprep.subr.mxu0 0.0
    %1689 = vmatpush1.msra.mxu0 0.0
    %1690 = vmatprep.subr.mxu0 0.0
    %1691 = vmatpush1.msra.mxu0 0.0
    %1692 = vmatprep.subr.mxu0 0.0
    %1693 = vmatpush1.msra.mxu0 0.0
    %1694 = vmatprep.subr.mxu0 0.0
    %1695 = vmatpush1.msra.mxu0 0.0
    %1696 = vmatprep.subr.mxu0 0.0
    %1697 = vmatpush1.msra.mxu0 0.0
    %1698 = vmatprep.subr.mxu0 0.0
    %1699 = vmatpush1.msra.mxu0 0.0
    %1700 = vmatprep.subr.mxu0 0.0
    %1701 = vmatpush1.msra.mxu0 0.0
    %1702 = vmatprep.subr.mxu0 0.0
    %1703 = vmatpush1.msra.mxu0 0.0
    %1704 = vmatprep.subr.mxu0 0.0
    %1705 = vmatpush1.msra.mxu0 0.0
    %1706 = vmatprep.subr.mxu0 0.0
    %1707 = vmatpush1.msra.mxu0 0.0
    %1708 = vmatprep.subr.mxu0 0.0
    %1709 = vmatpush1.msra.mxu0 0.0
    %1710 = vmatprep.subr.mxu0 0.0
    %1711 = vmatpush1.msra.mxu0 0.0
    %1712 = vmatprep.mubr.f32.mxu0 0.0
    %1713 = vmatmul.mubr.f32.gmra.mrb[0].mxu0 %v1646
    %v1714 = vpop.f32.mrb[0].mxu0
    %v1715 = vadd.f32 0.0, %v1714
    %v1716 = vpop.f32.mrb[0].mxu0
    %1717 = vdwg.mxu0
    %1718 = vrot.lane.b32.xlu0 %v219, 40
    %v1719 = vpop.permute.xlu0 %1718
    %v1722 = vsel %vm231, %v1641, 0
    %1724 = vmatprep.subr.mxu0 0.0
    %1725 = vmatpush1.msra.mxu0 %v1719
    %1726 = vmatprep.subr.mxu0 0.0
    %1727 = vmatpush1.msra.mxu0 0.0
    %1728 = vmatprep.subr.mxu0 0.0
    %1729 = vmatpush1.msra.mxu0 0.0
    %1730 = vmatprep.subr.mxu0 0.0
    %1731 = vmatpush1.msra.mxu0 0.0
    %1732 = vmatprep.subr.mxu0 0.0
    %1733 = vmatpush1.msra.mxu0 0.0
    %1734 = vmatprep.subr.mxu0 0.0
    %1735 = vmatpush1.msra.mxu0 0.0
    %1736 = vmatprep.subr.mxu0 0.0
    %1737 = vmatpush1.msra.mxu0 0.0
    %1738 = vmatprep.subr.mxu0 0.0
    %1739 = vmatpush1.msra.mxu0 0.0
    %1740 = vmatprep.subr.mxu0 0.0
    %1741 = vmatpush1.msra.mxu0 0.0
    %1742 = vmatprep.subr.mxu0 0.0
    %1743 = vmatpush1.msra.mxu0 0.0
    %1744 = vmatprep.subr.mxu0 0.0
    %1745 = vmatpush1.msra.mxu0 0.0
    %1746 = vmatprep.subr.mxu0 0.0
    %1747 = vmatpush1.msra.mxu0 0.0
    %1748 = vmatprep.subr.mxu0 0.0
    %1749 = vmatpush1.msra.mxu0 0.0
    %1750 = vmatprep.subr.mxu0 0.0
    %1751 = vmatpush1.msra.mxu0 0.0
    %1752 = vmatprep.subr.mxu0 0.0
    %1753 = vmatpush1.msra.mxu0 0.0
    %1754 = vmatprep.subr.mxu0 0.0
    %1755 = vmatpush1.msra.mxu0 0.0
    %1756 = vmatprep.subr.mxu0 0.0
    %1757 = vmatpush1.msra.mxu0 0.0
    %1758 = vmatprep.subr.mxu0 0.0
    %1759 = vmatpush1.msra.mxu0 0.0
    %1760 = vmatprep.subr.mxu0 0.0
    %1761 = vmatpush1.msra.mxu0 0.0
    %1762 = vmatprep.subr.mxu0 0.0
    %1763 = vmatpush1.msra.mxu0 0.0
    %1764 = vmatprep.subr.mxu0 0.0
    %1765 = vmatpush1.msra.mxu0 0.0
    %1766 = vmatprep.subr.mxu0 0.0
    %1767 = vmatpush1.msra.mxu0 0.0
    %1768 = vmatprep.subr.mxu0 0.0
    %1769 = vmatpush1.msra.mxu0 0.0
    %1770 = vmatprep.subr.mxu0 0.0
    %1771 = vmatpush1.msra.mxu0 0.0
    %1772 = vmatprep.subr.mxu0 0.0
    %1773 = vmatpush1.msra.mxu0 0.0
    %1774 = vmatprep.subr.mxu0 0.0
    %1775 = vmatpush1.msra.mxu0 0.0
    %1776 = vmatprep.subr.mxu0 0.0
    %1777 = vmatpush1.msra.mxu0 0.0
    %1778 = vmatprep.subr.mxu0 0.0
    %1779 = vmatpush1.msra.mxu0 0.0
    %1780 = vmatprep.subr.mxu0 0.0
    %1781 = vmatpush1.msra.mxu0 0.0
    %1782 = vmatprep.subr.mxu0 0.0
    %1783 = vmatpush1.msra.mxu0 0.0
    %1784 = vmatprep.subr.mxu0 0.0
    %1785 = vmatpush1.msra.mxu0 0.0
    %1786 = vmatprep.subr.mxu0 0.0
    %1787 = vmatpush1.msra.mxu0 0.0
    %1788 = vmatprep.mubr.f32.mxu0 0.0
    %1789 = vmatmul.mubr.f32.gmra.mrb[0].mxu0 %v1722
    %v1790 = vpop.f32.mrb[0].mxu0
    %v1791 = vadd.f32 0.0, %v1790
    %v1792 = vpop.f32.mrb[0].mxu0
    %1793 = vdwg.mxu0
    %v1795 = vsel %vm231, %v1715, 0
    %v1798 = vsel %vm231, %v1791, 0
    %1800 = vmatprep.subr.mxu0 0.0
    %1801 = vmatpush1.msra.mxu0 %v227
    %1802 = vmatprep.subr.mxu0 0.0
    %1803 = vmatpush1.msra.mxu0 0.0
    %1804 = vmatprep.subr.mxu0 0.0
    %1805 = vmatpush1.msra.mxu0 0.0
    %1806 = vmatprep.subr.mxu0 0.0
    %1807 = vmatpush1.msra.mxu0 0.0
    %1808 = vmatprep.subr.mxu0 0.0
    %1809 = vmatpush1.msra.mxu0 0.0
    %1810 = vmatprep.subr.mxu0 0.0
    %1811 = vmatpush1.msra.mxu0 0.0
    %1812 = vmatprep.subr.mxu0 0.0
    %1813 = vmatpush1.msra.mxu0 0.0
    %1814 = vmatprep.subr.mxu0 0.0
    %1815 = vmatpush1.msra.mxu0 0.0
    %1816 = vmatprep.subr.mxu0 0.0
    %1817 = vmatpush1.msra.mxu0 0.0
    %1818 = vmatprep.subr.mxu0 0.0
    %1819 = vmatpush1.msra.mxu0 0.0
    %1820 = vmatprep.subr.mxu0 0.0
    %1821 = vmatpush1.msra.mxu0 0.0
    %1822 = vmatprep.subr.mxu0 0.0
    %1823 = vmatpush1.msra.mxu0 0.0
    %1824 = vmatprep.subr.mxu0 0.0
    %1825 = vmatpush1.msra.mxu0 0.0
    %1826 = vmatprep.subr.mxu0 0.0
    %1827 = vmatpush1.msra.mxu0 0.0
    %1828 = vmatprep.subr.mxu0 0.0
    %1829 = vmatpush1.msra.mxu0 0.0
    %1830 = vmatprep.subr.mxu0 0.0
    %1831 = vmatpush1.msra.mxu0 0.0
    %1832 = vmatprep.subr.mxu0 0.0
    %1833 = vmatpush1.msra.mxu0 0.0
    %1834 = vmatprep.subr.mxu0 0.0
    %1835 = vmatpush1.msra.mxu0 0.0
    %1836 = vmatprep.subr.mxu0 0.0
    %1837 = vmatpush1.msra.mxu0 0.0
    %1838 = vmatprep.subr.mxu0 0.0
    %1839 = vmatpush1.msra.mxu0 0.0
    %1840 = vmatprep.subr.mxu0 0.0
    %1841 = vmatpush1.msra.mxu0 0.0
    %1842 = vmatprep.subr.mxu0 0.0
    %1843 = vmatpush1.msra.mxu0 0.0
    %1844 = vmatprep.subr.mxu0 0.0
    %1845 = vmatpush1.msra.mxu0 0.0
    %1846 = vmatprep.subr.mxu0 0.0
    %1847 = vmatpush1.msra.mxu0 0.0
    %1848 = vmatprep.subr.mxu0 0.0
    %1849 = vmatpush1.msra.mxu0 0.0
    %1850 = vmatprep.subr.mxu0 0.0
    %1851 = vmatpush1.msra.mxu0 0.0
    %1852 = vmatprep.subr.mxu0 0.0
    %1853 = vmatpush1.msra.mxu0 0.0
    %1854 = vmatprep.subr.mxu0 0.0
    %1855 = vmatpush1.msra.mxu0 0.0
    %1856 = vmatprep.subr.mxu0 0.0
    %1857 = vmatpush1.msra.mxu0 0.0
    %1858 = vmatprep.subr.mxu0 0.0
    %1859 = vmatpush1.msra.mxu0 0.0
    %1860 = vmatprep.subr.mxu0 0.0
    %1861 = vmatpush1.msra.mxu0 0.0
    %1862 = vmatprep.subr.mxu0 0.0
    %1863 = vmatpush1.msra.mxu0 0.0
    %1864 = vmatprep.mubr.f32.mxu0 0.0
    %1865 = vmatmul.mubr.f32.gmra.mrb[0].mxu0 %v1795
    %v1866 = vpop.f32.mrb[0].mxu0
    %v1867 = vadd.f32 0.0, %v1866
    %v1868 = vpop.f32.mrb[0].mxu0
    %1869 = vmatprep.mubr.f32.mxu0 0.0
    %1870 = vmatmul.mubr.f32.gmra.mrb[0].mxu0 %v1798
    %v1871 = vpop.f32.mrb[0].mxu0
    %v1872 = vadd.f32 0.0, %v1871
    %v1873 = vpop.f32.mrb[0].mxu0
    %1874 = vdwg.mxu0
    %v1875 = vadd.f32 %v1462, %v1867
    %v1876 = vadd.f32 %v1463, %v1872
    %v1877 = vadd.f32 %v76, %v1875
    %v1878 = vadd.f32 %v77, %v1876
    %v1879 = vld [vmem:[%s8] sm:$0x1]
    %v1881 = vlaneseq
    %v1882 = vshrl.u32 %v1881, 7
    %v1883 = vsub.s32 0, %v1882
    %v1884 = vrot.slane %v1879, %v1883
    %v1886 = vadd.f32 %v1877, %v1884
    %v1887 = vadd.f32 %v1878, %v1884
    %v1888 = vld [vmem:[%s9] sm:$0x1]
    %v1889 = vld [vmem:[%s10] sm:$0x1]
    %v1890 = vsel %vm86, %v1886, 0.0
    %1891 = vadd.xlane.f32.xlu0 %v1890
    %v1892 = vpop.xlane.xlu0 %1891
    %v1893 = vsel %vm86, %v1887, 0.0
    %1894 = vadd.xlane.f32.xlu0 %v1893
    %v1895 = vpop.xlane.xlu0 %1894
    %v1896 = vmul.f32 %v1892, %v93
    %v1897 = vmul.f32 %v1895, %v93
    %v1898 = vsub.f32 %v1886, %v1896
    %v1899 = vsub.f32 %v1887, %v1897
    %v1900 = vmul.f32 %v1898, %v1898
    %v1901 = vmul.f32 %v1899, %v1899
    %v1902 = vsel %vm86, %v1900, 0.0
    %1903 = vadd.xlane.f32.xlu0 %v1902
    %v1904 = vpop.xlane.xlu0 %1903
    %v1905 = vsel %vm86, %v1901, 0.0
    %1906 = vadd.xlane.f32.xlu0 %v1905
    %v1907 = vpop.xlane.xlu0 %1906
    %v1908 = vmul.f32 %v1904, %v93
    %v1909 = vmul.f32 %v1907, %v93
    %v1910 = vadd.f32 %v1908, 1e-05
    %v1911 = vadd.f32 %v1909, 1e-05
    %v1912 = vrsqrt.pop %v1910
    %v1913 = vrsqrt.pop %v1911
    %v1914 = vmul.f32 %v1898, %v1912
    %v1915 = vmul.f32 %v1899, %v1913
    %v1917 = vlaneseq
    %v1918 = vshrl.u32 %v1917, 7
    %v1919 = vsub.s32 0, %v1918
    %v1920 = vrot.slane %v1888, %v1919
    %v1922 = vmul.f32 %v1914, %v1920
    %v1923 = vmul.f32 %v1915, %v1920
    %v1925 = vlaneseq
    %v1926 = vshrl.u32 %v1925, 7
    %v1927 = vsub.s32 0, %v1926
    %v1928 = vrot.slane %v1889, %v1927
    %v1930 = vadd.f32 %v1922, %v1928
    %v1931 = vadd.f32 %v1923, %v1928
    %v1932 = vld [vmem:[%s11] sm:$0xff]
    %v1933 = vld [vmem:[%s11 + $0x8] sm:$0xff]
    %v1934 = vld [vmem:[%s11 + $0x10] sm:$0xff]
    %v1935 = vld [vmem:[%s11 + $0x18] sm:$0xff]
    %v1936 = vld [vmem:[%s12] sm:$0x1]
    %v1938 = vlaneseq
    %v1939 = vshrl.u32 %v1938, 7
    %v1940 = vsub.s32 0, %v1939
    %v1941 = vrot.slane %v1936, %v1940
    %v1944 = vsel %vm86, %v1930, 0
    %v1947 = vsel %vm86, %v1931, 0
    %1949 = vmatprep.subr.mxu0 0.0
    %1950 = vmatpush1.msra.mxu0 %v1932
    %1951 = vmatprep.subr.mxu0 0.0
    %1952 = vmatpush1.msra.mxu0 %v1933
    %1953 = vmatprep.subr.mxu0 0.0
    %1954 = vmatpush1.msra.mxu0 %v1934
    %1955 = vmatprep.subr.mxu0 0.0
    %1956 = vmatpush1.msra.mxu0 %v1935
    %1957 = vmatprep.subr.mxu0 0.0
    %1958 = vmatpush1.msra.mxu0 0.0
    %1959 = vmatprep.subr.mxu0 0.0
    %1960 = vmatpush1.msra.mxu0 0.0
    %1961 = vmatprep.subr.mxu0 0.0
    %1962 = vmatpush1.msra.mxu0 0.0
    %1963 = vmatprep.subr.mxu0 0.0
    %1964 = vmatpush1.msra.mxu0 0.0
    %1965 = vmatprep.subr.mxu0 0.0
    %1966 = vmatpush1.msra.mxu0 0.0
    %1967 = vmatprep.subr.mxu0 0.0
    %1968 = vmatpush1.msra.mxu0 0.0
    %1969 = vmatprep.subr.mxu0 0.0
    %1970 = vmatpush1.msra.mxu0 0.0
    %1971 = vmatprep.subr.mxu0 0.0
    %1972 = vmatpush1.msra.mxu0 0.0
    %1973 = vmatprep.subr.mxu0 0.0
    %1974 = vmatpush1.msra.mxu0 0.0
    %1975 = vmatprep.subr.mxu0 0.0
    %1976 = vmatpush1.msra.mxu0 0.0
    %1977 = vmatprep.subr.mxu0 0.0
    %1978 = vmatpush1.msra.mxu0 0.0
    %1979 = vmatprep.subr.mxu0 0.0
    %1980 = vmatpush1.msra.mxu0 0.0
    %1981 = vmatprep.subr.mxu0 0.0
    %1982 = vmatpush1.msra.mxu0 0.0
    %1983 = vmatprep.subr.mxu0 0.0
    %1984 = vmatpush1.msra.mxu0 0.0
    %1985 = vmatprep.subr.mxu0 0.0
    %1986 = vmatpush1.msra.mxu0 0.0
    %1987 = vmatprep.subr.mxu0 0.0
    %1988 = vmatpush1.msra.mxu0 0.0
    %1989 = vmatprep.subr.mxu0 0.0
    %1990 = vmatpush1.msra.mxu0 0.0
    %1991 = vmatprep.subr.mxu0 0.0
    %1992 = vmatpush1.msra.mxu0 0.0
    %1993 = vmatprep.subr.mxu0 0.0
    %1994 = vmatpush1.msra.mxu0 0.0
    %1995 = vmatprep.subr.mxu0 0.0
    %1996 = vmatpush1.msra.mxu0 0.0
    %1997 = vmatprep.subr.mxu0 0.0
    %1998 = vmatpush1.msra.mxu0 0.0
    %1999 = vmatprep.subr.mxu0 0.0
    %2000 = vmatpush1.msra.mxu0 0.0
    %2001 = vmatprep.subr.mxu0 0.0
    %2002 = vmatpush1.msra.mxu0 0.0
    %2003 = vmatprep.subr.mxu0 0.0
    %2004 = vmatpush1.msra.mxu0 0.0
    %2005 = vmatprep.subr.mxu0 0.0
    %2006 = vmatpush1.msra.mxu0 0.0
    %2007 = vmatprep.subr.mxu0 0.0
    %2008 = vmatpush1.msra.mxu0 0.0
    %2009 = vmatprep.subr.mxu0 0.0
    %2010 = vmatpush1.msra.mxu0 0.0
    %2011 = vmatprep.subr.mxu0 0.0
    %2012 = vmatpush1.msra.mxu0 0.0
    %2013 = vmatprep.mubr.f32.mxu0 0.0
    %2014 = vmatmul.mubr.f32.gmra.mrb[0].mxu0 %v1944
    %v2015 = vpop.f32.mrb[0].mxu0
    %v2016 = vadd.f32 %v1941, %v2015
    %v2017 = vpop.f32.mrb[0].mxu0
    %2018 = vmatprep.mubr.f32.mxu0 0.0
    %2019 = vmatmul.mubr.f32.gmra.mrb[0].mxu0 %v1947
    %v2020 = vpop.f32.mrb[0].mxu0
    %v2021 = vadd.f32 %v1941, %v2020
    %v2022 = vpop.f32.mrb[0].mxu0
    %2023 = vdwg.mxu0
    %v2024 = vmul.f32 %v2016, 1.702
    %v2025 = vmul.f32 %v2021, 1.702
    %v2026 = vxor.u32 %v2024, 2147483648
    %v2027 = vxor.u32 %v2025, 2147483648
    %v2028 = vmul.f32 %v2026, 1.442695
    %v2029 = vpow.pop %v2028
    %v2030 = vmul.f32 %v2027, 1.442695
    %v2031 = vpow.pop %v2030
    %v2032 = vadd.f32 %v2029, 1.0
    %v2033 = vadd.f32 %v2031, 1.0
    %v2034 = vrcp.pop %v2032
    %v2035 = vmul.f32 1.0, %v2034
    %v2036 = vrcp.pop %v2033
    %v2037 = vmul.f32 1.0, %v2036
    %v2038 = vmul.f32 %v2016, %v2035
    %v2039 = vmul.f32 %v2021, %v2037
    %v2040 = vld [vmem:[%s13] sm:$0xff]
    %v2041 = vld [vmem:[%s13 + $0x8] sm:$0xff]
    %v2042 = vld [vmem:[%s13 + $0x10] sm:$0xff]
    %v2043 = vld [vmem:[%s13 + $0x18] sm:$0xff]
    %v2044 = vld [vmem:[%s13 + $0x20] sm:$0xff]
    %v2045 = vld [vmem:[%s13 + $0x28] sm:$0xff]
    %v2046 = vld [vmem:[%s13 + $0x30] sm:$0xff]
    %v2047 = vld [vmem:[%s13 + $0x38] sm:$0xff]
    %v2048 = vld [vmem:[%s13 + $0x40] sm:$0xff]
    %v2049 = vld [vmem:[%s13 + $0x48] sm:$0xff]
    %v2050 = vld [vmem:[%s13 + $0x50] sm:$0xff]
    %v2051 = vld [vmem:[%s13 + $0x58] sm:$0xff]
    %v2052 = vld [vmem:[%s13 + $0x60] sm:$0xff]
    %v2053 = vld [vmem:[%s13 + $0x68] sm:$0xff]
    %v2054 = vld [vmem:[%s13 + $0x70] sm:$0xff]
    %v2055 = vld [vmem:[%s13 + $0x78] sm:$0xff]
    %v2056 = vld [vmem:[%s14] sm:$0x1]
    %v2058 = vlaneseq
    %v2059 = vshrl.u32 %v2058, 7
    %v2060 = vsub.s32 0, %v2059
    %v2061 = vrot.slane %v2056, %v2060
    %2063 = vmatprep.subr.mxu0 0.0
    %2064 = vmatpush1.msra.mxu0 %v2040
    %2065 = vmatprep.subr.mxu0 0.0
    %2066 = vmatpush1.msra.mxu0 %v2041
    %2067 = vmatprep.subr.mxu0 0.0
    %2068 = vmatpush1.msra.mxu0 %v2042
    %2069 = vmatprep.subr.mxu0 0.0
    %2070 = vmatpush1.msra.mxu0 %v2043
    %2071 = vmatprep.subr.mxu0 0.0
    %2072 = vmatpush1.msra.mxu0 %v2044
    %2073 = vmatprep.subr.mxu0 0.0
    %2074 = vmatpush1.msra.mxu0 %v2045
    %2075 = vmatprep.subr.mxu0 0.0
    %2076 = vmatpush1.msra.mxu0 %v2046
    %2077 = vmatprep.subr.mxu0 0.0
    %2078 = vmatpush1.msra.mxu0 %v2047
    %2079 = vmatprep.subr.mxu0 0.0
    %2080 = vmatpush1.msra.mxu0 %v2048
    %2081 = vmatprep.subr.mxu0 0.0
    %2082 = vmatpush1.msra.mxu0 %v2049
    %2083 = vmatprep.subr.mxu0 0.0
    %2084 = vmatpush1.msra.mxu0 %v2050
    %2085 = vmatprep.subr.mxu0 0.0
    %2086 = vmatpush1.msra.mxu0 %v2051
    %2087 = vmatprep.subr.mxu0 0.0
    %2088 = vmatpush1.msra.mxu0 %v2052
    %2089 = vmatprep.subr.mxu0 0.0
    %2090 = vmatpush1.msra.mxu0 %v2053
    %2091 = vmatprep.subr.mxu0 0.0
    %2092 = vmatpush1.msra.mxu0 %v2054
    %2093 = vmatprep.subr.mxu0 0.0
    %2094 = vmatpush1.msra.mxu0 %v2055
    %2095 = vmatprep.subr.mxu0 0.0
    %2096 = vmatpush1.msra.mxu0 0.0
    %2097 = vmatprep.subr.mxu0 0.0
    %2098 = vmatpush1.msra.mxu0 0.0
    %2099 = vmatprep.subr.mxu0 0.0
    %2100 = vmatpush1.msra.mxu0 0.0
    %2101 = vmatprep.subr.mxu0 0.0
    %2102 = vmatpush1.msra.mxu0 0.0
    %2103 = vmatprep.subr.mxu0 0.0
    %2104 = vmatpush1.msra.mxu0 0.0
    %2105 = vmatprep.subr.mxu0 0.0
    %2106 = vmatpush1.msra.mxu0 0.0
    %2107 = vmatprep.subr.mxu0 0.0
    %2108 = vmatpush1.msra.mxu0 0.0
    %2109 = vmatprep.subr.mxu0 0.0
    %2110 = vmatpush1.msra.mxu0 0.0
    %2111 = vmatprep.subr.mxu0 0.0
    %2112 = vmatpush1.msra.mxu0 0.0
    %2113 = vmatprep.subr.mxu0 0.0
    %2114 = vmatpush1.msra.mxu0 0.0
    %2115 = vmatprep.subr.mxu0 0.0
    %2116 = vmatpush1.msra.mxu0 0.0
    %2117 = vmatprep.subr.mxu0 0.0
    %2118 = vmatpush1.msra.mxu0 0.0
    %2119 = vmatprep.subr.mxu0 0.0
    %2120 = vmatpush1.msra.mxu0 0.0
    %2121 = vmatprep.subr.mxu0 0.0
    %2122 = vmatpush1.msra.mxu0 0.0
    %2123 = vmatprep.subr.mxu0 0.0
    %2124 = vmatpush1.msra.mxu0 0.0
    %2125 = vmatprep.subr.mxu0 0.0
    %2126 = vmatpush1.msra.mxu0 0.0
    %2127 = vmatprep.mubr.f32.mxu0 0.0
    %2128 = vmatmul.mubr.f32.gmra.mrb[0].mxu0 %v2038
    %v2129 = vpop.f32.mrb[0].mxu0
    %v2130 = vadd.f32 %v2061, %v2129
    %v2131 = vpop.f32.mrb[0].mxu0
    %2132 = vmatprep.mubr.f32.mxu0 0.0
    %2133 = vmatmul.mubr.f32.gmra.mrb[0].mxu0 %v2039
    %v2134 = vpop.f32.mrb[0].mxu0
    %v2135 = vadd.f32 %v2061, %v2134
    %v2136 = vpop.f32.mrb[0].mxu0
    %2137 = vdwg.mxu0
    %v2138 = vadd.f32 %v1886, %v2130
    %v2139 = vadd.f32 %v1887, %v2135
    %s2140 = scalar_lea.vmem %s3, 1
    %v2141 = vld [vmem:[%s2140] sm:$0x1]
    %s2142 = scalar_lea.vmem %s4, 1
    %v2143 = vld [vmem:[%s2142] sm:$0x1]
    %v2144 = vsel %vm86, %v2138, 0.0
    %2145 = vadd.xlane.f32.xlu0 %v2144
    %v2146 = vpop.xlane.xlu0 %2145
    %v2147 = vsel %vm86, %v2139, 0.0
    %2148 = vadd.xlane.f32.xlu0 %v2147
    %v2149 = vpop.xlane.xlu0 %2148
    %v2150 = vmul.f32 %v2146, %v93
    %v2151 = vmul.f32 %v2149, %v93
    %v2152 = vsub.f32 %v2138, %v2150
    %v2153 = vsub.f32 %v2139, %v2151
    %v2154 = vmul.f32 %v2152, %v2152
    %v2155 = vmul.f32 %v2153, %v2153
    %v2156 = vsel %vm86, %v2154, 0.0
    %2157 = vadd.xlane.f32.xlu0 %v2156
    %v2158 = vpop.xlane.xlu0 %2157
    %v2159 = vsel %vm86, %v2155, 0.0
    %2160 = vadd.xlane.f32.xlu0 %v2159
    %v2161 = vpop.xlane.xlu0 %2160
    %v2162 = vmul.f32 %v2158, %v93
    %v2163 = vmul.f32 %v2161, %v93
    %v2164 = vadd.f32 %v2162, 1e-05
    %v2165 = vadd.f32 %v2163, 1e-05
    %v2166 = vrsqrt.pop %v2164
    %v2167 = vrsqrt.pop %v2165
    %v2168 = vmul.f32 %v2152, %v2166
    %v2169 = vmul.f32 %v2153, %v2167
    %v2171 = vlaneseq
    %v2172 = vshrl.u32 %v2171, 7
    %v2173 = vsub.s32 0, %v2172
    %v2174 = vrot.slane %v2141, %v2173
    %v2176 = vmul.f32 %v2168, %v2174
    %v2177 = vmul.f32 %v2169, %v2174
    %v2179 = vlaneseq
    %v2180 = vshrl.u32 %v2179, 7
    %v2181 = vsub.s32 0, %v2180
    %v2182 = vrot.slane %v2143, %v2181
    %v2184 = vadd.f32 %v2176, %v2182
    %v2185 = vadd.f32 %v2177, %v2182
    %s2186 = scalar_lea.vmem %s5, 32
    %v2187 = vld [vmem:[%s2186] sm:$0xff]
    %v2188 = vld [vmem:[%s2186 + $0x8] sm:$0xff]
    %v2189 = vld [vmem:[%s2186 + $0x10] sm:$0xff]
    %v2190 = vld [vmem:[%s2186 + $0x18] sm:$0xff]
    %s2191 = scalar_lea.vmem %s6, 1
    %v2192 = vld [vmem:[%s2191] sm:$0x1]
    %v2194 = vlaneseq
    %v2195 = vshrl.u32 %v2194, 7
    %v2196 = vsub.s32 0, %v2195
    %v2197 = vrot.slane %v2192, %v2196
    %v2200 = vsel %vm86, %v2184, 0
    %v2203 = vsel %vm86, %v2185, 0
    %2205 = vmatprep.subr.mxu0 0.0
    %2206 = vmatpush1.msra.mxu0 %v2187
    %2207 = vmatprep.subr.mxu0 0.0
    %2208 = vmatpush1.msra.mxu0 %v2188
    %2209 = vmatprep.subr.mxu0 0.0
    %2210 = vmatpush1.msra.mxu0 %v2189
    %2211 = vmatprep.subr.mxu0 0.0
    %2212 = vmatpush1.msra.mxu0 %v2190
    %2213 = vmatprep.subr.mxu0 0.0
    %2214 = vmatpush1.msra.mxu0 0.0
    %2215 = vmatprep.subr.mxu0 0.0
    %2216 = vmatpush1.msra.mxu0 0.0
    %2217 = vmatprep.subr.mxu0 0.0
    %2218 = vmatpush1.msra.mxu0 0.0
    %2219 = vmatprep.subr.mxu0 0.0
    %2220 = vmatpush1.msra.mxu0 0.0
    %2221 = vmatprep.subr.mxu0 0.0
    %2222 = vmatpush1.msra.mxu0 0.0
    %2223 = vmatprep.subr.mxu0 0.0
    %2224 = vmatpush1.msra.mxu0 0.0
    %2225 = vmatprep.subr.mxu0 0.0
    %2226 = vmatpush1.msra.mxu0 0.0
    %2227 = vmatprep.subr.mxu0 0.0
    %2228 = vmatpush1.msra.mxu0 0.0
    %2229 = vmatprep.subr.mxu0 0.0
    %2230 = vmatpush1.msra.mxu0 0.0
    %2231 = vmatprep.subr.mxu0 0.0
    %2232 = vmatpush1.msra.mxu0 0.0
    %2233 = vmatprep.subr.mxu0 0.0
    %2234 = vmatpush1.msra.mxu0 0.0
    %2235 = vmatprep.subr.mxu0 0.0
    %2236 = vmatpush1.msra.mxu0 0.0
    %2237 = vmatprep.subr.mxu0 0.0
    %2238 = vmatpush1.msra.mxu0 0.0
    %2239 = vmatprep.subr.mxu0 0.0
    %2240 = vmatpush1.msra.mxu0 0.0
    %2241 = vmatprep.subr.mxu0 0.0
    %2242 = vmatpush1.msra.mxu0 0.0
    %2243 = vmatprep.subr.mxu0 0.0
    %2244 = vmatpush1.msra.mxu0 0.0
    %2245 = vmatprep.subr.mxu0 0.0
    %2246 = vmatpush1.msra.mxu0 0.0
    %2247 = vmatprep.subr.mxu0 0.0
    %2248 = vmatpush1.msra.mxu0 0.0
    %2249 = vmatprep.subr.mxu0 0.0
    %2250 = vmatpush1.msra.mxu0 0.0
    %2251 = vmatprep.subr.mxu0 0.0
    %2252 = vmatpush1.msra.mxu0 0.0
    %2253 = vmatprep.subr.mxu0 0.0
    %2254 = vmatpush1.msra.mxu0 0.0
    %2255 = vmatprep.subr.mxu0 0.0
    %2256 = vmatpush1.msra.mxu0 0.0
    %2257 = vmatprep.subr.mxu0 0.0
    %2258 = vmatpush1.msra.mxu0 0.0
    %2259 = vmatprep.subr.mxu0 0.0
    %2260 = vmatpush1.msra.mxu0 0.0
    %2261 = vmatprep.subr.mxu0 0.0
    %2262 = vmatpush1.msra.mxu0 0.0
    %2263 = vmatprep.subr.mxu0 0.0
    %2264 = vmatpush1.msra.mxu0 0.0
    %2265 = vmatprep.subr.mxu0 0.0
    %2266 = vmatpush1.msra.mxu0 0.0
    %2267 = vmatprep.subr.mxu0 0.0
    %2268 = vmatpush1.msra.mxu0 0.0
    %2269 = vmatprep.mubr.f32.mxu0 0.0
    %2270 = vmatmul.mubr.f32.gmra.mrb[0].mxu0 %v2200
    %v2271 = vpop.f32.mrb[0].mxu0
    %v2272 = vadd.f32 %v2197, %v2271
    %v2273 = vpop.f32.mrb[0].mxu0
    %2274 = vmatprep.mubr.f32.mxu0 0.0
    %2275 = vmatmul.mubr.f32.gmra.mrb[0].mxu0 %v2203
    %v2276 = vpop.f32.mrb[0].mxu0
    %v2277 = vadd.f32 %v2197, %v2276
    %v2278 = vpop.f32.mrb[0].mxu0
    %2279 = vdwg.mxu0
    %v2280 = vmul.f32 %v2272, 0.35355338
    %v2281 = vmul.f32 %v2277, 0.35355338
    %s2282 = scalar_lea.vmem %s7, 32
    %v2283 = vld [vmem:[%s2282] sm:$0xff]
    %v2284 = vld [vmem:[%s2282 + $0x8] sm:$0xff]
    %v2285 = vld [vmem:[%s2282 + $0x10] sm:$0xff]
    %v2286 = vld [vmem:[%s2282 + $0x18] sm:$0xff]
    %2288 = vrot.lane.b32.xlu0 %v2272, 96
    %v2289 = vpop.permute.xlu0 %2288
    %v2291 = vsel %vm231, %v2280, 0
    %v2293 = vsel %vm231, %v2289, 0
    %2295 = vmatprep.subr.mxu0 0.0
    %2296 = vmatpush1.xpose.msra.mxu0 %v2293
    %2297 = vmatprep.subr.mxu0 0.0
    %2298 = vmatpush1.xpose.msra.mxu0 0.0
    %2299 = vmatprep.subr.mxu0 0.0
    %2300 = vmatpush1.xpose.msra.mxu0 0.0
    %2301 = vmatprep.subr.mxu0 0.0
    %2302 = vmatpush1.xpose.msra.mxu0 0.0
    %2303 = vmatprep.subr.mxu0 0.0
    %2304 = vmatpush1.xpose.msra.mxu0 0.0
    %2305 = vmatprep.subr.mxu0 0.0
    %2306 = vmatpush1.xpose.msra.mxu0 0.0
    %2307 = vmatprep.subr.mxu0 0.0
    %2308 = vmatpush1.xpose.msra.mxu0 0.0
    %2309 = vmatprep.subr.mxu0 0.0
    %2310 = vmatpush1.xpose.msra.mxu0 0.0
    %2311 = vmatprep.subr.mxu0 0.0
    %2312 = vmatpush1.xpose.msra.mxu0 0.0
    %2313 = vmatprep.subr.mxu0 0.0
    %2314 = vmatpush1.xpose.msra.mxu0 0.0
    %2315 = vmatprep.subr.mxu0 0.0
    %2316 = vmatpush1.xpose.msra.mxu0 0.0
    %2317 = vmatprep.subr.mxu0 0.0
    %2318 = vmatpush1.xpose.msra.mxu0 0.0
    %2319 = vmatprep.subr.mxu0 0.0
    %2320 = vmatpush1.xpose.msra.mxu0 0.0
    %2321 = vmatprep.subr.mxu0 0.0
    %2322 = vmatpush1.xpose.msra.mxu0 0.0
    %2323 = vmatprep.subr.mxu0 0.0
    %2324 = vmatpush1.xpose.msra.mxu0 0.0
    %2325 = vmatprep.subr.mxu0 0.0
    %2326 = vmatpush1.xpose.msra.mxu0 0.0
    %2327 = vmatprep.subr.mxu0 0.0
    %2328 = vmatpush1.xpose.msra.mxu0 0.0
    %2329 = vmatprep.subr.mxu0 0.0
    %2330 = vmatpush1.xpose.msra.mxu0 0.0
    %2331 = vmatprep.subr.mxu0 0.0
    %2332 = vmatpush1.xpose.msra.mxu0 0.0
    %2333 = vmatprep.subr.mxu0 0.0
    %2334 = vmatpush1.xpose.msra.mxu0 0.0
    %2335 = vmatprep.subr.mxu0 0.0
    %2336 = vmatpush1.xpose.msra.mxu0 0.0
    %2337 = vmatprep.subr.mxu0 0.0
    %2338 = vmatpush1.xpose.msra.mxu0 0.0
    %2339 = vmatprep.subr.mxu0 0.0
    %2340 = vmatpush1.xpose.msra.mxu0 0.0
    %2341 = vmatprep.subr.mxu0 0.0
    %2342 = vmatpush1.xpose.msra.mxu0 0.0
    %2343 = vmatprep.subr.mxu0 0.0
    %2344 = vmatpush1.xpose.msra.mxu0 0.0
    %2345 = vmatprep.subr.mxu0 0.0
    %2346 = vmatpush1.xpose.msra.mxu0 0.0
    %2347 = vmatprep.subr.mxu0 0.0
    %2348 = vmatpush1.xpose.msra.mxu0 0.0
    %2349 = vmatprep.subr.mxu0 0.0
    %2350 = vmatpush1.xpose.msra.mxu0 0.0
    %2351 = vmatprep.subr.mxu0 0.0
    %2352 = vmatpush1.xpose.msra.mxu0 0.0
    %2353 = vmatprep.subr.mxu0 0.0
    %2354 = vmatpush1.xpose.msra.mxu0 0.0
    %2355 = vmatprep.subr.mxu0 0.0
    %2356 = vmatpush1.xpose.msra.mxu0 0.0
    %2357 = vmatprep.subr.mxu0 0.0
    %2358 = vmatpush1.xpose.msra.mxu0 0.0
    %2359 = vmatprep.mubr.f32.mxu0 0.0
    %2360 = vmatmul.mubr.f32.gmra.mrb[0].mxu0 %v2291
    %v2361 = vpop.f32.mrb[0].mxu0
    %v2362 = vadd.f32 %v83, %v2361
    %v2363 = vpop.f32.mrb[0].mxu0
    %2364 = vdwg.mxu0
    %2366 = vrot.lane.b32.xlu0 %v2277, 96
    %v2367 = vpop.permute.xlu0 %2366
    %v2369 = vsel %vm231, %v2281, 0
    %v2371 = vsel %vm231, %v2367, 0
    %2373 = vmatprep.subr.mxu0 0.0
    %2374 = vmatpush1.xpose.msra.mxu0 %v2371
    %2375 = vmatprep.subr.mxu0 0.0
    %2376 = vmatpush1.xpose.msra.mxu0 0.0
    %2377 = vmatprep.subr.mxu0 0.0
    %2378 = vmatpush1.xpose.msra.mxu0 0.0
    %2379 = vmatprep.subr.mxu0 0.0
    %2380 = vmatpush1.xpose.msra.mxu0 0.0
    %2381 = vmatprep.subr.mxu0 0.0
    %2382 = vmatpush1.xpose.msra.mxu0 0.0
    %2383 = vmatprep.subr.mxu0 0.0
    %2384 = vmatpush1.xpose.msra.mxu0 0.0
    %2385 = vmatprep.subr.mxu0 0.0
    %2386 = vmatpush1.xpose.msra.mxu0 0.0
    %2387 = vmatprep.subr.mxu0 0.0
    %2388 = vmatpush1.xpose.msra.mxu0 0.0
    %2389 = vmatprep.subr.mxu0 0.0
    %2390 = vmatpush1.xpose.msra.mxu0 0.0
    %2391 = vmatprep.subr.mxu0 0.0
    %2392 = vmatpush1.xpose.msra.mxu0 0.0
    %2393 = vmatprep.subr.mxu0 0.0
    %2394 = vmatpush1.xpose.msra.mxu0 0.0
    %2395 = vmatprep.subr.mxu0 0.0
    %2396 = vmatpush1.xpose.msra.mxu0 0.0
    %2397 = vmatprep.subr.mxu0 0.0
    %2398 = vmatpush1.xpose.msra.mxu0 0.0
    %2399 = vmatprep.subr.mxu0 0.0
    %2400 = vmatpush1.xpose.msra.mxu0 0.0
    %2401 = vmatprep.subr.mxu0 0.0
    %2402 = vmatpush1.xpose.msra.mxu0 0.0
    %2403 = vmatprep.subr.mxu0 0.0
    %2404 = vmatpush1.xpose.msra.mxu0 0.0
    %2405 = vmatprep.subr.mxu0 0.0
    %2406 = vmatpush1.xpose.msra.mxu0 0.0
    %2407 = vmatprep.subr.mxu0 0.0
    %2408 = vmatpush1.xpose.msra.mxu0 0.0
    %2409 = vmatprep.subr.mxu0 0.0
    %2410 = vmatpush1.xpose.msra.mxu0 0.0
    %2411 = vmatprep.subr.mxu0 0.0
    %2412 = vmatpush1.xpose.msra.mxu0 0.0
    %2413 = vmatprep.subr.mxu0 0.0
    %2414 = vmatpush1.xpose.msra.mxu0 0.0
    %2415 = vmatprep.subr.mxu0 0.0
    %2416 = vmatpush1.xpose.msra.mxu0 0.0
    %2417 = vmatprep.subr.mxu0 0.0
    %2418 = vmatpush1.xpose.msra.mxu0 0.0
    %2419 = vmatprep.subr.mxu0 0.0
    %2420 = vmatpush1.xpose.msra.mxu0 0.0
    %2421 = vmatprep.subr.mxu0 0.0
    %2422 = vmatpush1.xpose.msra.mxu0 0.0
    %2423 = vmatprep.subr.mxu0 0.0
    %2424 = vmatpush1.xpose.msra.mxu0 0.0
    %2425 = vmatprep.subr.mxu0 0.0
    %2426 = vmatpush1.xpose.msra.mxu0 0.0
    %2427 = vmatprep.subr.mxu0 0.0
    %2428 = vmatpush1.xpose.msra.mxu0 0.0
    %2429 = vmatprep.subr.mxu0 0.0
    %2430 = vmatpush1.xpose.msra.mxu0 0.0
    %2431 = vmatprep.subr.mxu0 0.0
    %2432 = vmatpush1.xpose.msra.mxu0 0.0
    %2433 = vmatprep.subr.mxu0 0.0
    %2434 = vmatpush1.xpose.msra.mxu0 0.0
    %2435 = vmatprep.subr.mxu0 0.0
    %2436 = vmatpush1.xpose.msra.mxu0 0.0
    %2437 = vmatprep.mubr.f32.mxu0 0.0
    %2438 = vmatmul.mubr.f32.gmra.mrb[0].mxu0 %v2369
    %v2439 = vpop.f32.mrb[0].mxu0
    %v2440 = vadd.f32 %v83, %v2439
    %v2441 = vpop.f32.mrb[0].mxu0
    %2442 = vdwg.mxu0
    %v2443 = vsel %vm231, %v2362, -inf
    %2444 = vmax.xlane.f32.xlu0 %v2443
    %v2445 = vpop.xlane.xlu0 %2444
    %v2446 = vsel %vm231, %v2440, -inf
    %2447 = vmax.xlane.f32.xlu0 %v2446
    %v2448 = vpop.xlane.xlu0 %2447
    %v2449 = vsub.f32 %v2362, %v2445
    %v2450 = vsub.f32 %v2440, %v2448
    %v2451 = vmul.f32 %v2449, 1.442695
    %v2452 = vpow.pop %v2451
    %v2453 = vmul.f32 %v2450, 1.442695
    %v2454 = vpow.pop %v2453
    %v2455 = vsel %vm231, %v2452, 0.0
    %2456 = vadd.xlane.f32.xlu0 %v2455
    %v2457 = vpop.xlane.xlu0 %2456
    %v2458 = vsel %vm231, %v2454, 0.0
    %2459 = vadd.xlane.f32.xlu0 %v2458
    %v2460 = vpop.xlane.xlu0 %2459
    %v2461 = vrcp.pop %v2457
    %v2462 = vrcp.pop %v2460
    %v2463 = vmul.f32 %v2452, %v2461
    %v2464 = vmul.f32 %v2454, %v2462
    %2465 = vrot.lane.b32.xlu0 %v2272, 64
    %v2466 = vpop.permute.xlu0 %2465
    %v2469 = vsel %vm231, %v2463, 0
    %2471 = vmatprep.subr.mxu0 0.0
    %2472 = vmatpush1.msra.mxu0 %v2466
    %2473 = vmatprep.subr.mxu0 0.0
    %2474 = vmatpush1.msra.mxu0 0.0
    %2475 = vmatprep.subr.mxu0 0.0
    %2476 = vmatpush1.msra.mxu0 0.0
    %2477 = vmatprep.subr.mxu0 0.0
    %2478 = vmatpush1.msra.mxu0 0.0
    %2479 = vmatprep.subr.mxu0 0.0
    %2480 = vmatpush1.msra.mxu0 0.0
    %2481 = vmatprep.subr.mxu0 0.0
    %2482 = vmatpush1.msra.mxu0 0.0
    %2483 = vmatprep.subr.mxu0 0.0
    %2484 = vmatpush1.msra.mxu0 0.0
    %2485 = vmatprep.subr.mxu0 0.0
    %2486 = vmatpush1.msra.mxu0 0.0
    %2487 = vmatprep.subr.mxu0 0.0
    %2488 = vmatpush1.msra.mxu0 0.0
    %2489 = vmatprep.subr.mxu0 0.0
    %2490 = vmatpush1.msra.mxu0 0.0
    %2491 = vmatprep.subr.mxu0 0.0
    %2492 = vmatpush1.msra.mxu0 0.0
    %2493 = vmatprep.subr.mxu0 0.0
    %2494 = vmatpush1.msra.mxu0 0.0
    %2495 = vmatprep.subr.mxu0 0.0
    %2496 = vmatpush1.msra.mxu0 0.0
    %2497 = vmatprep.subr.mxu0 0.0
    %2498 = vmatpush1.msra.mxu0 0.0
    %2499 = vmatprep.subr.mxu0 0.0
    %2500 = vmatpush1.msra.mxu0 0.0
    %2501 = vmatprep.subr.mxu0 0.0
    %2502 = vmatpush1.msra.mxu0 0.0
    %2503 = vmatprep.subr.mxu0 0.0
    %2504 = vmatpush1.msra.mxu0 0.0
    %2505 = vmatprep.subr.mxu0 0.0
    %2506 = vmatpush1.msra.mxu0 0.0
    %2507 = vmatprep.subr.mxu0 0.0
    %2508 = vmatpush1.msra.mxu0 0.0
    %2509 = vmatprep.subr.mxu0 0.0
    %2510 = vmatpush1.msra.mxu0 0.0
    %2511 = vmatprep.subr.mxu0 0.0
    %2512 = vmatpush1.msra.mxu0 0.0
    %2513 = vmatprep.subr.mxu0 0.0
    %2514 = vmatpush1.msra.mxu0 0.0
    %2515 = vmatprep.subr.mxu0 0.0
    %2516 = vmatpush1.msra.mxu0 0.0
    %2517 = vmatprep.subr.mxu0 0.0
    %2518 = vmatpush1.msra.mxu0 0.0
    %2519 = vmatprep.subr.mxu0 0.0
    %2520 = vmatpush1.msra.mxu0 0.0
    %2521 = vmatprep.subr.mxu0 0.0
    %2522 = vmatpush1.msra.mxu0 0.0
    %2523 = vmatprep.subr.mxu0 0.0
    %2524 = vmatpush1.msra.mxu0 0.0
    %2525 = vmatprep.subr.mxu0 0.0
    %2526 = vmatpush1.msra.mxu0 0.0
    %2527 = vmatprep.subr.mxu0 0.0
    %2528 = vmatpush1.msra.mxu0 0.0
    %2529 = vmatprep.subr.mxu0 0.0
    %2530 = vmatpush1.msra.mxu0 0.0
    %2531 = vmatprep.subr.mxu0 0.0
    %2532 = vmatpush1.msra.mxu0 0.0
    %2533 = vmatprep.subr.mxu0 0.0
    %2534 = vmatpush1.msra.mxu0 0.0
    %2535 = vmatprep.mubr.f32.mxu0 0.0
    %2536 = vmatmul.mubr.f32.gmra.mrb[0].mxu0 %v2469
    %v2537 = vpop.f32.mrb[0].mxu0
    %v2538 = vadd.f32 0.0, %v2537
    %v2539 = vpop.f32.mrb[0].mxu0
    %2540 = vdwg.mxu0
    %2541 = vrot.lane.b32.xlu0 %v2277, 64
    %v2542 = vpop.permute.xlu0 %2541
    %v2545 = vsel %vm231, %v2464, 0
    %2547 = vmatprep.subr.mxu0 0.0
    %2548 = vmatpush1.msra.mxu0 %v2542
    %2549 = vmatprep.subr.mxu0 0.0
    %2550 = vmatpush1.msra.mxu0 0.0
    %2551 = vmatprep.subr.mxu0 0.0
    %2552 = vmatpush1.msra.mxu0 0.0
    %2553 = vmatprep.subr.mxu0 0.0
    %2554 = vmatpush1.msra.mxu0 0.0
    %2555 = vmatprep.subr.mxu0 0.0
    %2556 = vmatpush1.msra.mxu0 0.0
    %2557 = vmatprep.subr.mxu0 0.0
    %2558 = vmatpush1.msra.mxu0 0.0
    %2559 = vmatprep.subr.mxu0 0.0
    %2560 = vmatpush1.msra.mxu0 0.0
    %2561 = vmatprep.subr.mxu0 0.0
    %2562 = vmatpush1.msra.mxu0 0.0
    %2563 = vmatprep.subr.mxu0 0.0
    %2564 = vmatpush1.msra.mxu0 0.0
    %2565 = vmatprep.subr.mxu0 0.0
    %2566 = vmatpush1.msra.mxu0 0.0
    %2567 = vmatprep.subr.mxu0 0.0
    %2568 = vmatpush1.msra.mxu0 0.0
    %2569 = vmatprep.subr.mxu0 0.0
    %2570 = vmatpush1.msra.mxu0 0.0
    %2571 = vmatprep.subr.mxu0 0.0
    %2572 = vmatpush1.msra.mxu0 0.0
    %2573 = vmatprep.subr.mxu0 0.0
    %2574 = vmatpush1.msra.mxu0 0.0
    %2575 = vmatprep.subr.mxu0 0.0
    %2576 = vmatpush1.msra.mxu0 0.0
    %2577 = vmatprep.subr.mxu0 0.0
    %2578 = vmatpush1.msra.mxu0 0.0
    %2579 = vmatprep.subr.mxu0 0.0
    %2580 = vmatpush1.msra.mxu0 0.0
    %2581 = vmatprep.subr.mxu0 0.0
    %2582 = vmatpush1.msra.mxu0 0.0
    %2583 = vmatprep.subr.mxu0 0.0
    %2584 = vmatpush1.msra.mxu0 0.0
    %2585 = vmatprep.subr.mxu0 0.0
    %2586 = vmatpush1.msra.mxu0 0.0
    %2587 = vmatprep.subr.mxu0 0.0
    %2588 = vmatpush1.msra.mxu0 0.0
    %2589 = vmatprep.subr.mxu0 0.0
    %2590 = vmatpush1.msra.mxu0 0.0
    %2591 = vmatprep.subr.mxu0 0.0
    %2592 = vmatpush1.msra.mxu0 0.0
    %2593 = vmatprep.subr.mxu0 0.0
    %2594 = vmatpush1.msra.mxu0 0.0
    %2595 = vmatprep.subr.mxu0 0.0
    %2596 = vmatpush1.msra.mxu0 0.0
    %2597 = vmatprep.subr.mxu0 0.0
    %2598 = vmatpush1.msra.mxu0 0.0
    %2599 = vmatprep.subr.mxu0 0.0
    %2600 = vmatpush1.msra.mxu0 0.0
    %2601 = vmatprep.subr.mxu0 0.0
    %2602 = vmatpush1.msra.mxu0 0.0
    %2603 = vmatprep.subr.mxu0 0.0
    %2604 = vmatpush1.msra.mxu0 0.0
    %2605 = vmatprep.subr.mxu0 0.0
    %2606 = vmatpush1.msra.mxu0 0.0
    %2607 = vmatprep.subr.mxu0 0.0
    %2608 = vmatpush1.msra.mxu0 0.0
    %2609 = vmatprep.subr.mxu0 0.0
    %2610 = vmatpush1.msra.mxu0 0.0
    %2611 = vmatprep.mubr.f32.mxu0 0.0
    %2612 = vmatmul.mubr.f32.gmra.mrb[0].mxu0 %v2545
    %v2613 = vpop.f32.mrb[0].mxu0
    %v2614 = vadd.f32 0.0, %v2613
    %v2615 = vpop.f32.mrb[0].mxu0
    %2616 = vdwg.mxu0
    %2617 = vrot.lane.b32.xlu0 %v2280, 120
    %v2618 = vpop.permute.xlu0 %2617
    %2619 = vrot.lane.b32.xlu0 %v2272, 88
    %v2620 = vpop.permute.xlu0 %2619
    %v2621 = vsel %vm231, %v2618, 0
    %v2623 = vsel %vm231, %v2620, 0
    %2625 = vmatprep.subr.mxu0 0.0
    %2626 = vmatpush1.xpose.msra.mxu0 %v2623
    %2627 = vmatprep.subr.mxu0 0.0
    %2628 = vmatpush1.xpose.msra.mxu0 0.0
    %2629 = vmatprep.subr.mxu0 0.0
    %2630 = vmatpush1.xpose.msra.mxu0 0.0
    %2631 = vmatprep.subr.mxu0 0.0
    %2632 = vmatpush1.xpose.msra.mxu0 0.0
    %2633 = vmatprep.subr.mxu0 0.0
    %2634 = vmatpush1.xpose.msra.mxu0 0.0
    %2635 = vmatprep.subr.mxu0 0.0
    %2636 = vmatpush1.xpose.msra.mxu0 0.0
    %2637 = vmatprep.subr.mxu0 0.0
    %2638 = vmatpush1.xpose.msra.mxu0 0.0
    %2639 = vmatprep.subr.mxu0 0.0
    %2640 = vmatpush1.xpose.msra.mxu0 0.0
    %2641 = vmatprep.subr.mxu0 0.0
    %2642 = vmatpush1.xpose.msra.mxu0 0.0
    %2643 = vmatprep.subr.mxu0 0.0
    %2644 = vmatpush1.xpose.msra.mxu0 0.0
    %2645 = vmatprep.subr.mxu0 0.0
    %2646 = vmatpush1.xpose.msra.mxu0 0.0
    %2647 = vmatprep.subr.mxu0 0.0
    %2648 = vmatpush1.xpose.msra.mxu0 0.0
    %2649 = vmatprep.subr.mxu0 0.0
    %2650 = vmatpush1.xpose.msra.mxu0 0.0
    %2651 = vmatprep.subr.mxu0 0.0
    %2652 = vmatpush1.xpose.msra.mxu0 0.0
    %2653 = vmatprep.subr.mxu0 0.0
    %2654 = vmatpush1.xpose.msra.mxu0 0.0
    %2655 = vmatprep.subr.mxu0 0.0
    %2656 = vmatpush1.xpose.msra.mxu0 0.0
    %2657 = vmatprep.subr.mxu0 0.0
    %2658 = vmatpush1.xpose.msra.mxu0 0.0
    %2659 = vmatprep.subr.mxu0 0.0
    %2660 = vmatpush1.xpose.msra.mxu0 0.0
    %2661 = vmatprep.subr.mxu0 0.0
    %2662 = vmatpush1.xpose.msra.mxu0 0.0
    %2663 = vmatprep.subr.mxu0 0.0
    %2664 = vmatpush1.xpose.msra.mxu0 0.0
    %2665 = vmatprep.subr.mxu0 0.0
    %2666 = vmatpush1.xpose.msra.mxu0 0.0
    %2667 = vmatprep.subr.mxu0 0.0
    %2668 = vmatpush1.xpose.msra.mxu0 0.0
    %2669 = vmatprep.subr.mxu0 0.0
    %2670 = vmatpush1.xpose.msra.mxu0 0.0
    %2671 = vmatprep.subr.mxu0 0.0
    %2672 = vmatpush1.xpose.msra.mxu0 0.0
    %2673 = vmatprep.subr.mxu0 0.0
    %2674 = vmatpush1.xpose.msra.mxu0 0.0
    %2675 = vmatprep.subr.mxu0 0.0
    %2676 = vmatpush1.xpose.msra.mxu0 0.0
    %2677 = vmatprep.subr.mxu0 0.0
    %2678 = vmatpush1.xpose.msra.mxu0 0.0
    %2679 = vmatprep.subr.mxu0 0.0
    %2680 = vmatpush1.xpose.msra.mxu0 0.0
    %2681 = vmatprep.subr.mxu0 0.0
    %2682 = vmatpush1.xpose.msra.mxu0 0.0
    %2683 = vmatprep.subr.mxu0 0.0
    %2684 = vmatpush1.xpose.msra.mxu0 0.0
    %2685 = vmatprep.subr.mxu0 0.0
    %2686 = vmatpush1.xpose.msra.mxu0 0.0
    %2687 = vmatprep.subr.mxu0 0.0
    %2688 = vmatpush1.xpose.msra.mxu0 0.0
    %2689 = vmatprep.mubr.f32.mxu0 0.0
    %2690 = vmatmul.mubr.f32.gmra.mrb[0].mxu0 %v2621
    %v2691 = vpop.f32.mrb[0].mxu0
    %v2692 = vadd.f32 %v83, %v2691
    %v2693 = vpop.f32.mrb[0].mxu0
    %2694 = vdwg.mxu0
    %2695 = vrot.lane.b32.xlu0 %v2281, 120
    %v2696 = vpop.permute.xlu0 %2695
    %2697 = vrot.lane.b32.xlu0 %v2277, 88
    %v2698 = vpop.permute.xlu0 %2697
    %v2699 = vsel %vm231, %v2696, 0
    %v2701 = vsel %vm231, %v2698, 0
    %2703 = vmatprep.subr.mxu0 0.0
    %2704 = vmatpush1.xpose.msra.mxu0 %v2701
    %2705 = vmatprep.subr.mxu0 0.0
    %2706 = vmatpush1.xpose.msra.mxu0 0.0
    %2707 = vmatprep.subr.mxu0 0.0
    %2708 = vmatpush1.xpose.msra.mxu0 0.0
    %2709 = vmatprep.subr.mxu0 0.0
    %2710 = vmatpush1.xpose.msra.mxu0 0.0
    %2711 = vmatprep.subr.mxu0 0.0
    %2712 = vmatpush1.xpose.msra.mxu0 0.0
    %2713 = vmatprep.subr.mxu0 0.0
    %2714 = vmatpush1.xpose.msra.mxu0 0.0
    %2715 = vmatprep.subr.mxu0 0.0
    %2716 = vmatpush1.xpose.msra.mxu0 0.0
    %2717 = vmatprep.subr.mxu0 0.0
    %2718 = vmatpush1.xpose.msra.mxu0 0.0
    %2719 = vmatprep.subr.mxu0 0.0
    %2720 = vmatpush1.xpose.msra.mxu0 0.0
    %2721 = vmatprep.subr.mxu0 0.0
    %2722 = vmatpush1.xpose.msra.mxu0 0.0
    %2723 = vmatprep.subr.mxu0 0.0
    %2724 = vmatpush1.xpose.msra.mxu0 0.0
    %2725 = vmatprep.subr.mxu0 0.0
    %2726 = vmatpush1.xpose.msra.mxu0 0.0
    %2727 = vmatprep.subr.mxu0 0.0
    %2728 = vmatpush1.xpose.msra.mxu0 0.0
    %2729 = vmatprep.subr.mxu0 0.0
    %2730 = vmatpush1.xpose.msra.mxu0 0.0
    %2731 = vmatprep.subr.mxu0 0.0
    %2732 = vmatpush1.xpose.msra.mxu0 0.0
    %2733 = vmatprep.subr.mxu0 0.0
    %2734 = vmatpush1.xpose.msra.mxu0 0.0
    %2735 = vmatprep.subr.mxu0 0.0
    %2736 = vmatpush1.xpose.msra.mxu0 0.0
    %2737 = vmatprep.subr.mxu0 0.0
    %2738 = vmatpush1.xpose.msra.mxu0 0.0
    %2739 = vmatprep.subr.mxu0 0.0
    %2740 = vmatpush1.xpose.msra.mxu0 0.0
    %2741 = vmatprep.subr.mxu0 0.0
    %2742 = vmatpush1.xpose.msra.mxu0 0.0
    %2743 = vmatprep.subr.mxu0 0.0
    %2744 = vmatpush1.xpose.msra.mxu0 0.0
    %2745 = vmatprep.subr.mxu0 0.0
    %2746 = vmatpush1.xpose.msra.mxu0 0.0
    %2747 = vmatprep.subr.mxu0 0.0
    %2748 = vmatpush1.xpose.msra.mxu0 0.0
    %2749 = vmatprep.subr.mxu0 0.0
    %2750 = vmatpush1.xpose.msra.mxu0 0.0
    %2751 = vmatprep.subr.mxu0 0.0
    %2752 = vmatpush1.xpose.msra.mxu0 0.0
    %2753 = vmatprep.subr.mxu0 0.0
    %2754 = vmatpush1.xpose.msra.mxu0 0.0
    %2755 = vmatprep.subr.mxu0 0.0
    %2756 = vmatpush1.xpose.msra.mxu0 0.0
    %2757 = vmatprep.subr.mxu0 0.0
    %2758 = vmatpush1.xpose.msra.mxu0 0.0
    %2759 = vmatprep.subr.mxu0 0.0
    %2760 = vmatpush1.xpose.msra.mxu0 0.0
    %2761 = vmatprep.subr.mxu0 0.0
    %2762 = vmatpush1.xpose.msra.mxu0 0.0
    %2763 = vmatprep.subr.mxu0 0.0
    %2764 = vmatpush1.xpose.msra.mxu0 0.0
    %2765 = vmatprep.subr.mxu0 0.0
    %2766 = vmatpush1.xpose.msra.mxu0 0.0
    %2767 = vmatprep.mubr.f32.mxu0 0.0
    %2768 = vmatmul.mubr.f32.gmra.mrb[0].mxu0 %v2699
    %v2769 = vpop.f32.mrb[0].mxu0
    %v2770 = vadd.f32 %v83, %v2769
    %v2771 = vpop.f32.mrb[0].mxu0
    %2772 = vdwg.mxu0
    %v2773 = vsel %vm231, %v2692, -inf
    %2774 = vmax.xlane.f32.xlu0 %v2773
    %v2775 = vpop.xlane.xlu0 %2774
    %v2776 = vsel %vm231, %v2770, -inf
    %2777 = vmax.xlane.f32.xlu0 %v2776
    %v2778 = vpop.xlane.xlu0 %2777
    %v2779 = vsub.f32 %v2692, %v2775
    %v2780 = vsub.f32 %v2770, %v2778
    %v2781 = vmul.f32 %v2779, 1.442695
    %v2782 = vpow.pop %v2781
    %v2783 = vmul.f32 %v2780, 1.442695
    %v2784 = vpow.pop %v2783
    %v2785 = vsel %vm231, %v2782, 0.0
    %2786 = vadd.xlane.f32.xlu0 %v2785
    %v2787 = vpop.xlane.xlu0 %2786
    %v2788 = vsel %vm231, %v2784, 0.0
    %2789 = vadd.xlane.f32.xlu0 %v2788
    %v2790 = vpop.xlane.xlu0 %2789
    %v2791 = vrcp.pop %v2787
    %v2792 = vrcp.pop %v2790
    %v2793 = vmul.f32 %v2782, %v2791
    %v2794 = vmul.f32 %v2784, %v2792
    %2795 = vrot.lane.b32.xlu0 %v2272, 56
    %v2796 = vpop.permute.xlu0 %2795
    %v2799 = vsel %vm231, %v2793, 0
    %2801 = vmatprep.subr.mxu0 0.0
    %2802 = vmatpush1.msra.mxu0 %v2796
    %2803 = vmatprep.subr.mxu0 0.0
    %2804 = vmatpush1.msra.mxu0 0.0
    %2805 = vmatprep.subr.mxu0 0.0
    %2806 = vmatpush1.msra.mxu0 0.0
    %2807 = vmatprep.subr.mxu0 0.0
    %2808 = vmatpush1.msra.mxu0 0.0
    %2809 = vmatprep.subr.mxu0 0.0
    %2810 = vmatpush1.msra.mxu0 0.0
    %2811 = vmatprep.subr.mxu0 0.0
    %2812 = vmatpush1.msra.mxu0 0.0
    %2813 = vmatprep.subr.mxu0 0.0
    %2814 = vmatpush1.msra.mxu0 0.0
    %2815 = vmatprep.subr.mxu0 0.0
    %2816 = vmatpush1.msra.mxu0 0.0
    %2817 = vmatprep.subr.mxu0 0.0
    %2818 = vmatpush1.msra.mxu0 0.0
    %2819 = vmatprep.subr.mxu0 0.0
    %2820 = vmatpush1.msra.mxu0 0.0
    %2821 = vmatprep.subr.mxu0 0.0
    %2822 = vmatpush1.msra.mxu0 0.0
    %2823 = vmatprep.subr.mxu0 0.0
    %2824 = vmatpush1.msra.mxu0 0.0
    %2825 = vmatprep.subr.mxu0 0.0
    %2826 = vmatpush1.msra.mxu0 0.0
    %2827 = vmatprep.subr.mxu0 0.0
    %2828 = vmatpush1.msra.mxu0 0.0
    %2829 = vmatprep.subr.mxu0 0.0
    %2830 = vmatpush1.msra.mxu0 0.0
    %2831 = vmatprep.subr.mxu0 0.0
    %2832 = vmatpush1.msra.mxu0 0.0
    %2833 = vmatprep.subr.mxu0 0.0
    %2834 = vmatpush1.msra.mxu0 0.0
    %2835 = vmatprep.subr.mxu0 0.0
    %2836 = vmatpush1.msra.mxu0 0.0
    %2837 = vmatprep.subr.mxu0 0.0
    %2838 = vmatpush1.msra.mxu0 0.0
    %2839 = vmatprep.subr.mxu0 0.0
    %2840 = vmatpush1.msra.mxu0 0.0
    %2841 = vmatprep.subr.mxu0 0.0
    %2842 = vmatpush1.msra.mxu0 0.0
    %2843 = vmatprep.subr.mxu0 0.0
    %2844 = vmatpush1.msra.mxu0 0.0
    %2845 = vmatprep.subr.mxu0 0.0
    %2846 = vmatpush1.msra.mxu0 0.0
    %2847 = vmatprep.subr.mxu0 0.0
    %2848 = vmatpush1.msra.mxu0 0.0
    %2849 = vmatprep.subr.mxu0 0.0
    %2850 = vmatpush1.msra.mxu0 0.0
    %2851 = vmatprep.subr.mxu0 0.0
    %2852 = vmatpush1.msra.mxu0 0.0
    %2853 = vmatprep.subr.mxu0 0.0
    %2854 = vmatpush1.msra.mxu0 0.0
    %2855 = vmatprep.subr.mxu0 0.0
    %2856 = vmatpush1.msra.mxu0 0.0
    %2857 = vmatprep.subr.mxu0 0.0
    %2858 = vmatpush1.msra.mxu0 0.0
    %2859 = vmatprep.subr.mxu0 0.0
    %2860 = vmatpush1.msra.mxu0 0.0
    %2861 = vmatprep.subr.mxu0 0.0
    %2862 = vmatpush1.msra.mxu0 0.0
    %2863 = vmatprep.subr.mxu0 0.0
    %2864 = vmatpush1.msra.mxu0 0.0
    %2865 = vmatprep.mubr.f32.mxu0 0.0
    %2866 = vmatmul.mubr.f32.gmra.mrb[0].mxu0 %v2799
    %v2867 = vpop.f32.mrb[0].mxu0
    %v2868 = vadd.f32 0.0, %v2867
    %v2869 = vpop.f32.mrb[0].mxu0
    %2870 = vdwg.mxu0
    %2871 = vrot.lane.b32.xlu0 %v2277, 56
    %v2872 = vpop.permute.xlu0 %2871
    %v2875 = vsel %vm231, %v2794, 0
    %2877 = vmatprep.subr.mxu0 0.0
    %2878 = vmatpush1.msra.mxu0 %v2872
    %2879 = vmatprep.subr.mxu0 0.0
    %2880 = vmatpush1.msra.mxu0 0.0
    %2881 = vmatprep.subr.mxu0 0.0
    %2882 = vmatpush1.msra.mxu0 0.0
    %2883 = vmatprep.subr.mxu0 0.0
    %2884 = vmatpush1.msra.mxu0 0.0
    %2885 = vmatprep.subr.mxu0 0.0
    %2886 = vmatpush1.msra.mxu0 0.0
    %2887 = vmatprep.subr.mxu0 0.0
    %2888 = vmatpush1.msra.mxu0 0.0
    %2889 = vmatprep.subr.mxu0 0.0
    %2890 = vmatpush1.msra.mxu0 0.0
    %2891 = vmatprep.subr.mxu0 0.0
    %2892 = vmatpush1.msra.mxu0 0.0
    %2893 = vmatprep.subr.mxu0 0.0
    %2894 = vmatpush1.msra.mxu0 0.0
    %2895 = vmatprep.subr.mxu0 0.0
    %2896 = vmatpush1.msra.mxu0 0.0
    %2897 = vmatprep.subr.mxu0 0.0
    %2898 = vmatpush1.msra.mxu0 0.0
    %2899 = vmatprep.subr.mxu0 0.0
    %2900 = vmatpush1.msra.mxu0 0.0
    %2901 = vmatprep.subr.mxu0 0.0
    %2902 = vmatpush1.msra.mxu0 0.0
    %2903 = vmatprep.subr.mxu0 0.0
    %2904 = vmatpush1.msra.mxu0 0.0
    %2905 = vmatprep.subr.mxu0 0.0
    %2906 = vmatpush1.msra.mxu0 0.0
    %2907 = vmatprep.subr.mxu0 0.0
    %2908 = vmatpush1.msra.mxu0 0.0
    %2909 = vmatprep.subr.mxu0 0.0
    %2910 = vmatpush1.msra.mxu0 0.0
    %2911 = vmatprep.subr.mxu0 0.0
    %2912 = vmatpush1.msra.mxu0 0.0
    %2913 = vmatprep.subr.mxu0 0.0
    %2914 = vmatpush1.msra.mxu0 0.0
    %2915 = vmatprep.subr.mxu0 0.0
    %2916 = vmatpush1.msra.mxu0 0.0
    %2917 = vmatprep.subr.mxu0 0.0
    %2918 = vmatpush1.msra.mxu0 0.0
    %2919 = vmatprep.subr.mxu0 0.0
    %2920 = vmatpush1.msra.mxu0 0.0
    %2921 = vmatprep.subr.mxu0 0.0
    %2922 = vmatpush1.msra.mxu0 0.0
    %2923 = vmatprep.subr.mxu0 0.0
    %2924 = vmatpush1.msra.mxu0 0.0
    %2925 = vmatprep.subr.mxu0 0.0
    %2926 = vmatpush1.msra.mxu0 0.0
    %2927 = vmatprep.subr.mxu0 0.0
    %2928 = vmatpush1.msra.mxu0 0.0
    %2929 = vmatprep.subr.mxu0 0.0
    %2930 = vmatpush1.msra.mxu0 0.0
    %2931 = vmatprep.subr.mxu0 0.0
    %2932 = vmatpush1.msra.mxu0 0.0
    %2933 = vmatprep.subr.mxu0 0.0
    %2934 = vmatpush1.msra.mxu0 0.0
    %2935 = vmatprep.subr.mxu0 0.0
    %2936 = vmatpush1.msra.mxu0 0.0
    %2937 = vmatprep.subr.mxu0 0.0
    %2938 = vmatpush1.msra.mxu0 0.0
    %2939 = vmatprep.subr.mxu0 0.0
    %2940 = vmatpush1.msra.mxu0 0.0
    %2941 = vmatprep.mubr.f32.mxu0 0.0
    %2942 = vmatmul.mubr.f32.gmra.mrb[0].mxu0 %v2875
    %v2943 = vpop.f32.mrb[0].mxu0
    %v2944 = vadd.f32 0.0, %v2943
    %v2945 = vpop.f32.mrb[0].mxu0
    %2946 = vdwg.mxu0
    %v2948 = vsel %vm231, %v2868, 0
    %v2951 = vsel %vm231, %v2944, 0
    %2953 = vmatprep.subr.mxu0 0.0
    %2954 = vmatpush1.msra.mxu0 %v2284
    %2955 = vmatprep.subr.mxu0 0.0
    %2956 = vmatpush1.msra.mxu0 0.0
    %2957 = vmatprep.subr.mxu0 0.0
    %2958 = vmatpush1.msra.mxu0 0.0
    %2959 = vmatprep.subr.mxu0 0.0
    %2960 = vmatpush1.msra.mxu0 0.0
    %2961 = vmatprep.subr.mxu0 0.0
    %2962 = vmatpush1.msra.mxu0 0.0
    %2963 = vmatprep.subr.mxu0 0.0
    %2964 = vmatpush1.msra.mxu0 0.0
    %2965 = vmatprep.subr.mxu0 0.0
    %2966 = vmatpush1.msra.mxu0 0.0
    %2967 = vmatprep.subr.mxu0 0.0
    %2968 = vmatpush1.msra.mxu0 0.0
    %2969 = vmatprep.subr.mxu0 0.0
    %2970 = vmatpush1.msra.mxu0 0.0
    %2971 = vmatprep.subr.mxu0 0.0
    %2972 = vmatpush1.msra.mxu0 0.0
    %2973 = vmatprep.subr.mxu0 0.0
    %2974 = vmatpush1.msra.mxu0 0.0
    %2975 = vmatprep.subr.mxu0 0.0
    %2976 = vmatpush1.msra.mxu0 0.0
    %2977 = vmatprep.subr.mxu0 0.0
    %2978 = vmatpush1.msra.mxu0 0.0
    %2979 = vmatprep.subr.mxu0 0.0
    %2980 = vmatpush1.msra.mxu0 0.0
    %2981 = vmatprep.subr.mxu0 0.0
    %2982 = vmatpush1.msra.mxu0 0.0
    %2983 = vmatprep.subr.mxu0 0.0
    %2984 = vmatpush1.msra.mxu0 0.0
    %2985 = vmatprep.subr.mxu0 0.0
    %2986 = vmatpush1.msra.mxu0 0.0
    %2987 = vmatprep.subr.mxu0 0.0
    %2988 = vmatpush1.msra.mxu0 0.0
    %2989 = vmatprep.subr.mxu0 0.0
    %2990 = vmatpush1.msra.mxu0 0.0
    %2991 = vmatprep.subr.mxu0 0.0
    %2992 = vmatpush1.msra.mxu0 0.0
    %2993 = vmatprep.subr.mxu0 0.0
    %2994 = vmatpush1.msra.mxu0 0.0
    %2995 = vmatprep.subr.mxu0 0.0
    %2996 = vmatpush1.msra.mxu0 0.0
    %2997 = vmatprep.subr.mxu0 0.0
    %2998 = vmatpush1.msra.mxu0 0.0
    %2999 = vmatprep.subr.mxu0 0.0
    %3000 = vmatpush1.msra.mxu0 0.0
    %3001 = vmatprep.subr.mxu0 0.0
    %3002 = vmatpush1.msra.mxu0 0.0
    %3003 = vmatprep.subr.mxu0 0.0
    %3004 = vmatpush1.msra.mxu0 0.0
    %3005 = vmatprep.subr.mxu0 0.0
    %3006 = vmatpush1.msra.mxu0 0.0
    %3007 = vmatprep.subr.mxu0 0.0
    %3008 = vmatpush1.msra.mxu0 0.0
    %3009 = vmatprep.subr.mxu0 0.0
    %3010 = vmatpush1.msra.mxu0 0.0
    %3011 = vmatprep.subr.mxu0 0.0
    %3012 = vmatpush1.msra.mxu0 0.0
    %3013 = vmatprep.subr.mxu0 0.0
    %3014 = vmatpush1.msra.mxu0 0.0
    %3015 = vmatprep.subr.mxu0 0.0
    %3016 = vmatpush1.msra.mxu0 0.0
    %3017 = vmatprep.mubr.f32.mxu0 0.0
    %3018 = vmatmul.mubr.f32.gmra.mrb[0].mxu0 %v2948
    %v3019 = vpop.f32.mrb[0].mxu0
    %v3020 = vadd.f32 0.0, %v3019
    %v3021 = vpop.f32.mrb[0].mxu0
    %3022 = vmatprep.mubr.f32.mxu0 0.0
    %3023 = vmatmul.mubr.f32.gmra.mrb[0].mxu0 %v2951
    %v3024 = vpop.f32.mrb[0].mxu0
    %v3025 = vadd.f32 0.0, %v3024
    %v3026 = vpop.f32.mrb[0].mxu0
    %3027 = vdwg.mxu0
    %v3029 = vsel %vm231, %v2538, 0
    %v3032 = vsel %vm231, %v2614, 0
    %3034 = vmatprep.subr.mxu0 0.0
    %3035 = vmatpush1.msra.mxu0 %v2283
    %3036 = vmatprep.subr.mxu0 0.0
    %3037 = vmatpush1.msra.mxu0 0.0
    %3038 = vmatprep.subr.mxu0 0.0
    %3039 = vmatpush1.msra.mxu0 0.0
    %3040 = vmatprep.subr.mxu0 0.0
    %3041 = vmatpush1.msra.mxu0 0.0
    %3042 = vmatprep.subr.mxu0 0.0
    %3043 = vmatpush1.msra.mxu0 0.0
    %3044 = vmatprep.subr.mxu0 0.0
    %3045 = vmatpush1.msra.mxu0 0.0
    %3046 = vmatprep.subr.mxu0 0.0
    %3047 = vmatpush1.msra.mxu0 0.0
    %3048 = vmatprep.subr.mxu0 0.0
    %3049 = vmatpush1.msra.mxu0 0.0
    %3050 = vmatprep.subr.mxu0 0.0
    %3051 = vmatpush1.msra.mxu0 0.0
    %3052 = vmatprep.subr.mxu0 0.0
    %3053 = vmatpush1.msra.mxu0 0.0
    %3054 = vmatprep.subr.mxu0 0.0
    %3055 = vmatpush1.msra.mxu0 0.0
    %3056 = vmatprep.subr.mxu0 0.0
    %3057 = vmatpush1.msra.mxu0 0.0
    %3058 = vmatprep.subr.mxu0 0.0
    %3059 = vmatpush1.msra.mxu0 0.0
    %3060 = vmatprep.subr.mxu0 0.0
    %3061 = vmatpush1.msra.mxu0 0.0
    %3062 = vmatprep.subr.mxu0 0.0
    %3063 = vmatpush1.msra.mxu0 0.0
    %3064 = vmatprep.subr.mxu0 0.0
    %3065 = vmatpush1.msra.mxu0 0.0
    %3066 = vmatprep.subr.mxu0 0.0
    %3067 = vmatpush1.msra.mxu0 0.0
    %3068 = vmatprep.subr.mxu0 0.0
    %3069 = vmatpush1.msra.mxu0 0.0
    %3070 = vmatprep.subr.mxu0 0.0
    %3071 = vmatpush1.msra.mxu0 0.0
    %3072 = vmatprep.subr.mxu0 0.0
    %3073 = vmatpush1.msra.mxu0 0.0
    %3074 = vmatprep.subr.mxu0 0.0
    %3075 = vmatpush1.msra.mxu0 0.0
    %3076 = vmatprep.subr.mxu0 0.0
    %3077 = vmatpush1.msra.mxu0 0.0
    %3078 = vmatprep.subr.mxu0 0.0
    %3079 = vmatpush1.msra.mxu0 0.0
    %3080 = vmatprep.subr.mxu0 0.0
    %3081 = vmatpush1.msra.mxu0 0.0
    %3082 = vmatprep.subr.mxu0 0.0
    %3083 = vmatpush1.msra.mxu0 0.0
    %3084 = vmatprep.subr.mxu0 0.0
    %3085 = vmatpush1.msra.mxu0 0.0
    %3086 = vmatprep.subr.mxu0 0.0
    %3087 = vmatpush1.msra.mxu0 0.0
    %3088 = vmatprep.subr.mxu0 0.0
    %3089 = vmatpush1.msra.mxu0 0.0
    %3090 = vmatprep.subr.mxu0 0.0
    %3091 = vmatpush1.msra.mxu0 0.0
    %3092 = vmatprep.subr.mxu0 0.0
    %3093 = vmatpush1.msra.mxu0 0.0
    %3094 = vmatprep.subr.mxu0 0.0
    %3095 = vmatpush1.msra.mxu0 0.0
    %3096 = vmatprep.subr.mxu0 0.0
    %3097 = vmatpush1.msra.mxu0 0.0
    %3098 = vmatprep.mubr.f32.mxu0 0.0
    %3099 = vmatmul.mubr.f32.gmra.mrb[0].mxu0 %v3029
    %v3100 = vpop.f32.mrb[0].mxu0
    %v3101 = vadd.f32 %v3020, %v3100
    %v3102 = vpop.f32.mrb[0].mxu0
    %3103 = vmatprep.mubr.f32.mxu0 0.0
    %3104 = vmatmul.mubr.f32.gmra.mrb[0].mxu0 %v3032
    %v3105 = vpop.f32.mrb[0].mxu0
    %v3106 = vadd.f32 %v3025, %v3105
    %v3107 = vpop.f32.mrb[0].mxu0
    %3108 = vdwg.mxu0
    %3109 = vrot.lane.b32.xlu0 %v2280, 112
    %v3110 = vpop.permute.xlu0 %3109
    %3111 = vrot.lane.b32.xlu0 %v2272, 80
    %v3112 = vpop.permute.xlu0 %3111
    %v3113 = vsel %vm231, %v3110, 0
    %v3115 = vsel %vm231, %v3112, 0
    %3117 = vmatprep.subr.mxu0 0.0
    %3118 = vmatpush1.xpose.msra.mxu0 %v3115
    %3119 = vmatprep.subr.mxu0 0.0
    %3120 = vmatpush1.xpose.msra.mxu0 0.0
    %3121 = vmatprep.subr.mxu0 0.0
    %3122 = vmatpush1.xpose.msra.mxu0 0.0
    %3123 = vmatprep.subr.mxu0 0.0
    %3124 = vmatpush1.xpose.msra.mxu0 0.0
    %3125 = vmatprep.subr.mxu0 0.0
    %3126 = vmatpush1.xpose.msra.mxu0 0.0
    %3127 = vmatprep.subr.mxu0 0.0
    %3128 = vmatpush1.xpose.msra.mxu0 0.0
    %3129 = vmatprep.subr.mxu0 0.0
    %3130 = vmatpush1.xpose.msra.mxu0 0.0
    %3131 = vmatprep.subr.mxu0 0.0
    %3132 = vmatpush1.xpose.msra.mxu0 0.0
    %3133 = vmatprep.subr.mxu0 0.0
    %3134 = vmatpush1.xpose.msra.mxu0 0.0
    %3135 = vmatprep.subr.mxu0 0.0
    %3136 = vmatpush1.xpose.msra.mxu0 0.0
    %3137 = vmatprep.subr.mxu0 0.0
    %3138 = vmatpush1.xpose.msra.mxu0 0.0
    %3139 = vmatprep.subr.mxu0 0.0
    %3140 = vmatpush1.xpose.msra.mxu0 0.0
    %3141 = vmatprep.subr.mxu0 0.0
    %3142 = vmatpush1.xpose.msra.mxu0 0.0
    %3143 = vmatprep.subr.mxu0 0.0
    %3144 = vmatpush1.xpose.msra.mxu0 0.0
    %3145 = vmatprep.subr.mxu0 0.0
    %3146 = vmatpush1.xpose.msra.mxu0 0.0
    %3147 = vmatprep.subr.mxu0 0.0
    %3148 = vmatpush1.xpose.msra.mxu0 0.0
    %3149 = vmatprep.subr.mxu0 0.0
    %3150 = vmatpush1.xpose.msra.mxu0 0.0
    %3151 = vmatprep.subr.mxu0 0.0
    %3152 = vmatpush1.xpose.msra.mxu0 0.0
    %3153 = vmatprep.subr.mxu0 0.0
    %3154 = vmatpush1.xpose.msra.mxu0 0.0
    %3155 = vmatprep.subr.mxu0 0.0
    %3156 = vmatpush1.xpose.msra.mxu0 0.0
    %3157 = vmatprep.subr.mxu0 0.0
    %3158 = vmatpush1.xpose.msra.mxu0 0.0
    %3159 = vmatprep.subr.mxu0 0.0
    %3160 = vmatpush1.xpose.msra.mxu0 0.0
    %3161 = vmatprep.subr.mxu0 0.0
    %3162 = vmatpush1.xpose.msra.mxu0 0.0
    %3163 = vmatprep.subr.mxu0 0.0
    %3164 = vmatpush1.xpose.msra.mxu0 0.0
    %3165 = vmatprep.subr.mxu0 0.0
    %3166 = vmatpush1.xpose.msra.mxu0 0.0
    %3167 = vmatprep.subr.mxu0 0.0
    %3168 = vmatpush1.xpose.msra.mxu0 0.0
    %3169 = vmatprep.subr.mxu0 0.0
    %3170 = vmatpush1.xpose.msra.mxu0 0.0
    %3171 = vmatprep.subr.mxu0 0.0
    %3172 = vmatpush1.xpose.msra.mxu0 0.0
    %3173 = vmatprep.subr.mxu0 0.0
    %3174 = vmatpush1.xpose.msra.mxu0 0.0
    %3175 = vmatprep.subr.mxu0 0.0
    %3176 = vmatpush1.xpose.msra.mxu0 0.0
    %3177 = vmatprep.subr.mxu0 0.0
    %3178 = vmatpush1.xpose.msra.mxu0 0.0
    %3179 = vmatprep.subr.mxu0 0.0
    %3180 = vmatpush1.xpose.msra.mxu0 0.0
    %3181 = vmatprep.mubr.f32.mxu0 0.0
    %3182 = vmatmul.mubr.f32.gmra.mrb[0].mxu0 %v3113
    %v3183 = vpop.f32.mrb[0].mxu0
    %v3184 = vadd.f32 %v83, %v3183
    %v3185 = vpop.f32.mrb[0].mxu0
    %3186 = vdwg.mxu0
    %3187 = vrot.lane.b32.xlu0 %v2281, 112
    %v3188 = vpop.permute.xlu0 %3187
    %3189 = vrot.lane.b32.xlu0 %v2277, 80
    %v3190 = vpop.permute.xlu0 %3189
    %v3191 = vsel %vm231, %v3188, 0
    %v3193 = vsel %vm231, %v3190, 0
    %3195 = vmatprep.subr.mxu0 0.0
    %3196 = vmatpush1.xpose.msra.mxu0 %v3193
    %3197 = vmatprep.subr.mxu0 0.0
    %3198 = vmatpush1.xpose.msra.mxu0 0.0
    %3199 = vmatprep.subr.mxu0 0.0
    %3200 = vmatpush1.xpose.msra.mxu0 0.0
    %3201 = vmatprep.subr.mxu0 0.0
    %3202 = vmatpush1.xpose.msra.mxu0 0.0
    %3203 = vmatprep.subr.mxu0 0.0
    %3204 = vmatpush1.xpose.msra.mxu0 0.0
    %3205 = vmatprep.subr.mxu0 0.0
    %3206 = vmatpush1.xpose.msra.mxu0 0.0
    %3207 = vmatprep.subr.mxu0 0.0
    %3208 = vmatpush1.xpose.msra.mxu0 0.0
    %3209 = vmatprep.subr.mxu0 0.0
    %3210 = vmatpush1.xpose.msra.mxu0 0.0
    %3211 = vmatprep.subr.mxu0 0.0
    %3212 = vmatpush1.xpose.msra.mxu0 0.0
    %3213 = vmatprep.subr.mxu0 0.0
    %3214 = vmatpush1.xpose.msra.mxu0 0.0
    %3215 = vmatprep.subr.mxu0 0.0
    %3216 = vmatpush1.xpose.msra.mxu0 0.0
    %3217 = vmatprep.subr.mxu0 0.0
    %3218 = vmatpush1.xpose.msra.mxu0 0.0
    %3219 = vmatprep.subr.mxu0 0.0
    %3220 = vmatpush1.xpose.msra.mxu0 0.0
    %3221 = vmatprep.subr.mxu0 0.0
    %3222 = vmatpush1.xpose.msra.mxu0 0.0
    %3223 = vmatprep.subr.mxu0 0.0
    %3224 = vmatpush1.xpose.msra.mxu0 0.0
    %3225 = vmatprep.subr.mxu0 0.0
    %3226 = vmatpush1.xpose.msra.mxu0 0.0
    %3227 = vmatprep.subr.mxu0 0.0
    %3228 = vmatpush1.xpose.msra.mxu0 0.0
    %3229 = vmatprep.subr.mxu0 0.0
    %3230 = vmatpush1.xpose.msra.mxu0 0.0
    %3231 = vmatprep.subr.mxu0 0.0
    %3232 = vmatpush1.xpose.msra.mxu0 0.0
    %3233 = vmatprep.subr.mxu0 0.0
    %3234 = vmatpush1.xpose.msra.mxu0 0.0
    %3235 = vmatprep.subr.mxu0 0.0
    %3236 = vmatpush1.xpose.msra.mxu0 0.0
    %3237 = vmatprep.subr.mxu0 0.0
    %3238 = vmatpush1.xpose.msra.mxu0 0.0
    %3239 = vmatprep.subr.mxu0 0.0
    %3240 = vmatpush1.xpose.msra.mxu0 0.0
    %3241 = vmatprep.subr.mxu0 0.0
    %3242 = vmatpush1.xpose.msra.mxu0 0.0
    %3243 = vmatprep.subr.mxu0 0.0
    %3244 = vmatpush1.xpose.msra.mxu0 0.0
    %3245 = vmatprep.subr.mxu0 0.0
    %3246 = vmatpush1.xpose.msra.mxu0 0.0
    %3247 = vmatprep.subr.mxu0 0.0
    %3248 = vmatpush1.xpose.msra.mxu0 0.0
    %3249 = vmatprep.subr.mxu0 0.0
    %3250 = vmatpush1.xpose.msra.mxu0 0.0
    %3251 = vmatprep.subr.mxu0 0.0
    %3252 = vmatpush1.xpose.msra.mxu0 0.0
    %3253 = vmatprep.subr.mxu0 0.0
    %3254 = vmatpush1.xpose.msra.mxu0 0.0
    %3255 = vmatprep.subr.mxu0 0.0
    %3256 = vmatpush1.xpose.msra.mxu0 0.0
    %3257 = vmatprep.subr.mxu0 0.0
    %3258 = vmatpush1.xpose.msra.mxu0 0.0
    %3259 = vmatprep.mubr.f32.mxu0 0.0
    %3260 = vmatmul.mubr.f32.gmra.mrb[0].mxu0 %v3191
    %v3261 = vpop.f32.mrb[0].mxu0
    %v3262 = vadd.f32 %v83, %v3261
    %v3263 = vpop.f32.mrb[0].mxu0
    %3264 = vdwg.mxu0
    %v3265 = vsel %vm231, %v3184, -inf
    %3266 = vmax.xlane.f32.xlu0 %v3265
    %v3267 = vpop.xlane.xlu0 %3266
    %v3268 = vsel %vm231, %v3262, -inf
    %3269 = vmax.xlane.f32.xlu0 %v3268
    %v3270 = vpop.xlane.xlu0 %3269
    %v3271 = vsub.f32 %v3184, %v3267
    %v3272 = vsub.f32 %v3262, %v3270
    %v3273 = vmul.f32 %v3271, 1.442695
    %v3274 = vpow.pop %v3273
    %v3275 = vmul.f32 %v3272, 1.442695
    %v3276 = vpow.pop %v3275
    %v3277 = vsel %vm231, %v3274, 0.0
    %3278 = vadd.xlane.f32.xlu0 %v3277
    %v3279 = vpop.xlane.xlu0 %3278
    %v3280 = vsel %vm231, %v3276, 0.0
    %3281 = vadd.xlane.f32.xlu0 %v3280
    %v3282 = vpop.xlane.xlu0 %3281
    %v3283 = vrcp.pop %v3279
    %v3284 = vrcp.pop %v3282
    %v3285 = vmul.f32 %v3274, %v3283
    %v3286 = vmul.f32 %v3276, %v3284
    %3287 = vrot.lane.b32.xlu0 %v2272, 48
    %v3288 = vpop.permute.xlu0 %3287
    %v3291 = vsel %vm231, %v3285, 0
    %3293 = vmatprep.subr.mxu0 0.0
    %3294 = vmatpush1.msra.mxu0 %v3288
    %3295 = vmatprep.subr.mxu0 0.0
    %3296 = vmatpush1.msra.mxu0 0.0
    %3297 = vmatprep.subr.mxu0 0.0
    %3298 = vmatpush1.msra.mxu0 0.0
    %3299 = vmatprep.subr.mxu0 0.0
    %3300 = vmatpush1.msra.mxu0 0.0
    %3301 = vmatprep.subr.mxu0 0.0
    %3302 = vmatpush1.msra.mxu0 0.0
    %3303 = vmatprep.subr.mxu0 0.0
    %3304 = vmatpush1.msra.mxu0 0.0
    %3305 = vmatprep.subr.mxu0 0.0
    %3306 = vmatpush1.msra.mxu0 0.0
    %3307 = vmatprep.subr.mxu0 0.0
    %3308 = vmatpush1.msra.mxu0 0.0
    %3309 = vmatprep.subr.mxu0 0.0
    %3310 = vmatpush1.msra.mxu0 0.0
    %3311 = vmatprep.subr.mxu0 0.0
    %3312 = vmatpush1.msra.mxu0 0.0
    %3313 = vmatprep.subr.mxu0 0.0
    %3314 = vmatpush1.msra.mxu0 0.0
    %3315 = vmatprep.subr.mxu0 0.0
    %3316 = vmatpush1.msra.mxu0 0.0
    %3317 = vmatprep.subr.mxu0 0.0
    %3318 = vmatpush1.msra.mxu0 0.0
    %3319 = vmatprep.subr.mxu0 0.0
    %3320 = vmatpush1.msra.mxu0 0.0
    %3321 = vmatprep.subr.mxu0 0.0
    %3322 = vmatpush1.msra.mxu0 0.0
    %3323 = vmatprep.subr.mxu0 0.0
    %3324 = vmatpush1.msra.mxu0 0.0
    %3325 = vmatprep.subr.mxu0 0.0
    %3326 = vmatpush1.msra.mxu0 0.0
    %3327 = vmatprep.subr.mxu0 0.0
    %3328 = vmatpush1.msra.mxu0 0.0
    %3329 = vmatprep.subr.mxu0 0.0
    %3330 = vmatpush1.msra.mxu0 0.0
    %3331 = vmatprep.subr.mxu0 0.0
    %3332 = vmatpush1.msra.mxu0 0.0
    %3333 = vmatprep.subr.mxu0 0.0
    %3334 = vmatpush1.msra.mxu0 0.0
    %3335 = vmatprep.subr.mxu0 0.0
    %3336 = vmatpush1.msra.mxu0 0.0
    %3337 = vmatprep.subr.mxu0 0.0
    %3338 = vmatpush1.msra.mxu0 0.0
    %3339 = vmatprep.subr.mxu0 0.0
    %3340 = vmatpush1.msra.mxu0 0.0
    %3341 = vmatprep.subr.mxu0 0.0
    %3342 = vmatpush1.msra.mxu0 0.0
    %3343 = vmatprep.subr.mxu0 0.0
    %3344 = vmatpush1.msra.mxu0 0.0
    %3345 = vmatprep.subr.mxu0 0.0
    %3346 = vmatpush1.msra.mxu0 0.0
    %3347 = vmatprep.subr.mxu0 0.0
    %3348 = vmatpush1.msra.mxu0 0.0
    %3349 = vmatprep.subr.mxu0 0.0
    %3350 = vmatpush1.msra.mxu0 0.0
    %3351 = vmatprep.subr.mxu0 0.0
    %3352 = vmatpush1.msra.mxu0 0.0
    %3353 = vmatprep.subr.mxu0 0.0
    %3354 = vmatpush1.msra.mxu0 0.0
    %3355 = vmatprep.subr.mxu0 0.0
    %3356 = vmatpush1.msra.mxu0 0.0
    %3357 = vmatprep.mubr.f32.mxu0 0.0
    %3358 = vmatmul.mubr.f32.gmra.mrb[0].mxu0 %v3291
    %v3359 = vpop.f32.mrb[0].mxu0
    %v3360 = vadd.f32 0.0, %v3359
    %v3361 = vpop.f32.mrb[0].mxu0
    %3362 = vdwg.mxu0
    %3363 = vrot.lane.b32.xlu0 %v2277, 48
    %v3364 = vpop.permute.xlu0 %3363
    %v3367 = vsel %vm231, %v3286, 0
    %3369 = vmatprep.subr.mxu0 0.0
    %3370 = vmatpush1.msra.mxu0 %v3364
    %3371 = vmatprep.subr.mxu0 0.0
    %3372 = vmatpush1.msra.mxu0 0.0
    %3373 = vmatprep.subr.mxu0 0.0
    %3374 = vmatpush1.msra.mxu0 0.0
    %3375 = vmatprep.subr.mxu0 0.0
    %3376 = vmatpush1.msra.mxu0 0.0
    %3377 = vmatprep.subr.mxu0 0.0
    %3378 = vmatpush1.msra.mxu0 0.0
    %3379 = vmatprep.subr.mxu0 0.0
    %3380 = vmatpush1.msra.mxu0 0.0
    %3381 = vmatprep.subr.mxu0 0.0
    %3382 = vmatpush1.msra.mxu0 0.0
    %3383 = vmatprep.subr.mxu0 0.0
    %3384 = vmatpush1.msra.mxu0 0.0
    %3385 = vmatprep.subr.mxu0 0.0
    %3386 = vmatpush1.msra.mxu0 0.0
    %3387 = vmatprep.subr.mxu0 0.0
    %3388 = vmatpush1.msra.mxu0 0.0
    %3389 = vmatprep.subr.mxu0 0.0
    %3390 = vmatpush1.msra.mxu0 0.0
    %3391 = vmatprep.subr.mxu0 0.0
    %3392 = vmatpush1.msra.mxu0 0.0
    %3393 = vmatprep.subr.mxu0 0.0
    %3394 = vmatpush1.msra.mxu0 0.0
    %3395 = vmatprep.subr.mxu0 0.0
    %3396 = vmatpush1.msra.mxu0 0.0
    %3397 = vmatprep.subr.mxu0 0.0
    %3398 = vmatpush1.msra.mxu0 0.0
    %3399 = vmatprep.subr.mxu0 0.0
    %3400 = vmatpush1.msra.mxu0 0.0
    %3401 = vmatprep.subr.mxu0 0.0
    %3402 = vmatpush1.msra.mxu0 0.0
    %3403 = vmatprep.subr.mxu0 0.0
    %3404 = vmatpush1.msra.mxu0 0.0
    %3405 = vmatprep.subr.mxu0 0.0
    %3406 = vmatpush1.msra.mxu0 0.0
    %3407 = vmatprep.subr.mxu0 0.0
    %3408 = vmatpush1.msra.mxu0 0.0
    %3409 = vmatprep.subr.mxu0 0.0
    %3410 = vmatpush1.msra.mxu0 0.0
    %3411 = vmatprep.subr.mxu0 0.0
    %3412 = vmatpush1.msra.mxu0 0.0
    %3413 = vmatprep.subr.mxu0 0.0
    %3414 = vmatpush1.msra.mxu0 0.0
    %3415 = vmatprep.subr.mxu0 0.0
    %3416 = vmatpush1.msra.mxu0 0.0
    %3417 = vmatprep.subr.mxu0 0.0
    %3418 = vmatpush1.msra.mxu0 0.0
    %3419 = vmatprep.subr.mxu0 0.0
    %3420 = vmatpush1.msra.mxu0 0.0
    %3421 = vmatprep.subr.mxu0 0.0
    %3422 = vmatpush1.msra.mxu0 0.0
    %3423 = vmatprep.subr.mxu0 0.0
    %3424 = vmatpush1.msra.mxu0 0.0
    %3425 = vmatprep.subr.mxu0 0.0
    %3426 = vmatpush1.msra.mxu0 0.0
    %3427 = vmatprep.subr.mxu0 0.0
    %3428 = vmatpush1.msra.mxu0 0.0
    %3429 = vmatprep.subr.mxu0 0.0
    %3430 = vmatpush1.msra.mxu0 0.0
    %3431 = vmatprep.subr.mxu0 0.0
    %3432 = vmatpush1.msra.mxu0 0.0
    %3433 = vmatprep.mubr.f32.mxu0 0.0
    %3434 = vmatmul.mubr.f32.gmra.mrb[0].mxu0 %v3367
    %v3435 = vpop.f32.mrb[0].mxu0
    %v3436 = vadd.f32 0.0, %v3435
    %v3437 = vpop.f32.mrb[0].mxu0
    %3438 = vdwg.mxu0
    %v3440 = vsel %vm231, %v3360, 0
    %v3443 = vsel %vm231, %v3436, 0
    %3445 = vmatprep.subr.mxu0 0.0
    %3446 = vmatpush1.msra.mxu0 %v2285
    %3447 = vmatprep.subr.mxu0 0.0
    %3448 = vmatpush1.msra.mxu0 0.0
    %3449 = vmatprep.subr.mxu0 0.0
    %3450 = vmatpush1.msra.mxu0 0.0
    %3451 = vmatprep.subr.mxu0 0.0
    %3452 = vmatpush1.msra.mxu0 0.0
    %3453 = vmatprep.subr.mxu0 0.0
    %3454 = vmatpush1.msra.mxu0 0.0
    %3455 = vmatprep.subr.mxu0 0.0
    %3456 = vmatpush1.msra.mxu0 0.0
    %3457 = vmatprep.subr.mxu0 0.0
    %3458 = vmatpush1.msra.mxu0 0.0
    %3459 = vmatprep.subr.mxu0 0.0
    %3460 = vmatpush1.msra.mxu0 0.0
    %3461 = vmatprep.subr.mxu0 0.0
    %3462 = vmatpush1.msra.mxu0 0.0
    %3463 = vmatprep.subr.mxu0 0.0
    %3464 = vmatpush1.msra.mxu0 0.0
    %3465 = vmatprep.subr.mxu0 0.0
    %3466 = vmatpush1.msra.mxu0 0.0
    %3467 = vmatprep.subr.mxu0 0.0
    %3468 = vmatpush1.msra.mxu0 0.0
    %3469 = vmatprep.subr.mxu0 0.0
    %3470 = vmatpush1.msra.mxu0 0.0
    %3471 = vmatprep.subr.mxu0 0.0
    %3472 = vmatpush1.msra.mxu0 0.0
    %3473 = vmatprep.subr.mxu0 0.0
    %3474 = vmatpush1.msra.mxu0 0.0
    %3475 = vmatprep.subr.mxu0 0.0
    %3476 = vmatpush1.msra.mxu0 0.0
    %3477 = vmatprep.subr.mxu0 0.0
    %3478 = vmatpush1.msra.mxu0 0.0
    %3479 = vmatprep.subr.mxu0 0.0
    %3480 = vmatpush1.msra.mxu0 0.0
    %3481 = vmatprep.subr.mxu0 0.0
    %3482 = vmatpush1.msra.mxu0 0.0
    %3483 = vmatprep.subr.mxu0 0.0
    %3484 = vmatpush1.msra.mxu0 0.0
    %3485 = vmatprep.subr.mxu0 0.0
    %3486 = vmatpush1.msra.mxu0 0.0
    %3487 = vmatprep.subr.mxu0 0.0
    %3488 = vmatpush1.msra.mxu0 0.0
    %3489 = vmatprep.subr.mxu0 0.0
    %3490 = vmatpush1.msra.mxu0 0.0
    %3491 = vmatprep.subr.mxu0 0.0
    %3492 = vmatpush1.msra.mxu0 0.0
    %3493 = vmatprep.subr.mxu0 0.0
    %3494 = vmatpush1.msra.mxu0 0.0
    %3495 = vmatprep.subr.mxu0 0.0
    %3496 = vmatpush1.msra.mxu0 0.0
    %3497 = vmatprep.subr.mxu0 0.0
    %3498 = vmatpush1.msra.mxu0 0.0
    %3499 = vmatprep.subr.mxu0 0.0
    %3500 = vmatpush1.msra.mxu0 0.0
    %3501 = vmatprep.subr.mxu0 0.0
    %3502 = vmatpush1.msra.mxu0 0.0
    %3503 = vmatprep.subr.mxu0 0.0
    %3504 = vmatpush1.msra.mxu0 0.0
    %3505 = vmatprep.subr.mxu0 0.0
    %3506 = vmatpush1.msra.mxu0 0.0
    %3507 = vmatprep.subr.mxu0 0.0
    %3508 = vmatpush1.msra.mxu0 0.0
    %3509 = vmatprep.mubr.f32.mxu0 0.0
    %3510 = vmatmul.mubr.f32.gmra.mrb[0].mxu0 %v3440
    %v3511 = vpop.f32.mrb[0].mxu0
    %v3512 = vadd.f32 0.0, %v3511
    %v3513 = vpop.f32.mrb[0].mxu0
    %3514 = vmatprep.mubr.f32.mxu0 0.0
    %3515 = vmatmul.mubr.f32.gmra.mrb[0].mxu0 %v3443
    %v3516 = vpop.f32.mrb[0].mxu0
    %v3517 = vadd.f32 0.0, %v3516
    %v3518 = vpop.f32.mrb[0].mxu0
    %3519 = vdwg.mxu0
    %v3520 = vadd.f32 %v3101, %v3512
    %v3521 = vadd.f32 %v3106, %v3517
    %3522 = vrot.lane.b32.xlu0 %v2280, 104
    %v3523 = vpop.permute.xlu0 %3522
    %3524 = vrot.lane.b32.xlu0 %v2272, 72
    %v3525 = vpop.permute.xlu0 %3524
    %v3526 = vsel %vm231, %v3523, 0
    %v3528 = vsel %vm231, %v3525, 0
    %3530 = vmatprep.subr.mxu0 0.0
    %3531 = vmatpush1.xpose.msra.mxu0 %v3528
    %3532 = vmatprep.subr.mxu0 0.0
    %3533 = vmatpush1.xpose.msra.mxu0 0.0
    %3534 = vmatprep.subr.mxu0 0.0
    %3535 = vmatpush1.xpose.msra.mxu0 0.0
    %3536 = vmatprep.subr.mxu0 0.0
    %3537 = vmatpush1.xpose.msra.mxu0 0.0
    %3538 = vmatprep.subr.mxu0 0.0
    %3539 = vmatpush1.xpose.msra.mxu0 0.0
    %3540 = vmatprep.subr.mxu0 0.0
    %3541 = vmatpush1.xpose.msra.mxu0 0.0
    %3542 = vmatprep.subr.mxu0 0.0
    %3543 = vmatpush1.xpose.msra.mxu0 0.0
    %3544 = vmatprep.subr.mxu0 0.0
    %3545 = vmatpush1.xpose.msra.mxu0 0.0
    %3546 = vmatprep.subr.mxu0 0.0
    %3547 = vmatpush1.xpose.msra.mxu0 0.0
    %3548 = vmatprep.subr.mxu0 0.0
    %3549 = vmatpush1.xpose.msra.mxu0 0.0
    %3550 = vmatprep.subr.mxu0 0.0
    %3551 = vmatpush1.xpose.msra.mxu0 0.0
    %3552 = vmatprep.subr.mxu0 0.0
    %3553 = vmatpush1.xpose.msra.mxu0 0.0
    %3554 = vmatprep.subr.mxu0 0.0
    %3555 = vmatpush1.xpose.msra.mxu0 0.0
    %3556 = vmatprep.subr.mxu0 0.0
    %3557 = vmatpush1.xpose.msra.mxu0 0.0
    %3558 = vmatprep.subr.mxu0 0.0
    %3559 = vmatpush1.xpose.msra.mxu0 0.0
    %3560 = vmatprep.subr.mxu0 0.0
    %3561 = vmatpush1.xpose.msra.mxu0 0.0
    %3562 = vmatprep.subr.mxu0 0.0
    %3563 = vmatpush1.xpose.msra.mxu0 0.0
    %3564 = vmatprep.subr.mxu0 0.0
    %3565 = vmatpush1.xpose.msra.mxu0 0.0
    %3566 = vmatprep.subr.mxu0 0.0
    %3567 = vmatpush1.xpose.msra.mxu0 0.0
    %3568 = vmatprep.subr.mxu0 0.0
    %3569 = vmatpush1.xpose.msra.mxu0 0.0
    %3570 = vmatprep.subr.mxu0 0.0
    %3571 = vmatpush1.xpose.msra.mxu0 0.0
    %3572 = vmatprep.subr.mxu0 0.0
    %3573 = vmatpush1.xpose.msra.mxu0 0.0
    %3574 = vmatprep.subr.mxu0 0.0
    %3575 = vmatpush1.xpose.msra.mxu0 0.0
    %3576 = vmatprep.subr.mxu0 0.0
    %3577 = vmatpush1.xpose.msra.mxu0 0.0
    %3578 = vmatprep.subr.mxu0 0.0
    %3579 = vmatpush1.xpose.msra.mxu0 0.0
    %3580 = vmatprep.subr.mxu0 0.0
    %3581 = vmatpush1.xpose.msra.mxu0 0.0
    %3582 = vmatprep.subr.mxu0 0.0
    %3583 = vmatpush1.xpose.msra.mxu0 0.0
    %3584 = vmatprep.subr.mxu0 0.0
    %3585 = vmatpush1.xpose.msra.mxu0 0.0
    %3586 = vmatprep.subr.mxu0 0.0
    %3587 = vmatpush1.xpose.msra.mxu0 0.0
    %3588 = vmatprep.subr.mxu0 0.0
    %3589 = vmatpush1.xpose.msra.mxu0 0.0
    %3590 = vmatprep.subr.mxu0 0.0
    %3591 = vmatpush1.xpose.msra.mxu0 0.0
    %3592 = vmatprep.subr.mxu0 0.0
    %3593 = vmatpush1.xpose.msra.mxu0 0.0
    %3594 = vmatprep.mubr.f32.mxu0 0.0
    %3595 = vmatmul.mubr.f32.gmra.mrb[0].mxu0 %v3526
    %v3596 = vpop.f32.mrb[0].mxu0
    %v3597 = vadd.f32 %v83, %v3596
    %v3598 = vpop.f32.mrb[0].mxu0
    %3599 = vdwg.mxu0
    %3600 = vrot.lane.b32.xlu0 %v2281, 104
    %v3601 = vpop.permute.xlu0 %3600
    %3602 = vrot.lane.b32.xlu0 %v2277, 72
    %v3603 = vpop.permute.xlu0 %3602
    %v3604 = vsel %vm231, %v3601, 0
    %v3606 = vsel %vm231, %v3603, 0
    %3608 = vmatprep.subr.mxu0 0.0
    %3609 = vmatpush1.xpose.msra.mxu0 %v3606
    %3610 = vmatprep.subr.mxu0 0.0
    %3611 = vmatpush1.xpose.msra.mxu0 0.0
    %3612 = vmatprep.subr.mxu0 0.0
    %3613 = vmatpush1.xpose.msra.mxu0 0.0
    %3614 = vmatprep.subr.mxu0 0.0
    %3615 = vmatpush1.xpose.msra.mxu0 0.0
    %3616 = vmatprep.subr.mxu0 0.0
    %3617 = vmatpush1.xpose.msra.mxu0 0.0
    %3618 = vmatprep.subr.mxu0 0.0
    %3619 = vmatpush1.xpose.msra.mxu0 0.0
    %3620 = vmatprep.subr.mxu0 0.0
    %3621 = vmatpush1.xpose.msra.mxu0 0.0
    %3622 = vmatprep.subr.mxu0 0.0
    %3623 = vmatpush1.xpose.msra.mxu0 0.0
    %3624 = vmatprep.subr.mxu0 0.0
    %3625 = vmatpush1.xpose.msra.mxu0 0.0
    %3626 = vmatprep.subr.mxu0 0.0
    %3627 = vmatpush1.xpose.msra.mxu0 0.0
    %3628 = vmatprep.subr.mxu0 0.0
    %3629 = vmatpush1.xpose.msra.mxu0 0.0
    %3630 = vmatprep.subr.mxu0 0.0
    %3631 = vmatpush1.xpose.msra.mxu0 0.0
    %3632 = vmatprep.subr.mxu0 0.0
    %3633 = vmatpush1.xpose.msra.mxu0 0.0
    %3634 = vmatprep.subr.mxu0 0.0
    %3635 = vmatpush1.xpose.msra.mxu0 0.0
    %3636 = vmatprep.subr.mxu0 0.0
    %3637 = vmatpush1.xpose.msra.mxu0 0.0
    %3638 = vmatprep.subr.mxu0 0.0
    %3639 = vmatpush1.xpose.msra.mxu0 0.0
    %3640 = vmatprep.subr.mxu0 0.0
    %3641 = vmatpush1.xpose.msra.mxu0 0.0
    %3642 = vmatprep.subr.mxu0 0.0
    %3643 = vmatpush1.xpose.msra.mxu0 0.0
    %3644 = vmatprep.subr.mxu0 0.0
    %3645 = vmatpush1.xpose.msra.mxu0 0.0
    %3646 = vmatprep.subr.mxu0 0.0
    %3647 = vmatpush1.xpose.msra.mxu0 0.0
    %3648 = vmatprep.subr.mxu0 0.0
    %3649 = vmatpush1.xpose.msra.mxu0 0.0
    %3650 = vmatprep.subr.mxu0 0.0
    %3651 = vmatpush1.xpose.msra.mxu0 0.0
    %3652 = vmatprep.subr.mxu0 0.0
    %3653 = vmatpush1.xpose.msra.mxu0 0.0
    %3654 = vmatprep.subr.mxu0 0.0
    %3655 = vmatpush1.xpose.msra.mxu0 0.0
    %3656 = vmatprep.subr.mxu0 0.0
    %3657 = vmatpush1.xpose.msra.mxu0 0.0
    %3658 = vmatprep.subr.mxu0 0.0
    %3659 = vmatpush1.xpose.msra.mxu0 0.0
    %3660 = vmatprep.subr.mxu0 0.0
    %3661 = vmatpush1.xpose.msra.mxu0 0.0
    %3662 = vmatprep.subr.mxu0 0.0
    %3663 = vmatpush1.xpose.msra.mxu0 0.0
    %3664 = vmatprep.subr.mxu0 0.0
    %3665 = vmatpush1.xpose.msra.mxu0 0.0
    %3666 = vmatprep.subr.mxu0 0.0
    %3667 = vmatpush1.xpose.msra.mxu0 0.0
    %3668 = vmatprep.subr.mxu0 0.0
    %3669 = vmatpush1.xpose.msra.mxu0 0.0
    %3670 = vmatprep.subr.mxu0 0.0
    %3671 = vmatpush1.xpose.msra.mxu0 0.0
    %3672 = vmatprep.mubr.f32.mxu0 0.0
    %3673 = vmatmul.mubr.f32.gmra.mrb[0].mxu0 %v3604
    %v3674 = vpop.f32.mrb[0].mxu0
    %v3675 = vadd.f32 %v83, %v3674
    %v3676 = vpop.f32.mrb[0].mxu0
    %3677 = vdwg.mxu0
    %v3678 = vsel %vm231, %v3597, -inf
    %3679 = vmax.xlane.f32.xlu0 %v3678
    %v3680 = vpop.xlane.xlu0 %3679
    %v3681 = vsel %vm231, %v3675, -inf
    %3682 = vmax.xlane.f32.xlu0 %v3681
    %v3683 = vpop.xlane.xlu0 %3682
    %v3684 = vsub.f32 %v3597, %v3680
    %v3685 = vsub.f32 %v3675, %v3683
    %v3686 = vmul.f32 %v3684, 1.442695
    %v3687 = vpow.pop %v3686
    %v3688 = vmul.f32 %v3685, 1.442695
    %v3689 = vpow.pop %v3688
    %v3690 = vsel %vm231, %v3687, 0.0
    %3691 = vadd.xlane.f32.xlu0 %v3690
    %v3692 = vpop.xlane.xlu0 %3691
    %v3693 = vsel %vm231, %v3689, 0.0
    %3694 = vadd.xlane.f32.xlu0 %v3693
    %v3695 = vpop.xlane.xlu0 %3694
    %v3696 = vrcp.pop %v3692
    %v3697 = vrcp.pop %v3695
    %v3698 = vmul.f32 %v3687, %v3696
    %v3699 = vmul.f32 %v3689, %v3697
    %3700 = vrot.lane.b32.xlu0 %v2272, 40
    %v3701 = vpop.permute.xlu0 %3700
    %v3704 = vsel %vm231, %v3698, 0
    %3706 = vmatprep.subr.mxu0 0.0
    %3707 = vmatpush1.msra.mxu0 %v3701
    %3708 = vmatprep.subr.mxu0 0.0
    %3709 = vmatpush1.msra.mxu0 0.0
    %3710 = vmatprep.subr.mxu0 0.0
    %3711 = vmatpush1.msra.mxu0 0.0
    %3712 = vmatprep.subr.mxu0 0.0
    %3713 = vmatpush1.msra.mxu0 0.0
    %3714 = vmatprep.subr.mxu0 0.0
    %3715 = vmatpush1.msra.mxu0 0.0
    %3716 = vmatprep.subr.mxu0 0.0
    %3717 = vmatpush1.msra.mxu0 0.0
    %3718 = vmatprep.subr.mxu0 0.0
    %3719 = vmatpush1.msra.mxu0 0.0
    %3720 = vmatprep.subr.mxu0 0.0
    %3721 = vmatpush1.msra.mxu0 0.0
    %3722 = vmatprep.subr.mxu0 0.0
    %3723 = vmatpush1.msra.mxu0 0.0
    %3724 = vmatprep.subr.mxu0 0.0
    %3725 = vmatpush1.msra.mxu0 0.0
    %3726 = vmatprep.subr.mxu0 0.0
    %3727 = vmatpush1.msra.mxu0 0.0
    %3728 = vmatprep.subr.mxu0 0.0
    %3729 = vmatpush1.msra.mxu0 0.0
    %3730 = vmatprep.subr.mxu0 0.0
    %3731 = vmatpush1.msra.mxu0 0.0
    %3732 = vmatprep.subr.mxu0 0.0
    %3733 = vmatpush1.msra.mxu0 0.0
    %3734 = vmatprep.subr.mxu0 0.0
    %3735 = vmatpush1.msra.mxu0 0.0
    %3736 = vmatprep.subr.mxu0 0.0
    %3737 = vmatpush1.msra.mxu0 0.0
    %3738 = vmatprep.subr.mxu0 0.0
    %3739 = vmatpush1.msra.mxu0 0.0
    %3740 = vmatprep.subr.mxu0 0.0
    %3741 = vmatpush1.msra.mxu0 0.0
    %3742 = vmatprep.subr.mxu0 0.0
    %3743 = vmatpush1.msra.mxu0 0.0
    %3744 = vmatprep.subr.mxu0 0.0
    %3745 = vmatpush1.msra.mxu0 0.0
    %3746 = vmatprep.subr.mxu0 0.0
    %3747 = vmatpush1.msra.mxu0 0.0
    %3748 = vmatprep.subr.mxu0 0.0
    %3749 = vmatpush1.msra.mxu0 0.0
    %3750 = vmatprep.subr.mxu0 0.0
    %3751 = vmatpush1.msra.mxu0 0.0
    %3752 = vmatprep.subr.mxu0 0.0
    %3753 = vmatpush1.msra.mxu0 0.0
    %3754 = vmatprep.subr.mxu0 0.0
    %3755 = vmatpush1.msra.mxu0 0.0
    %3756 = vmatprep.subr.mxu0 0.0
    %3757 = vmatpush1.msra.mxu0 0.0
    %3758 = vmatprep.subr.mxu0 0.0
    %3759 = vmatpush1.msra.mxu0 0.0
    %3760 = vmatprep.subr.mxu0 0.0
    %3761 = vmatpush1.msra.mxu0 0.0
    %3762 = vmatprep.subr.mxu0 0.0
    %3763 = vmatpush1.msra.mxu0 0.0
    %3764 = vmatprep.subr.mxu0 0.0
    %3765 = vmatpush1.msra.mxu0 0.0
    %3766 = vmatprep.subr.mxu0 0.0
    %3767 = vmatpush1.msra.mxu0 0.0
    %3768 = vmatprep.subr.mxu0 0.0
    %3769 = vmatpush1.msra.mxu0 0.0
    %3770 = vmatprep.mubr.f32.mxu0 0.0
    %3771 = vmatmul.mubr.f32.gmra.mrb[0].mxu0 %v3704
    %v3772 = vpop.f32.mrb[0].mxu0
    %v3773 = vadd.f32 0.0, %v3772
    %v3774 = vpop.f32.mrb[0].mxu0
    %3775 = vdwg.mxu0
    %3776 = vrot.lane.b32.xlu0 %v2277, 40
    %v3777 = vpop.permute.xlu0 %3776
    %v3780 = vsel %vm231, %v3699, 0
    %3782 = vmatprep.subr.mxu0 0.0
    %3783 = vmatpush1.msra.mxu0 %v3777
    %3784 = vmatprep.subr.mxu0 0.0
    %3785 = vmatpush1.msra.mxu0 0.0
    %3786 = vmatprep.subr.mxu0 0.0
    %3787 = vmatpush1.msra.mxu0 0.0
    %3788 = vmatprep.subr.mxu0 0.0
    %3789 = vmatpush1.msra.mxu0 0.0
    %3790 = vmatprep.subr.mxu0 0.0
    %3791 = vmatpush1.msra.mxu0 0.0
    %3792 = vmatprep.subr.mxu0 0.0
    %3793 = vmatpush1.msra.mxu0 0.0
    %3794 = vmatprep.subr.mxu0 0.0
    %3795 = vmatpush1.msra.mxu0 0.0
    %3796 = vmatprep.subr.mxu0 0.0
    %3797 = vmatpush1.msra.mxu0 0.0
    %3798 = vmatprep.subr.mxu0 0.0
    %3799 = vmatpush1.msra.mxu0 0.0
    %3800 = vmatprep.subr.mxu0 0.0
    %3801 = vmatpush1.msra.mxu0 0.0
    %3802 = vmatprep.subr.mxu0 0.0
    %3803 = vmatpush1.msra.mxu0 0.0
    %3804 = vmatprep.subr.mxu0 0.0
    %3805 = vmatpush1.msra.mxu0 0.0
    %3806 = vmatprep.subr.mxu0 0.0
    %3807 = vmatpush1.msra.mxu0 0.0
    %3808 = vmatprep.subr.mxu0 0.0
    %3809 = vmatpush1.msra.mxu0 0.0
    %3810 = vmatprep.subr.mxu0 0.0
    %3811 = vmatpush1.msra.mxu0 0.0
    %3812 = vmatprep.subr.mxu0 0.0
    %3813 = vmatpush1.msra.mxu0 0.0
    %3814 = vmatprep.subr.mxu0 0.0
    %3815 = vmatpush1.msra.mxu0 0.0
    %3816 = vmatprep.subr.mxu0 0.0
    %3817 = vmatpush1.msra.mxu0 0.0
    %3818 = vmatprep.subr.mxu0 0.0
    %3819 = vmatpush1.msra.mxu0 0.0
    %3820 = vmatprep.subr.mxu0 0.0
    %3821 = vmatpush1.msra.mxu0 0.0
    %3822 = vmatprep.subr.mxu0 0.0
    %3823 = vmatpush1.msra.mxu0 0.0
    %3824 = vmatprep.subr.mxu0 0.0
    %3825 = vmatpush1.msra.mxu0 0.0
    %3826 = vmatprep.subr.mxu0 0.0
    %3827 = vmatpush1.msra.mxu0 0.0
    %3828 = vmatprep.subr.mxu0 0.0
    %3829 = vmatpush1.msra.mxu0 0.0
    %3830 = vmatprep.subr.mxu0 0.0
    %3831 = vmatpush1.msra.mxu0 0.0
    %3832 = vmatprep.subr.mxu0 0.0
    %3833 = vmatpush1.msra.mxu0 0.0
    %3834 = vmatprep.subr.mxu0 0.0
    %3835 = vmatpush1.msra.mxu0 0.0
    %3836 = vmatprep.subr.mxu0 0.0
    %3837 = vmatpush1.msra.mxu0 0.0
    %3838 = vmatprep.subr.mxu0 0.0
    %3839 = vmatpush1.msra.mxu0 0.0
    %3840 = vmatprep.subr.mxu0 0.0
    %3841 = vmatpush1.msra.mxu0 0.0
    %3842 = vmatprep.subr.mxu0 0.0
    %3843 = vmatpush1.msra.mxu0 0.0
    %3844 = vmatprep.subr.mxu0 0.0
    %3845 = vmatpush1.msra.mxu0 0.0
    %3846 = vmatprep.mubr.f32.mxu0 0.0
    %3847 = vmatmul.mubr.f32.gmra.mrb[0].mxu0 %v3780
    %v3848 = vpop.f32.mrb[0].mxu0
    %v3849 = vadd.f32 0.0, %v3848
    %v3850 = vpop.f32.mrb[0].mxu0
    %3851 = vdwg.mxu0
    %v3853 = vsel %vm231, %v3773, 0
    %v3856 = vsel %vm231, %v3849, 0
    %3858 = vmatprep.subr.mxu0 0.0
    %3859 = vmatpush1.msra.mxu0 %v2286
    %3860 = vmatprep.subr.mxu0 0.0
    %3861 = vmatpush1.msra.mxu0 0.0
    %3862 = vmatprep.subr.mxu0 0.0
    %3863 = vmatpush1.msra.mxu0 0.0
    %3864 = vmatprep.subr.mxu0 0.0
    %3865 = vmatpush1.msra.mxu0 0.0
    %3866 = vmatprep.subr.mxu0 0.0
    %3867 = vmatpush1.msra.mxu0 0.0
    %3868 = vmatprep.subr.mxu0 0.0
    %3869 = vmatpush1.msra.mxu0 0.0
    %3870 = vmatprep.subr.mxu0 0.0
    %3871 = vmatpush1.msra.mxu0 0.0
    %3872 = vmatprep.subr.mxu0 0.0
    %3873 = vmatpush1.msra.mxu0 0.0
    %3874 = vmatprep.subr.mxu0 0.0
    %3875 = vmatpush1.msra.mxu0 0.0
    %3876 = vmatprep.subr.mxu0 0.0
    %3877 = vmatpush1.msra.mxu0 0.0
    %3878 = vmatprep.subr.mxu0 0.0
    %3879 = vmatpush1.msra.mxu0 0.0
    %3880 = vmatprep.subr.mxu0 0.0
    %3881 = vmatpush1.msra.mxu0 0.0
    %3882 = vmatprep.subr.mxu0 0.0
    %3883 = vmatpush1.msra.mxu0 0.0
    %3884 = vmatprep.subr.mxu0 0.0
    %3885 = vmatpush1.msra.mxu0 0.0
    %3886 = vmatprep.subr.mxu0 0.0
    %3887 = vmatpush1.msra.mxu0 0.0
    %3888 = vmatprep.subr.mxu0 0.0
    %3889 = vmatpush1.msra.mxu0 0.0
    %3890 = vmatprep.subr.mxu0 0.0
    %3891 = vmatpush1.msra.mxu0 0.0
    %3892 = vmatprep.subr.mxu0 0.0
    %3893 = vmatpush1.msra.mxu0 0.0
    %3894 = vmatprep.subr.mxu0 0.0
    %3895 = vmatpush1.msra.mxu0 0.0
    %3896 = vmatprep.subr.mxu0 0.0
    %3897 = vmatpush1.msra.mxu0 0.0
    %3898 = vmatprep.subr.mxu0 0.0
    %3899 = vmatpush1.msra.mxu0 0.0
    %3900 = vmatprep.subr.mxu0 0.0
    %3901 = vmatpush1.msra.mxu0 0.0
    %3902 = vmatprep.subr.mxu0 0.0
    %3903 = vmatpush1.msra.mxu0 0.0
    %3904 = vmatprep.subr.mxu0 0.0
    %3905 = vmatpush1.msra.mxu0 0.0
    %3906 = vmatprep.subr.mxu0 0.0
    %3907 = vmatpush1.msra.mxu0 0.0
    %3908 = vmatprep.subr.mxu0 0.0
    %3909 = vmatpush1.msra.mxu0 0.0
    %3910 = vmatprep.subr.mxu0 0.0
    %3911 = vmatpush1.msra.mxu0 0.0
    %3912 = vmatprep.subr.mxu0 0.0
    %3913 = vmatpush1.msra.mxu0 0.0
    %3914 = vmatprep.subr.mxu0 0.0
    %3915 = vmatpush1.msra.mxu0 0.0
    %3916 = vmatprep.subr.mxu0 0.0
    %3917 = vmatpush1.msra.mxu0 0.0
    %3918 = vmatprep.subr.mxu0 0.0
    %3919 = vmatpush1.msra.mxu0 0.0
    %3920 = vmatprep.subr.mxu0 0.0
    %3921 = vmatpush1.msra.mxu0 0.0
    %3922 = vmatprep.mubr.f32.mxu0 0.0
    %3923 = vmatmul.mubr.f32.gmra.mrb[0].mxu0 %v3853
    %v3924 = vpop.f32.mrb[0].mxu0
    %v3925 = vadd.f32 0.0, %v3924
    %v3926 = vpop.f32.mrb[0].mxu0
    %3927 = vmatprep.mubr.f32.mxu0 0.0
    %3928 = vmatmul.mubr.f32.gmra.mrb[0].mxu0 %v3856
    %v3929 = vpop.f32.mrb[0].mxu0
    %v3930 = vadd.f32 0.0, %v3929
    %v3931 = vpop.f32.mrb[0].mxu0
    %3932 = vdwg.mxu0
    %v3933 = vadd.f32 %v3520, %v3925
    %v3934 = vadd.f32 %v3521, %v3930
    %v3935 = vadd.f32 %v2138, %v3933
    %v3936 = vadd.f32 %v2139, %v3934
    %s3937 = scalar_lea.vmem %s8, 1
    %v3938 = vld [vmem:[%s3937] sm:$0x1]
    %v3940 = vlaneseq
    %v3941 = vshrl.u32 %v3940, 7
    %v3942 = vsub.s32 0, %v3941
    %v3943 = vrot.slane %v3938, %v3942
    %v3945 = vadd.f32 %v3935, %v3943
    %v3946 = vadd.f32 %v3936, %v3943
    %s3947 = scalar_lea.vmem %s9, 1
    %v3948 = vld [vmem:[%s3947] sm:$0x1]
    %s3949 = scalar_lea.vmem %s10, 1
    %v3950 = vld [vmem:[%s3949] sm:$0x1]
    %v3951 = vsel %vm86, %v3945, 0.0
    %3952 = vadd.xlane.f32.xlu0 %v3951
    %v3953 = vpop.xlane.xlu0 %3952
    %v3954 = vsel %vm86, %v3946, 0.0
    %3955 = vadd.xlane.f32.xlu0 %v3954
    %v3956 = vpop.xlane.xlu0 %3955
    %v3957 = vmul.f32 %v3953, %v93
    %v3958 = vmul.f32 %v3956, %v93
    %v3959 = vsub.f32 %v3945, %v3957
    %v3960 = vsub.f32 %v3946, %v3958
    %v3961 = vmul.f32 %v3959, %v3959
    %v3962 = vmul.f32 %v3960, %v3960
    %v3963 = vsel %vm86, %v3961, 0.0
    %3964 = vadd.xlane.f32.xlu0 %v3963
    %v3965 = vpop.xlane.xlu0 %3964
    %v3966 = vsel %vm86, %v3962, 0.0
    %3967 = vadd.xlane.f32.xlu0 %v3966
    %v3968 = vpop.xlane.xlu0 %3967
    %v3969 = vmul.f32 %v3965, %v93
    %v3970 = vmul.f32 %v3968, %v93
    %v3971 = vadd.f32 %v3969, 1e-05
    %v3972 = vadd.f32 %v3970, 1e-05
    %v3973 = vrsqrt.pop %v3971
    %v3974 = vrsqrt.pop %v3972
    %v3975 = vmul.f32 %v3959, %v3973
    %v3976 = vmul.f32 %v3960, %v3974
    %v3978 = vlaneseq
    %v3979 = vshrl.u32 %v3978, 7
    %v3980 = vsub.s32 0, %v3979
    %v3981 = vrot.slane %v3948, %v3980
    %v3983 = vmul.f32 %v3975, %v3981
    %v3984 = vmul.f32 %v3976, %v3981
    %v3986 = vlaneseq
    %v3987 = vshrl.u32 %v3986, 7
    %v3988 = vsub.s32 0, %v3987
    %v3989 = vrot.slane %v3950, %v3988
    %v3991 = vadd.f32 %v3983, %v3989
    %v3992 = vadd.f32 %v3984, %v3989
    %s3993 = scalar_lea.vmem %s11, 32
    %v3994 = vld [vmem:[%s3993] sm:$0xff]
    %v3995 = vld [vmem:[%s3993 + $0x8] sm:$0xff]
    %v3996 = vld [vmem:[%s3993 + $0x10] sm:$0xff]
    %v3997 = vld [vmem:[%s3993 + $0x18] sm:$0xff]
    %s3998 = scalar_lea.vmem %s12, 1
    %v3999 = vld [vmem:[%s3998] sm:$0x1]
    %v4001 = vlaneseq
    %v4002 = vshrl.u32 %v4001, 7
    %v4003 = vsub.s32 0, %v4002
    %v4004 = vrot.slane %v3999, %v4003
    %v4007 = vsel %vm86, %v3991, 0
    %v4010 = vsel %vm86, %v3992, 0
    %4012 = vmatprep.subr.mxu0 0.0
    %4013 = vmatpush1.msra.mxu0 %v3994
    %4014 = vmatprep.subr.mxu0 0.0
    %4015 = vmatpush1.msra.mxu0 %v3995
    %4016 = vmatprep.subr.mxu0 0.0
    %4017 = vmatpush1.msra.mxu0 %v3996
    %4018 = vmatprep.subr.mxu0 0.0
    %4019 = vmatpush1.msra.mxu0 %v3997
    %4020 = vmatprep.subr.mxu0 0.0
    %4021 = vmatpush1.msra.mxu0 0.0
    %4022 = vmatprep.subr.mxu0 0.0
    %4023 = vmatpush1.msra.mxu0 0.0
    %4024 = vmatprep.subr.mxu0 0.0
    %4025 = vmatpush1.msra.mxu0 0.0
    %4026 = vmatprep.subr.mxu0 0.0
    %4027 = vmatpush1.msra.mxu0 0.0
    %4028 = vmatprep.subr.mxu0 0.0
    %4029 = vmatpush1.msra.mxu0 0.0
    %4030 = vmatprep.subr.mxu0 0.0
    %4031 = vmatpush1.msra.mxu0 0.0
    %4032 = vmatprep.subr.mxu0 0.0
    %4033 = vmatpush1.msra.mxu0 0.0
    %4034 = vmatprep.subr.mxu0 0.0
    %4035 = vmatpush1.msra.mxu0 0.0
    %4036 = vmatprep.subr.mxu0 0.0
    %4037 = vmatpush1.msra.mxu0 0.0
    %4038 = vmatprep.subr.mxu0 0.0
    %4039 = vmatpush1.msra.mxu0 0.0
    %4040 = vmatprep.subr.mxu0 0.0
    %4041 = vmatpush1.msra.mxu0 0.0
    %4042 = vmatprep.subr.mxu0 0.0
    %4043 = vmatpush1.msra.mxu0 0.0
    %4044 = vmatprep.subr.mxu0 0.0
    %4045 = vmatpush1.msra.mxu0 0.0
    %4046 = vmatprep.subr.mxu0 0.0
    %4047 = vmatpush1.msra.mxu0 0.0
    %4048 = vmatprep.subr.mxu0 0.0
    %4049 = vmatpush1.msra.mxu0 0.0
    %4050 = vmatprep.subr.mxu0 0.0
    %4051 = vmatpush1.msra.mxu0 0.0
    %4052 = vmatprep.subr.mxu0 0.0
    %4053 = vmatpush1.msra.mxu0 0.0
    %4054 = vmatprep.subr.mxu0 0.0
    %4055 = vmatpush1.msra.mxu0 0.0
    %4056 = vmatprep.subr.mxu0 0.0
    %4057 = vmatpush1.msra.mxu0 0.0
    %4058 = vmatprep.subr.mxu0 0.0
    %4059 = vmatpush1.msra.mxu0 0.0
    %4060 = vmatprep.subr.mxu0 0.0
    %4061 = vmatpush1.msra.mxu0 0.0
    %4062 = vmatprep.subr.mxu0 0.0
    %4063 = vmatpush1.msra.mxu0 0.0
    %4064 = vmatprep.subr.mxu0 0.0
    %4065 = vmatpush1.msra.mxu0 0.0
    %4066 = vmatprep.subr.mxu0 0.0
    %4067 = vmatpush1.msra.mxu0 0.0
    %4068 = vmatprep.subr.mxu0 0.0
    %4069 = vmatpush1.msra.mxu0 0.0
    %4070 = vmatprep.subr.mxu0 0.0
    %4071 = vmatpush1.msra.mxu0 0.0
    %4072 = vmatprep.subr.mxu0 0.0
    %4073 = vmatpush1.msra.mxu0 0.0
    %4074 = vmatprep.subr.mxu0 0.0
    %4075 = vmatpush1.msra.mxu0 0.0
    %4076 = vmatprep.mubr.f32.mxu0 0.0
    %4077 = vmatmul.mubr.f32.gmra.mrb[0].mxu0 %v4007
    %v4078 = vpop.f32.mrb[0].mxu0
    %v4079 = vadd.f32 %v4004, %v4078
    %v4080 = vpop.f32.mrb[0].mxu0
    %4081 = vmatprep.mubr.f32.mxu0 0.0
    %4082 = vmatmul.mubr.f32.gmra.mrb[0].mxu0 %v4010
    %v4083 = vpop.f32.mrb[0].mxu0
    %v4084 = vadd.f32 %v4004, %v4083
    %v4085 = vpop.f32.mrb[0].mxu0
    %4086 = vdwg.mxu0
    %v4087 = vmul.f32 %v4079, 1.702
    %v4088 = vmul.f32 %v4084, 1.702
    %v4089 = vxor.u32 %v4087, 2147483648
    %v4090 = vxor.u32 %v4088, 2147483648
    %v4091 = vmul.f32 %v4089, 1.442695
    %v4092 = vpow.pop %v4091
    %v4093 = vmul.f32 %v4090, 1.442695
    %v4094 = vpow.pop %v4093
    %v4095 = vadd.f32 %v4092, 1.0
    %v4096 = vadd.f32 %v4094, 1.0
    %v4097 = vrcp.pop %v4095
    %v4098 = vmul.f32 1.0, %v4097
    %v4099 = vrcp.pop %v4096
    %v4100 = vmul.f32 1.0, %v4099
    %v4101 = vmul.f32 %v4079, %v4098
    %v4102 = vmul.f32 %v4084, %v4100
    %s4103 = scalar_lea.vmem %s13, 128
    %v4104 = vld [vmem:[%s4103] sm:$0xff]
    %v4105 = vld [vmem:[%s4103 + $0x8] sm:$0xff]
    %v4106 = vld [vmem:[%s4103 + $0x10] sm:$0xff]
    %v4107 = vld [vmem:[%s4103 + $0x18] sm:$0xff]
    %v4108 = vld [vmem:[%s4103 + $0x20] sm:$0xff]
    %v4109 = vld [vmem:[%s4103 + $0x28] sm:$0xff]
    %v4110 = vld [vmem:[%s4103 + $0x30] sm:$0xff]
    %v4111 = vld [vmem:[%s4103 + $0x38] sm:$0xff]
    %v4112 = vld [vmem:[%s4103 + $0x40] sm:$0xff]
    %v4113 = vld [vmem:[%s4103 + $0x48] sm:$0xff]
    %v4114 = vld [vmem:[%s4103 + $0x50] sm:$0xff]
    %v4115 = vld [vmem:[%s4103 + $0x58] sm:$0xff]
    %v4116 = vld [vmem:[%s4103 + $0x60] sm:$0xff]
    %v4117 = vld [vmem:[%s4103 + $0x68] sm:$0xff]
    %v4118 = vld [vmem:[%s4103 + $0x70] sm:$0xff]
    %v4119 = vld [vmem:[%s4103 + $0x78] sm:$0xff]
    %s4120 = scalar_lea.vmem %s14, 1
    %v4121 = vld [vmem:[%s4120] sm:$0x1]
    %v4123 = vlaneseq
    %v4124 = vshrl.u32 %v4123, 7
    %v4125 = vsub.s32 0, %v4124
    %v4126 = vrot.slane %v4121, %v4125
    %4128 = vmatprep.subr.mxu0 0.0
    %4129 = vmatpush1.msra.mxu0 %v4104
    %4130 = vmatprep.subr.mxu0 0.0
    %4131 = vmatpush1.msra.mxu0 %v4105
    %4132 = vmatprep.subr.mxu0 0.0
    %4133 = vmatpush1.msra.mxu0 %v4106
    %4134 = vmatprep.subr.mxu0 0.0
    %4135 = vmatpush1.msra.mxu0 %v4107
    %4136 = vmatprep.subr.mxu0 0.0
    %4137 = vmatpush1.msra.mxu0 %v4108
    %4138 = vmatprep.subr.mxu0 0.0
    %4139 = vmatpush1.msra.mxu0 %v4109
    %4140 = vmatprep.subr.mxu0 0.0
    %4141 = vmatpush1.msra.mxu0 %v4110
    %4142 = vmatprep.subr.mxu0 0.0
    %4143 = vmatpush1.msra.mxu0 %v4111
    %4144 = vmatprep.subr.mxu0 0.0
    %4145 = vmatpush1.msra.mxu0 %v4112
    %4146 = vmatprep.subr.mxu0 0.0
    %4147 = vmatpush1.msra.mxu0 %v4113
    %4148 = vmatprep.subr.mxu0 0.0
    %4149 = vmatpush1.msra.mxu0 %v4114
    %4150 = vmatprep.subr.mxu0 0.0
    %4151 = vmatpush1.msra.mxu0 %v4115
    %4152 = vmatprep.subr.mxu0 0.0
    %4153 = vmatpush1.msra.mxu0 %v4116
    %4154 = vmatprep.subr.mxu0 0.0
    %4155 = vmatpush1.msra.mxu0 %v4117
    %4156 = vmatprep.subr.mxu0 0.0
    %4157 = vmatpush1.msra.mxu0 %v4118
    %4158 = vmatprep.subr.mxu0 0.0
    %4159 = vmatpush1.msra.mxu0 %v4119
    %4160 = vmatprep.subr.mxu0 0.0
    %4161 = vmatpush1.msra.mxu0 0.0
    %4162 = vmatprep.subr.mxu0 0.0
    %4163 = vmatpush1.msra.mxu0 0.0
    %4164 = vmatprep.subr.mxu0 0.0
    %4165 = vmatpush1.msra.mxu0 0.0
    %4166 = vmatprep.subr.mxu0 0.0
    %4167 = vmatpush1.msra.mxu0 0.0
    %4168 = vmatprep.subr.mxu0 0.0
    %4169 = vmatpush1.msra.mxu0 0.0
    %4170 = vmatprep.subr.mxu0 0.0
    %4171 = vmatpush1.msra.mxu0 0.0
    %4172 = vmatprep.subr.mxu0 0.0
    %4173 = vmatpush1.msra.mxu0 0.0
    %4174 = vmatprep.subr.mxu0 0.0
    %4175 = vmatpush1.msra.mxu0 0.0
    %4176 = vmatprep.subr.mxu0 0.0
    %4177 = vmatpush1.msra.mxu0 0.0
    %4178 = vmatprep.subr.mxu0 0.0
    %4179 = vmatpush1.msra.mxu0 0.0
    %4180 = vmatprep.subr.mxu0 0.0
    %4181 = vmatpush1.msra.mxu0 0.0
    %4182 = vmatprep.subr.mxu0 0.0
    %4183 = vmatpush1.msra.mxu0 0.0
    %4184 = vmatprep.subr.mxu0 0.0
    %4185 = vmatpush1.msra.mxu0 0.0
    %4186 = vmatprep.subr.mxu0 0.0
    %4187 = vmatpush1.msra.mxu0 0.0
    %4188 = vmatprep.subr.mxu0 0.0
    %4189 = vmatpush1.msra.mxu0 0.0
    %4190 = vmatprep.subr.mxu0 0.0
    %4191 = vmatpush1.msra.mxu0 0.0
    %4192 = vmatprep.mubr.f32.mxu0 0.0
    %4193 = vmatmul.mubr.f32.gmra.mrb[0].mxu0 %v4101
    %v4194 = vpop.f32.mrb[0].mxu0
    %v4195 = vadd.f32 %v4126, %v4194
    %v4196 = vpop.f32.mrb[0].mxu0
    %4197 = vmatprep.mubr.f32.mxu0 0.0
    %4198 = vmatmul.mubr.f32.gmra.mrb[0].mxu0 %v4102
    %v4199 = vpop.f32.mrb[0].mxu0
    %v4200 = vadd.f32 %v4126, %v4199
    %v4201 = vpop.f32.mrb[0].mxu0
    %4202 = vdwg.mxu0
    %v4203 = vadd.f32 %v3945, %v4195
    %v4204 = vadd.f32 %v3946, %v4200
    %s4205 = sld [smem:[#allocation2]]
    %p4206 = scmp.gt.s32.totalorder %s4205, 0
    %s4207 = scalar_select %p4206, %s4205, 0
    %p4208 = scmp.lt.s32.totalorder %s4207, 7
    %s4209 = scalar_select %p4208, %s4207, 7
    %vm4210 = vcmp.eq.s32.totalorder %v79, 0
    %v4211 = vstv %s4209
    %vm4212 = vcmp.eq.s32.totalorder %v81, %v4211
    %vm4213 = vmand %vm4210, %vm4212
    %v4214 = vsel %vm4213, 1.0, 0.0
    %v4215 = vadd.f32 %v4214, 0.0
    %s4216 = sld [smem:[#allocation2 + $0x1]]
    %p4217 = scmp.gt.s32.totalorder %s4216, 0
    %s4218 = scalar_select %p4217, %s4216, 0
    %p4219 = scmp.lt.s32.totalorder %s4218, 7
    %s4220 = scalar_select %p4219, %s4218, 7
    %s4221 = sadd.s32 %s4220, 8
    %vm4222 = vcmp.eq.s32.totalorder %v79, 1
    %v4223 = vstv %s4221
    %vm4224 = vcmp.eq.s32.totalorder %v81, %v4223
    %vm4225 = vmand %vm4222, %vm4224
    %v4226 = vsel %vm4225, 1.0, 0.0
    %v4227 = vadd.f32 %v4215, %v4226
    %vm4228 = vcmask 130048
    %v4230 = vsel %vm4228, %v4227, 0
    %4232 = vmatprep.subr.mxu0 0.0
    %4233 = vmatpush1.msra.mxu0 %v4203
    %4234 = vmatprep.subr.mxu0 0.0
    %4235 = vmatpush1.msra.mxu0 %v4204
    %4236 = vmatprep.subr.mxu0 0.0
    %4237 = vmatpush1.msra.mxu0 0.0
    %4238 = vmatprep.subr.mxu0 0.0
    %4239 = vmatpush1.msra.mxu0 0.0
    %4240 = vmatprep.subr.mxu0 0.0
    %4241 = vmatpush1.msra.mxu0 0.0
    %4242 = vmatprep.subr.mxu0 0.0
    %4243 = vmatpush1.msra.mxu0 0.0
    %4244 = vmatprep.subr.mxu0 0.0
    %4245 = vmatpush1.msra.mxu0 0.0
    %4246 = vmatprep.subr.mxu0 0.0
    %4247 = vmatpush1.msra.mxu0 0.0
    %4248 = vmatprep.subr.mxu0 0.0
    %4249 = vmatpush1.msra.mxu0 0.0
    %4250 = vmatprep.subr.mxu0 0.0
    %4251 = vmatpush1.msra.mxu0 0.0
    %4252 = vmatprep.subr.mxu0 0.0
    %4253 = vmatpush1.msra.mxu0 0.0
    %4254 = vmatprep.subr.mxu0 0.0
    %4255 = vmatpush1.msra.mxu0 0.0
    %4256 = vmatprep.subr.mxu0 0.0
    %4257 = vmatpush1.msra.mxu0 0.0
    %4258 = vmatprep.subr.mxu0 0.0
    %4259 = vmatpush1.msra.mxu0 0.0
    %4260 = vmatprep.subr.mxu0 0.0
    %4261 = vmatpush1.msra.mxu0 0.0
    %4262 = vmatprep.subr.mxu0 0.0
    %4263 = vmatpush1.msra.mxu0 0.0
    %4264 = vmatprep.subr.mxu0 0.0
    %4265 = vmatpush1.msra.mxu0 0.0
    %4266 = vmatprep.subr.mxu0 0.0
    %4267 = vmatpush1.msra.mxu0 0.0
    %4268 = vmatprep.subr.mxu0 0.0
    %4269 = vmatpush1.msra.mxu0 0.0
    %4270 = vmatprep.subr.mxu0 0.0
    %4271 = vmatpush1.msra.mxu0 0.0
    %4272 = vmatprep.subr.mxu0 0.0
    %4273 = vmatpush1.msra.mxu0 0.0
    %4274 = vmatprep.subr.mxu0 0.0
    %4275 = vmatpush1.msra.mxu0 0.0
    %4276 = vmatprep.subr.mxu0 0.0
    %4277 = vmatpush1.msra.mxu0 0.0
    %4278 = vmatprep.subr.mxu0 0.0
    %4279 = vmatpush1.msra.mxu0 0.0
    %4280 = vmatprep.subr.mxu0 0.0
    %4281 = vmatpush1.msra.mxu0 0.0
    %4282 = vmatprep.subr.mxu0 0.0
    %4283 = vmatpush1.msra.mxu0 0.0
    %4284 = vmatprep.subr.mxu0 0.0
    %4285 = vmatpush1.msra.mxu0 0.0
    %4286 = vmatprep.subr.mxu0 0.0
    %4287 = vmatpush1.msra.mxu0 0.0
    %4288 = vmatprep.subr.mxu0 0.0
    %4289 = vmatpush1.msra.mxu0 0.0
    %4290 = vmatprep.subr.mxu0 0.0
    %4291 = vmatpush1.msra.mxu0 0.0
    %4292 = vmatprep.subr.mxu0 0.0
    %4293 = vmatpush1.msra.mxu0 0.0
    %4294 = vmatprep.subr.mxu0 0.0
    %4295 = vmatpush1.msra.mxu0 0.0
    %4296 = vmatprep.mubr.f32.mxu0 0.0
    %4297 = vmatmul.mubr.f32.gmra.mrb[0].mxu0 %v4230
    %v4298 = vpop.f32.mrb[0].mxu0
    %v4299 = vadd.f32 0.0, %v4298
    %v4300 = vpop.f32.mrb[0].mxu0
    %4301 = vdwg.mxu0
    %v4302 = vld [vmem:[%s15] sm:$0x1]
    %v4303 = vld [vmem:[%s16] sm:$0x1]
    %vm4304 = vcmask 254976
    %v4305 = vsel %vm4304, %v4299, 0.0
    %4306 = vadd.xlane.f32.xlu0 %v4305
    %v4307 = vpop.xlane.xlu0 %4306
    %v4308 = vmul.f32 %v4307, %v93
    %v4309 = vsub.f32 %v4299, %v4308
    %v4310 = vmul.f32 %v4309, %v4309
    %v4311 = vsel %vm4304, %v4310, 0.0
    %4312 = vadd.xlane.f32.xlu0 %v4311
    %v4313 = vpop.xlane.xlu0 %4312
    %v4314 = vmul.f32 %v4313, %v93
    %v4315 = vadd.f32 %v4314, 1e-05
    %v4316 = vrsqrt.pop %v4315
    %v4317 = vmul.f32 %v4309, %v4316
    %v4319 = vlaneseq
    %v4320 = vshrl.u32 %v4319, 7
    %v4321 = vsub.s32 0, %v4320
    %v4322 = vrot.slane %v4302, %v4321
    %v4324 = vmul.f32 %v4317, %v4322
    %v4326 = vlaneseq
    %v4327 = vshrl.u32 %v4326, 7
    %v4328 = vsub.s32 0, %v4327
    %v4329 = vrot.slane %v4303, %v4328
    %v4331 = vadd.f32 %v4324, %v4329
    %v4332 = vld [vmem:[%s17] sm:$0xff]
    %v4333 = vld [vmem:[%s17 + $0x8] sm:$0xff]
    %v4334 = vld [vmem:[%s17 + $0x10] sm:$0xff]
    %v4335 = vld [vmem:[%s17 + $0x18] sm:$0xff]
    %v4337 = vsel %vm86, %v4331, 0
    %4339 = vmatprep.subr.mxu0 0.0
    %4340 = vmatpush1.msra.mxu0 %v4332
    %4341 = vmatprep.subr.mxu0 0.0
    %4342 = vmatpush1.msra.mxu0 %v4333
    %4343 = vmatprep.subr.mxu0 0.0
    %4344 = vmatpush1.msra.mxu0 %v4334
    %4345 = vmatprep.subr.mxu0 0.0
    %4346 = vmatpush1.msra.mxu0 %v4335
    %4347 = vmatprep.subr.mxu0 0.0
    %4348 = vmatpush1.msra.mxu0 0.0
    %4349 = vmatprep.subr.mxu0 0.0
    %4350 = vmatpush1.msra.mxu0 0.0
    %4351 = vmatprep.subr.mxu0 0.0
    %4352 = vmatpush1.msra.mxu0 0.0
    %4353 = vmatprep.subr.mxu0 0.0
    %4354 = vmatpush1.msra.mxu0 0.0
    %4355 = vmatprep.subr.mxu0 0.0
    %4356 = vmatpush1.msra.mxu0 0.0
    %4357 = vmatprep.subr.mxu0 0.0
    %4358 = vmatpush1.msra.mxu0 0.0
    %4359 = vmatprep.subr.mxu0 0.0
    %4360 = vmatpush1.msra.mxu0 0.0
    %4361 = vmatprep.subr.mxu0 0.0
    %4362 = vmatpush1.msra.mxu0 0.0
    %4363 = vmatprep.subr.mxu0 0.0
    %4364 = vmatpush1.msra.mxu0 0.0
    %4365 = vmatprep.subr.mxu0 0.0
    %4366 = vmatpush1.msra.mxu0 0.0
    %4367 = vmatprep.subr.mxu0 0.0
    %4368 = vmatpush1.msra.mxu0 0.0
    %4369 = vmatprep.subr.mxu0 0.0
    %4370 = vmatpush1.msra.mxu0 0.0
    %4371 = vmatprep.subr.mxu0 0.0
    %4372 = vmatpush1.msra.mxu0 0.0
    %4373 = vmatprep.subr.mxu0 0.0
    %4374 = vmatpush1.msra.mxu0 0.0
    %4375 = vmatprep.subr.mxu0 0.0
    %4376 = vmatpush1.msra.mxu0 0.0
    %4377 = vmatprep.subr.mxu0 0.0
    %4378 = vmatpush1.msra.mxu0 0.0
    %4379 = vmatprep.subr.mxu0 0.0
    %4380 = vmatpush1.msra.mxu0 0.0
    %4381 = vmatprep.subr.mxu0 0.0
    %4382 = vmatpush1.msra.mxu0 0.0
    %4383 = vmatprep.subr.mxu0 0.0
    %4384 = vmatpush1.msra.mxu0 0.0
    %4385 = vmatprep.subr.mxu0 0.0
    %4386 = vmatpush1.msra.mxu0 0.0
    %4387 = vmatprep.subr.mxu0 0.0
    %4388 = vmatpush1.msra.mxu0 0.0
    %4389 = vmatprep.subr.mxu0 0.0
    %4390 = vmatpush1.msra.mxu0 0.0
    %4391 = vmatprep.subr.mxu0 0.0
    %4392 = vmatpush1.msra.mxu0 0.0
    %4393 = vmatprep.subr.mxu0 0.0
    %4394 = vmatpush1.msra.mxu0 0.0
    %4395 = vmatprep.subr.mxu0 0.0
    %4396 = vmatpush1.msra.mxu0 0.0
    %4397 = vmatprep.subr.mxu0 0.0
    %4398 = vmatpush1.msra.mxu0 0.0
    %4399 = vmatprep.subr.mxu0 0.0
    %4400 = vmatpush1.msra.mxu0 0.0
    %4401 = vmatprep.subr.mxu0 0.0
    %4402 = vmatpush1.msra.mxu0 0.0
    %4403 = vmatprep.mubr.f32.mxu0 0.0
    %4404 = vmatmul.mubr.f32.gmra.mrb[0].mxu0 %v4337
    %v4405 = vpop.f32.mrb[0].mxu0
    %v4406 = vadd.f32 0.0, %v4405
    %v4407 = vpop.f32.mrb[0].mxu0
    %4408 = vdwg.mxu0
    %vm4409 = vcmask 123904
    %4410 = vst.msk [vmem:[#allocation5] sm:$0x3] %vm4409, %v4406
    // Predicated region
    $region78: #{tpu_custom_call.1} parent=1 // pred_check
      _
    $region79: #{tpu_custom_call.1} parent=1 // pred_check_branch
      %4412 = sbr.rel (0) target = $region81
    $region80: #{tpu_custom_call.1} parent=1 // pred_region
      %s4414 = ssub.s32 32, 32
      %4415 = vsyncadd [#allocation3], %s4414
      %s4417 = sshll.u32 [#allocation5], 4
      %s4418 = int_to_ptr.vmem [resolvable:$true] %s4417
      %4420 = dma.vmem_to_hbm [thread:$0]  %s4418, 32, %s18, [#allocation3]
    $region81: #{tpu_custom_call.1} parent=1 // pred_fallthru
      _
    // Predicated region
    $region82: #{tpu_custom_call.1} parent=1 // pred_check
      _
    $region83: #{tpu_custom_call.1} parent=1 // pred_check_branch
      %4422 = sbr.rel (0) target = $region85
    $region84: #{tpu_custom_call.1} parent=1 // pred_region
      %4423 = dma.done [#allocation3], 32
    $region85: #{tpu_custom_call.1} parent=1 // pred_fallthru
      _
    %4424 = vsyncpa [#allocation3], 1
    %4425 = vsyncpa [#allocation4], 1

</llo_original>
